<compile_context>
chip_gen: v7x
topology: tpu7x:2x2x1
jax: 0.10.0
libtpu: 0.0.40
codegen_flags: <defaults>
</compile_context>

<pallas_src>
import jax
import jax.numpy as jnp
from jax.experimental import pallas as pl
from jax.experimental.pallas import tpu as pltpu

Z_SIZE = 32
H1, H2, H3, H4 = 64, 128, 512, 1024
OUT_FEATS = 2048 * 3          # 6144


def _pick_tile_n():
    """Output-tile width for the final layer, chosen per TPU generation."""
    try:
        vmem_bytes = pltpu.get_tpu_info().vmem_capacity_bytes
    except Exception:
        vmem_bytes = 64 << 20   # conservative fallback (v7x-sized VMEM)
    # 128 MiB VMEM (v5e/v6e): bigger tiles, fewer grid steps.
    # 64 MiB per-core VMEM (v7x): keep 1536 -> 4 steps, even split across 2 TCs.
    return 3072 if vmem_bytes >= (100 << 20) else 1536


def _final_layer_kernel(h4_ref, w5_ref, b5_ref, out_ref):
    """(B, 1024) @ bf16 (1024, TN) + f32 (1, TN) -> f32 (B, TN) output tile."""
    h4_bf = h4_ref[...].astype(jnp.bfloat16)          # tiny cast, per tile
    out_ref[...] = (
        jnp.dot(h4_bf, w5_ref[...], preferred_element_type=jnp.float32)
        + b5_ref[...]
    ).astype(out_ref.dtype)


def decoder_forward(z, params):
    """z: (B, Z_SIZE) float32. Returns (B, 3, 2048) float32."""
    (w1, b1), (w2, b2), (w3, b3), (w4, b4), (w5, b5) = params
    B = z.shape[0]

    # --- Front-end MLP in plain XLA (perf review: a dedicated pallas_call
    # costs more in launch/prologue + an HBM round trip than this <1 MFLOP
    # latency-bound chain; XLA fuses it). ------------------------------------
    h = z
    for w, b in ((w1, b1), (w2, b2), (w3, b3), (w4, b4)):
        h = jnp.maximum(
            jnp.dot(h, w, preferred_element_type=jnp.float32) + b, 0.0)
    # h: (B, 1024) float32

    # --- Final big layer: stream bf16 W5 in N-tiles, data-parallel grid ------
    tn = _pick_tile_n()
    n_tiles = OUT_FEATS // tn
    out_flat = pl.pallas_call(
        _final_layer_kernel,
        out_shape=jax.ShapeDtypeStruct((B, OUT_FEATS), jnp.float32),
        grid=(n_tiles,),
        in_specs=[
            pl.BlockSpec((B, H4), lambda j: (0, 0)),         # h4 (VMEM-resident)
            pl.BlockSpec((H4, tn), lambda j: (0, j)),        # W5 tile (bf16, streamed)
            pl.BlockSpec((1, tn), lambda j: (0, j)),         # b5 tile (f32)
        ],
        out_specs=pl.BlockSpec((B, tn), lambda j: (0, j)),
        compiler_params=pltpu.CompilerParams(
            dimension_semantics=("parallel",),               # independent output tiles
            vmem_limit_bytes=32 << 20,                       # fits every generation
        ),
    )(h, w5, b5)

    # output.view(-1, 3, 2048)
    return out_flat.reshape(-1, 3, 2048)


def init_params(key):
    """PyTorch-Linear-style init; weights stored (in, out).

    The big final-layer weight matrix is cast ONCE to bfloat16 here (f32
    accumulation happens in the kernel); all other tensors stay float32.
    """
    dims = [(Z_SIZE, H1), (H1, H2), (H2, H3), (H3, H4), (H4, OUT_FEATS)]
    params = []
    for i, (fan_in, fan_out) in enumerate(dims):
        kw, kb = jax.random.split(jax.random.fold_in(key, i))
        bound = 1.0 / (fan_in ** 0.5)
        w = jax.random.uniform(kw, (fan_in, fan_out), jnp.float32, -bound, bound)
        b = jax.random.uniform(kb, (1, fan_out), jnp.float32, -bound, bound)
        if i == len(dims) - 1:
            w = w.astype(jnp.bfloat16)     # one-time cast: halves HBM stream
        params.append((w, b))
    return params


def reference_forward(z, params):
    """Pure-jnp reference mirroring the kernel's dtypes (bf16 W5, f32 acc)."""
    (w1, b1), (w2, b2), (w3, b3), (w4, b4), (w5, b5) = params
    h = z
    for w, b in ((w1, b1), (w2, b2), (w3, b3), (w4, b4)):
        h = jnp.maximum(
            jnp.dot(h, w, preferred_element_type=jnp.float32) + b, 0.0)
    out = jnp.dot(h.astype(jnp.bfloat16), w5,
                  preferred_element_type=jnp.float32) + b5
    return out.reshape(-1, 3, 2048)


if __name__ == "__main__":
    key = jax.random.PRNGKey(0)
    k_in, k_p = jax.random.split(key)

    B = 2
    # PyTorch input is e.g. (B, z_size, 1, 1); forward does input.squeeze().
    x = jax.random.normal(k_in, (B, Z_SIZE, 1, 1), jnp.float32)
    z = jnp.squeeze(x)                      # (B, Z_SIZE)

    params = init_params(k_p)

    fwd = jax.jit(decoder_forward)
    out = jax.block_until_ready(fwd(z, params))

    ref = reference_forward(z, params)
    assert out.shape == (B, 3, 2048), out.shape
    assert jnp.allclose(out, ref, atol=1e-3, rtol=1e-3), float(
        jnp.max(jnp.abs(out - ref)))

    print("KERNEL_OK")
</pallas_src>

<mosaic_0001>
module attributes {stable_mosaic.version = 11 : i64} {
  func.func @_final_layer_kernel(%arg0: i32, %arg1: memref<2x1024xf32, #tpu.memory_space<vmem>>, %arg2: memref<1024x1536xbf16, #tpu.memory_space<vmem>>, %arg3: memref<1x1536xf32, #tpu.memory_space<vmem>>, %arg4: memref<2x1536xf32, #tpu.memory_space<vmem>>) attributes {dimension_semantics = [#tpu.dimension_semantics<parallel>], iteration_bounds = array<i64: 4>, scalar_prefetch = 0 : i64, scratch_operands = 0 : i64, tpu.core_type = #tpu.core_type<tc>, window_params = [{pipeline_mode = #tpu.pipeline_mode<synchronous>, transform_indices = @transform_0, window_bounds = array<i64: 2, 1024>}, {transform_indices = @transform_1, window_bounds = array<i64: 1024, 1536>}, {transform_indices = @transform_2, window_bounds = array<i64: 1, 1536>}, {transform_indices = @transform_3, window_bounds = array<i64: 2, 1536>}]} {
    %c0 = arith.constant 0 : index
    %c0_0 = arith.constant 0 : index
    %0 = vector.load %arg1[%c0, %c0_0] : memref<2x1024xf32, #tpu.memory_space<vmem>>, vector<2x1024xf32>
    %1 = arith.truncf %0 : vector<2x1024xf32> to vector<2x1024xbf16>
    %c0_1 = arith.constant 0 : index
    %c0_2 = arith.constant 0 : index
    %2 = vector.load %arg2[%c0_1, %c0_2] : memref<1024x1536xbf16, #tpu.memory_space<vmem>>, vector<1024x1536xbf16>
    %cst = arith.constant dense<0.000000e+00> : vector<2x1536xf32>
    %3 = tpu.matmul %1, %2, %cst {dimension_numbers = #tpu.dot_dimension_numbers<[1], [0], [0], [1], [0, 0, 1, 1], [], []>} : vector<2x1024xbf16>, vector<1024x1536xbf16>, vector<2x1536xf32> -> vector<2x1536xf32>
    %c0_3 = arith.constant 0 : index
    %c0_4 = arith.constant 0 : index
    %4 = vector.load %arg3[%c0_3, %c0_4] : memref<1x1536xf32, #tpu.memory_space<vmem>>, vector<1x1536xf32>
    %5 = vector.broadcast %4 : vector<1x1536xf32> to vector<2x1536xf32>
    %6 = arith.addf %3, %5 : vector<2x1536xf32>
    %c0_5 = arith.constant 0 : index
    %c0_6 = arith.constant 0 : index
    %7 = vector.load %arg4[%c0_5, %c0_6] : memref<2x1536xf32, #tpu.memory_space<vmem>>, vector<2x1536xf32>
    tpu.vector_store %arg4[%c0_5, %c0_6], %6 {strides = array<i32>} : memref<2x1536xf32, #tpu.memory_space<vmem>>, vector<2x1536xf32>,
    return
  }
  func.func @transform_0(%arg0: i32) -> (i32, i32) {
    %c0_i32 = arith.constant 0 : i32
    %c0_i32_0 = arith.constant 0 : i32
    %c0_i32_1 = arith.constant 0 : i32
    return %c0_i32, %c0_i32_0 : i32, i32
  }
  func.func @transform_1(%arg0: i32) -> (i32, i32) {
    %c0_i32 = arith.constant 0 : i32
    %c0_i32_0 = arith.constant 0 : i32
    return %c0_i32, %arg0 : i32, i32
  }
  func.func @transform_2(%arg0: i32) -> (i32, i32) {
    %c0_i32 = arith.constant 0 : i32
    %c0_i32_0 = arith.constant 0 : i32
    return %c0_i32, %arg0 : i32, i32
  }
  func.func @transform_3(%arg0: i32) -> (i32, i32) {
    %c0_i32 = arith.constant 0 : i32
    %c0_i32_0 = arith.constant 0 : i32
    return %c0_i32, %arg0 : i32, i32
  }
}

</mosaic_0001>

<llo_original>
// kernel: decoder_forward.1
$region0: #{decoder_forward.1}
  #allocation0 [shape = 'u32[]', space=smem, size = 0x4, offset = 0x4, fixed_abs, tag = 'smem constant byte address 0x4 - core index']
  #allocation1 [shape = 'u32[144,128]{1,0:T(1,128)}', space=vmem, size = 0x12000, scoped, tag = 'internal scratch']
  %s0 = inlined_call_operand.vmem [shape: f32[2,1024], index: 0, kind: input, shape index: {}]
  %s1 = inlined_call_operand.hbm [shape: bf16[1024,6144], index: 1, kind: input, shape index: {}]
  %s2 = inlined_call_operand.vmem [shape: f32[1,6144], index: 2, kind: input, shape index: {}]
  %s3 = inlined_call_operand.hbm [shape: f32[2,6144], index: 3, kind: output, shape index: {}]
  %s4 = sld [smem:[#allocation0]]
  $region49: #{decoder_forward.1} parent=0
    _
  %s6 = ssub.s32 1, %s4
  %s7 = scalar_select 0, %s6, %s4
  $region1: #{decoder_forward.1} parent=0
    #allocation2 [shape = 'u8[6291456]{0}', space=vmem, size = 0x600000, scoped, tag = 'input window, operand 1']
    #allocation3 [shape = 's32[2]{0}', space=sflag, size = 0x8, scoped, tag = 'scoped memory for decoder_forward.1']
    #allocation4 [shape = 's32[2]{0}', space=sflag, size = 0x8, scoped, tag = 'scoped memory for decoder_forward.1']
    #allocation5 [shape = 'u8[24576]{0}', space=vmem, size = 0x6000, scoped, tag = 'output window, operand 0']
    %8 = vsyncpa [#allocation3], 0
    %s9 = scalar_lea.sflag [#allocation3], 1
    %10 = vsyncpa %s9, 0
    %11 = vsyncpa [#allocation4], 0
    %s12 = scalar_lea.sflag [#allocation4], 1
    %13 = vsyncpa %s12, 0
    loop: start=0, step=1, limit=6
    $region2: #{decoder_forward.1} parent=1 // loop_pre_header
      _
    $region3: #{decoder_forward.1} parent=1 // loop_header
      %s15 = sphi 0, %s19
      %p16 = scmp.ge.s32.totalorder %s15, 6
      %s23 = sphi 0, %s23
      %s25 = sphi 0, %s23
      %s26 = sphi 0, %s25
      %s40 = sphi 0, %s26
      %s46 = sphi 0, %s48
      %s49 = sphi 0, %s46
      %s50 = sphi 0, %s49
      %s66 = sphi 0, %s50
      %s72 = sphi 0, %s74
      %s75 = sphi 0, %s72
      %s76 = sphi 0, %s75
      %s92 = sphi 0, %s76
      %s98 = sphi 0, %s100
      %s101 = sphi 0, %s98
      %s102 = sphi 0, %s101
      %s118 = sphi 0, %s102
    $region4: #{decoder_forward.1} parent=1 // loop_header_branch
      %18 = sbr.rel (%p16) target = $region8
    $region5: #{decoder_forward.1} parent=1 // loop_body
      %s20 = ssub.s32 %s15, 1
      %s21 = ssub.s32 %s15, 2
      %s22 = sadd.s32 %s15, 1
      %s24 = sadd.s32 %s23, 1
      %p27 = scmp.eq.s32.totalorder %s15, 3
      %p28 = scmp.ne.s32.totalorder %s23, %s25
      %p29 = scmp.eq.s32.totalorder %s15, 0
      %p30 = por %p28, %p29
      %p31 = scmp.ne.s32.totalorder %s23, %s25
      %p32 = scmp.eq.s32.totalorder %s20, 3
      %p33 = por %p31, %p32
      %p34 = scmp.ne.s32.totalorder %s25, %s26
      %p35 = scmp.eq.s32.totalorder %s20, 0
      %p36 = por %p34, %p35
      %p37 = scmp.ne.s32.totalorder %s25, %s26
      %p38 = scmp.eq.s32.totalorder %s21, 3
      %p39 = por %p37, %p38
      %p41 = scmp.ne.s32.totalorder %s26, %s40
      %p42 = scmp.eq.s32.totalorder %s21, 0
      %p43 = por %p41, %p42
      %s44 = ssub.s32 %s15, %s22
      %p45 = scmp.eq.s32.totalorder %s44, 0
      %s47 = sadd.s32 %s46, 1
      %s48 = scalar_select %p45, %s46, %s47
      %p51 = pneg %p45
      %p52 = scmp.eq.s32.totalorder %s15, 3
      %p53 = por %p51, %p52
      %p54 = scmp.ne.s32.totalorder %s46, %s49
      %p55 = scmp.eq.s32.totalorder %s15, 0
      %p56 = por %p54, %p55
      %p57 = scmp.ne.s32.totalorder %s46, %s49
      %p58 = scmp.eq.s32.totalorder %s20, 3
      %p59 = por %p57, %p58
      %p60 = scmp.ne.s32.totalorder %s49, %s50
      %p61 = scmp.eq.s32.totalorder %s20, 0
      %p62 = por %p60, %p61
      %p63 = scmp.ne.s32.totalorder %s49, %s50
      %p64 = scmp.eq.s32.totalorder %s21, 3
      %p65 = por %p63, %p64
      %p67 = scmp.ne.s32.totalorder %s50, %s66
      %p68 = scmp.eq.s32.totalorder %s21, 0
      %p69 = por %p67, %p68
      %s70 = ssub.s32 %s15, %s22
      %p71 = scmp.eq.s32.totalorder %s70, 0
      %s73 = sadd.s32 %s72, 1
      %s74 = scalar_select %p71, %s72, %s73
      %p77 = pneg %p71
      %p78 = scmp.eq.s32.totalorder %s15, 3
      %p79 = por %p77, %p78
      %p80 = scmp.ne.s32.totalorder %s72, %s75
      %p81 = scmp.eq.s32.totalorder %s15, 0
      %p82 = por %p80, %p81
      %p83 = scmp.ne.s32.totalorder %s72, %s75
      %p84 = scmp.eq.s32.totalorder %s20, 3
      %p85 = por %p83, %p84
      %p86 = scmp.ne.s32.totalorder %s75, %s76
      %p87 = scmp.eq.s32.totalorder %s20, 0
      %p88 = por %p86, %p87
      %p89 = scmp.ne.s32.totalorder %s75, %s76
      %p90 = scmp.eq.s32.totalorder %s21, 3
      %p91 = por %p89, %p90
      %p93 = scmp.ne.s32.totalorder %s76, %s92
      %p94 = scmp.eq.s32.totalorder %s21, 0
      %p95 = por %p93, %p94
      %s96 = ssub.s32 %s15, %s22
      %p97 = scmp.eq.s32.totalorder %s96, 0
      %s99 = sadd.s32 %s98, 1
      %s100 = scalar_select %p97, %s98, %s99
      %p103 = pneg %p97
      %p104 = scmp.eq.s32.totalorder %s15, 3
      %p105 = por %p103, %p104
      %p106 = scmp.ne.s32.totalorder %s98, %s101
      %p107 = scmp.eq.s32.totalorder %s15, 0
      %p108 = por %p106, %p107
      %p109 = scmp.ne.s32.totalorder %s98, %s101
      %p110 = scmp.eq.s32.totalorder %s20, 3
      %p111 = por %p109, %p110
      %p112 = scmp.ne.s32.totalorder %s101, %s102
      %p113 = scmp.eq.s32.totalorder %s20, 0
      %p114 = por %p112, %p113
      %p115 = scmp.ne.s32.totalorder %s101, %s102
      %p116 = scmp.eq.s32.totalorder %s21, 3
      %p117 = por %p115, %p116
      %p119 = scmp.ne.s32.totalorder %s102, %s118
      %p120 = scmp.eq.s32.totalorder %s21, 0
      %p121 = por %p119, %p120
      %p122 = scmp.le.s32.totalorder 1, %s15
      %p123 = scmp.lt.s32.totalorder %s15, 5
      %p124 = pnand %p122, %p123
      %p125 = pneg %p124
      // Predicated region
      $region9: #{decoder_forward.1} parent=5 // pred_check
        _
      $region10: #{decoder_forward.1} parent=5 // pred_check_branch
        %127 = sbr.rel (%p124) target = $region12
      $region11: #{decoder_forward.1} parent=5 // pred_region
        %s128 = ssub.s32 %s15, 1
        // Predicated region
        $region13: #{decoder_forward.1} parent=11 // pred_check
          %p129 = pneg %p36
        $region14: #{decoder_forward.1} parent=11 // pred_check_branch
          %131 = sbr.rel (%p129) target = $region16
        $region15: #{decoder_forward.1} parent=11 // pred_region
          _
        $region16: #{decoder_forward.1} parent=11 // pred_fallthru
          _
      $region12: #{decoder_forward.1} parent=5 // pred_fallthru
        _
      %p132 = scmp.lt.s32.totalorder %s15, 4
      // Predicated region
      $region17: #{decoder_forward.1} parent=5 // pred_check
        %p133 = pneg %p132
      $region18: #{decoder_forward.1} parent=5 // pred_check_branch
        %135 = sbr.rel (%p133) target = $region20
      $region19: #{decoder_forward.1} parent=5 // pred_region
        // Predicated region
        $region21: #{decoder_forward.1} parent=19 // pred_check
          %p136 = pneg %p56
        $region22: #{decoder_forward.1} parent=19 // pred_check_branch
          %138 = sbr.rel (%p136) target = $region24
        $region23: #{decoder_forward.1} parent=19 // pred_region
          %s139 = sand.u32 %s46, 1
          %s140 = scalar_lea.sflag [#allocation3], %s139
          %s141 = sand.u32 %s46, 1
          %s142 = smul.addr %s141, 6144
          %s143 = scalar_lea.vmem [#allocation2], %s142
          %s144 = smul.u32 12, %s15
          %s146 = ssub.s32 98304, 98304
          %147 = vsyncadd %s140, %s146
          %s148 = smul.addr %s144, 64
          %s149 = scalar_lea.hbm %s1, %s148
          %s150 = sshll.u32 %s143, 4
          %s151 = int_to_ptr.vmem [resolvable:$true] %s150
          %156 = dma.hbm_to_vmem [thread:$0]  %s149, 98304, %s151, %s140, 3072, 768, 48
        $region24: #{decoder_forward.1} parent=19 // pred_fallthru
          _
        // Predicated region
        $region25: #{decoder_forward.1} parent=19 // pred_check
          %p157 = pneg %p82
        $region26: #{decoder_forward.1} parent=19 // pred_check_branch
          %159 = sbr.rel (%p157) target = $region28
        $region27: #{decoder_forward.1} parent=19 // pred_region
          %s160 = smul.u32 12, %s15
          %p161 = scmp.lt.s32.totalorder %s160, 47
          %s162 = scalar_select %p161, %s160, 47
          %s163 = scalar_lea.vmem %s2, %s162
          %s164 = smul.u32 12, %s15
        $region28: #{decoder_forward.1} parent=19 // pred_fallthru
          _
      $region20: #{decoder_forward.1} parent=5 // pred_fallthru
        _
      %p165 = scmp.le.s32.totalorder 1, %s15
      %p166 = scmp.lt.s32.totalorder %s15, 5
      %p167 = pnand %p165, %p166
      %p168 = pneg %p167
      // Predicated region
      $region29: #{decoder_forward.1} parent=5 // pred_check
        _
      $region30: #{decoder_forward.1} parent=5 // pred_check_branch
        %170 = sbr.rel (%p167) target = $region32
      $region31: #{decoder_forward.1} parent=5 // pred_region
        %s171 = ssub.s32 %s15, 1
        %s172 = sand.u32 %s49, 1
        %s173 = scalar_lea.sflag [#allocation3], %s172
        %s174 = sand.u32 %s49, 1
        %s175 = smul.addr %s174, 6144
        %s176 = scalar_lea.vmem [#allocation2], %s175
        // Predicated region
        $region33: #{decoder_forward.1} parent=31 // pred_check
          %p177 = pneg %p62
        $region34: #{decoder_forward.1} parent=31 // pred_check_branch
          %179 = sbr.rel (%p177) target = $region36
        $region35: #{decoder_forward.1} parent=31 // pred_region
          %180 = dma.done %s173, 98304
        $region36: #{decoder_forward.1} parent=31 // pred_fallthru
          _
        %p181 = pneg %p36
        %p182 = pneg %p33
        %s183 = sand.u32 %s49, 1
        %s184 = scalar_lea.sflag [#allocation3], %s183
        %s185 = sand.u32 %s49, 1
        %s186 = smul.addr %s185, 6144
        %s187 = scalar_lea.vmem [#allocation2], %s186
        %p188 = pneg %p62
        %p189 = pneg %p59
        %s190 = smul.u32 12, %s20
        %p191 = scmp.lt.s32.totalorder %s190, 47
        %s192 = scalar_select %p191, %s190, 47
        %s193 = scalar_lea.vmem %s2, %s192
        %p194 = pneg %p88
        %p195 = pneg %p85
        %p196 = pneg %p114
        %p197 = pneg %p111
        %s198 = sand.u32 %s101, 1
        %s199 = scalar_lea.sflag [#allocation4], %s198
        %s200 = sand.u32 %s101, 1
        %s201 = smul.addr %s200, 24
        %s202 = scalar_lea.vmem [#allocation5], %s201
        %s203 = smul.u32 12, %s20
        %s204 = smul.u32 12, %s20
        %p205 = scmp.lt.s32.totalorder %s204, 47
        %s206 = scalar_select %p205, %s204, 47
        %s207 = scalar_lea.vmem %s2, %s206
        %s208 = smul.u32 12, %s20
        %s209 = smul.u32 12, %s20
        %v210 = vld [vmem:[%s0] sm:$0xff]
        %v211 = vld [vmem:[%s0 + $0x8] sm:$0xff]
        %v214 = vcombine.high %v210, %v210
        %v216 = vunpack.c.l.s4 1983009808
        %v217 = vunpack.c.0.s8 %v216
        %v218 = vlaneseq
        %v219 = vshrl.u32 %v218, 7
        %v220 = vsub.s32 %v217, %v219
        %v221 = vrot.slane %v210, %v220
        %v223 = vunpack.c.l.s4 1983009808
        %v224 = vunpack.c.0.s8 %v223
        %v225 = vlaneseq
        %v226 = vshrl.u32 %v225, 7
        %v227 = vsub.s32 %v224, %v226
        %v228 = vrot.slane %v214, %v227
        %v229 = vcombine.high %v221, %v221
        %v230 = vcombine.high %v228, %v228
        %v231 = vcombine.high %v211, %v211
        %v233 = vunpack.c.l.s4 1983009808
        %v234 = vunpack.c.0.s8 %v233
        %v235 = vlaneseq
        %v236 = vshrl.u32 %v235, 7
        %v237 = vsub.s32 %v234, %v236
        %v238 = vrot.slane %v211, %v237
        %v240 = vunpack.c.l.s4 1983009808
        %v241 = vunpack.c.0.s8 %v240
        %v242 = vlaneseq
        %v243 = vshrl.u32 %v242, 7
        %v244 = vsub.s32 %v241, %v243
        %v245 = vrot.slane %v231, %v244
        %v246 = vcombine.high %v238, %v238
        %v247 = vcombine.high %v245, %v245
        %v256 = vpack.c.bf16 %v221, %v221
        %v257 = vpack.c.bf16 %v229, %v229
        %v258 = vpack.c.bf16 %v228, %v228
        %v259 = vpack.c.bf16 %v230, %v230
        %v260 = vpack.c.bf16 %v238, %v238
        %v261 = vpack.c.bf16 %v246, %v246
        %v262 = vpack.c.bf16 %v245, %v245
        %v263 = vpack.c.bf16 %v247, %v247
        %v264 = vld [vmem:[%s176] sm:$0xff]
        %v265 = vld [vmem:[%s176 + $0x8] sm:$0xff]
        %v266 = vld [vmem:[%s176 + $0x10] sm:$0xff]
        %v267 = vld [vmem:[%s176 + $0x18] sm:$0xff]
        %v268 = vld [vmem:[%s176 + $0x20] sm:$0xff]
        %v269 = vld [vmem:[%s176 + $0x28] sm:$0xff]
        %v270 = vld [vmem:[%s176 + $0x30] sm:$0xff]
        %v271 = vld [vmem:[%s176 + $0x38] sm:$0xff]
        %v272 = vld [vmem:[%s176 + $0x40] sm:$0xff]
        %v273 = vld [vmem:[%s176 + $0x48] sm:$0xff]
        %v274 = vld [vmem:[%s176 + $0x50] sm:$0xff]
        %v275 = vld [vmem:[%s176 + $0x58] sm:$0xff]
        %v276 = vld [vmem:[%s176 + $0x60] sm:$0xff]
        %v277 = vld [vmem:[%s176 + $0x68] sm:$0xff]
        %v278 = vld [vmem:[%s176 + $0x70] sm:$0xff]
        %v279 = vld [vmem:[%s176 + $0x78] sm:$0xff]
        %v280 = vld [vmem:[%s176 + $0x80] sm:$0xff]
        %v281 = vld [vmem:[%s176 + $0x88] sm:$0xff]
        %v282 = vld [vmem:[%s176 + $0x90] sm:$0xff]
        %v283 = vld [vmem:[%s176 + $0x98] sm:$0xff]
        %v284 = vld [vmem:[%s176 + $0xa0] sm:$0xff]
        %v285 = vld [vmem:[%s176 + $0xa8] sm:$0xff]
        %v286 = vld [vmem:[%s176 + $0xb0] sm:$0xff]
        %v287 = vld [vmem:[%s176 + $0xb8] sm:$0xff]
        %v288 = vld [vmem:[%s176 + $0xc0] sm:$0xff]
        %v289 = vld [vmem:[%s176 + $0xc8] sm:$0xff]
        %v290 = vld [vmem:[%s176 + $0xd0] sm:$0xff]
        %v291 = vld [vmem:[%s176 + $0xd8] sm:$0xff]
        %v292 = vld [vmem:[%s176 + $0xe0] sm:$0xff]
        %v293 = vld [vmem:[%s176 + $0xe8] sm:$0xff]
        %v294 = vld [vmem:[%s176 + $0xf0] sm:$0xff]
        %v295 = vld [vmem:[%s176 + $0xf8] sm:$0xff]
        %v296 = vld [vmem:[%s176 + $0x100] sm:$0xff]
        %v297 = vld [vmem:[%s176 + $0x108] sm:$0xff]
        %v298 = vld [vmem:[%s176 + $0x110] sm:$0xff]
        %v299 = vld [vmem:[%s176 + $0x118] sm:$0xff]
        %v300 = vld [vmem:[%s176 + $0x120] sm:$0xff]
        %v301 = vld [vmem:[%s176 + $0x128] sm:$0xff]
        %v302 = vld [vmem:[%s176 + $0x130] sm:$0xff]
        %v303 = vld [vmem:[%s176 + $0x138] sm:$0xff]
        %v304 = vld [vmem:[%s176 + $0x140] sm:$0xff]
        %v305 = vld [vmem:[%s176 + $0x148] sm:$0xff]
        %v306 = vld [vmem:[%s176 + $0x150] sm:$0xff]
        %v307 = vld [vmem:[%s176 + $0x158] sm:$0xff]
        %v308 = vld [vmem:[%s176 + $0x160] sm:$0xff]
        %v309 = vld [vmem:[%s176 + $0x168] sm:$0xff]
        %v310 = vld [vmem:[%s176 + $0x170] sm:$0xff]
        %v311 = vld [vmem:[%s176 + $0x178] sm:$0xff]
        %v312 = vld [vmem:[%s176 + $0x180] sm:$0xff]
        %v313 = vld [vmem:[%s176 + $0x188] sm:$0xff]
        %v314 = vld [vmem:[%s176 + $0x190] sm:$0xff]
        %v315 = vld [vmem:[%s176 + $0x198] sm:$0xff]
        %v316 = vld [vmem:[%s176 + $0x1a0] sm:$0xff]
        %v317 = vld [vmem:[%s176 + $0x1a8] sm:$0xff]
        %v318 = vld [vmem:[%s176 + $0x1b0] sm:$0xff]
        %v319 = vld [vmem:[%s176 + $0x1b8] sm:$0xff]
        %v320 = vld [vmem:[%s176 + $0x1c0] sm:$0xff]
        %v321 = vld [vmem:[%s176 + $0x1c8] sm:$0xff]
        %v322 = vld [vmem:[%s176 + $0x1d0] sm:$0xff]
        %v323 = vld [vmem:[%s176 + $0x1d8] sm:$0xff]
        %v324 = vld [vmem:[%s176 + $0x1e0] sm:$0xff]
        %v325 = vld [vmem:[%s176 + $0x1e8] sm:$0xff]
        %v326 = vld [vmem:[%s176 + $0x1f0] sm:$0xff]
        %v327 = vld [vmem:[%s176 + $0x1f8] sm:$0xff]
        %v328 = vld [vmem:[%s176 + $0x200] sm:$0xff]
        %v329 = vld [vmem:[%s176 + $0x208] sm:$0xff]
        %v330 = vld [vmem:[%s176 + $0x210] sm:$0xff]
        %v331 = vld [vmem:[%s176 + $0x218] sm:$0xff]
        %v332 = vld [vmem:[%s176 + $0x220] sm:$0xff]
        %v333 = vld [vmem:[%s176 + $0x228] sm:$0xff]
        %v334 = vld [vmem:[%s176 + $0x230] sm:$0xff]
        %v335 = vld [vmem:[%s176 + $0x238] sm:$0xff]
        %v336 = vld [vmem:[%s176 + $0x240] sm:$0xff]
        %v337 = vld [vmem:[%s176 + $0x248] sm:$0xff]
        %v338 = vld [vmem:[%s176 + $0x250] sm:$0xff]
        %v339 = vld [vmem:[%s176 + $0x258] sm:$0xff]
        %v340 = vld [vmem:[%s176 + $0x260] sm:$0xff]
        %v341 = vld [vmem:[%s176 + $0x268] sm:$0xff]
        %v342 = vld [vmem:[%s176 + $0x270] sm:$0xff]
        %v343 = vld [vmem:[%s176 + $0x278] sm:$0xff]
        %v344 = vld [vmem:[%s176 + $0x280] sm:$0xff]
        %v345 = vld [vmem:[%s176 + $0x288] sm:$0xff]
        %v346 = vld [vmem:[%s176 + $0x290] sm:$0xff]
        %v347 = vld [vmem:[%s176 + $0x298] sm:$0xff]
        %v348 = vld [vmem:[%s176 + $0x2a0] sm:$0xff]
        %v349 = vld [vmem:[%s176 + $0x2a8] sm:$0xff]
        %v350 = vld [vmem:[%s176 + $0x2b0] sm:$0xff]
        %v351 = vld [vmem:[%s176 + $0x2b8] sm:$0xff]
        %v352 = vld [vmem:[%s176 + $0x2c0] sm:$0xff]
        %v353 = vld [vmem:[%s176 + $0x2c8] sm:$0xff]
        %v354 = vld [vmem:[%s176 + $0x2d0] sm:$0xff]
        %v355 = vld [vmem:[%s176 + $0x2d8] sm:$0xff]
        %v356 = vld [vmem:[%s176 + $0x2e0] sm:$0xff]
        %v357 = vld [vmem:[%s176 + $0x2e8] sm:$0xff]
        %v358 = vld [vmem:[%s176 + $0x2f0] sm:$0xff]
        %v359 = vld [vmem:[%s176 + $0x2f8] sm:$0xff]
        %v360 = vld [vmem:[%s176 + $0x300] sm:$0xff]
        %v361 = vld [vmem:[%s176 + $0x308] sm:$0xff]
        %v362 = vld [vmem:[%s176 + $0x310] sm:$0xff]
        %v363 = vld [vmem:[%s176 + $0x318] sm:$0xff]
        %v364 = vld [vmem:[%s176 + $0x320] sm:$0xff]
        %v365 = vld [vmem:[%s176 + $0x328] sm:$0xff]
        %v366 = vld [vmem:[%s176 + $0x330] sm:$0xff]
        %v367 = vld [vmem:[%s176 + $0x338] sm:$0xff]
        %v368 = vld [vmem:[%s176 + $0x340] sm:$0xff]
        %v369 = vld [vmem:[%s176 + $0x348] sm:$0xff]
        %v370 = vld [vmem:[%s176 + $0x350] sm:$0xff]
        %v371 = vld [vmem:[%s176 + $0x358] sm:$0xff]
        %v372 = vld [vmem:[%s176 + $0x360] sm:$0xff]
        %v373 = vld [vmem:[%s176 + $0x368] sm:$0xff]
        %v374 = vld [vmem:[%s176 + $0x370] sm:$0xff]
        %v375 = vld [vmem:[%s176 + $0x378] sm:$0xff]
        %v376 = vld [vmem:[%s176 + $0x380] sm:$0xff]
        %v377 = vld [vmem:[%s176 + $0x388] sm:$0xff]
        %v378 = vld [vmem:[%s176 + $0x390] sm:$0xff]
        %v379 = vld [vmem:[%s176 + $0x398] sm:$0xff]
        %v380 = vld [vmem:[%s176 + $0x3a0] sm:$0xff]
        %v381 = vld [vmem:[%s176 + $0x3a8] sm:$0xff]
        %v382 = vld [vmem:[%s176 + $0x3b0] sm:$0xff]
        %v383 = vld [vmem:[%s176 + $0x3b8] sm:$0xff]
        %v384 = vld [vmem:[%s176 + $0x3c0] sm:$0xff]
        %v385 = vld [vmem:[%s176 + $0x3c8] sm:$0xff]
        %v386 = vld [vmem:[%s176 + $0x3d0] sm:$0xff]
        %v387 = vld [vmem:[%s176 + $0x3d8] sm:$0xff]
        %v388 = vld [vmem:[%s176 + $0x3e0] sm:$0xff]
        %v389 = vld [vmem:[%s176 + $0x3e8] sm:$0xff]
        %v390 = vld [vmem:[%s176 + $0x3f0] sm:$0xff]
        %v391 = vld [vmem:[%s176 + $0x3f8] sm:$0xff]
        %v392 = vld [vmem:[%s176 + $0x400] sm:$0xff]
        %v393 = vld [vmem:[%s176 + $0x408] sm:$0xff]
        %v394 = vld [vmem:[%s176 + $0x410] sm:$0xff]
        %v395 = vld [vmem:[%s176 + $0x418] sm:$0xff]
        %v396 = vld [vmem:[%s176 + $0x420] sm:$0xff]
        %v397 = vld [vmem:[%s176 + $0x428] sm:$0xff]
        %v398 = vld [vmem:[%s176 + $0x430] sm:$0xff]
        %v399 = vld [vmem:[%s176 + $0x438] sm:$0xff]
        %v400 = vld [vmem:[%s176 + $0x440] sm:$0xff]
        %v401 = vld [vmem:[%s176 + $0x448] sm:$0xff]
        %v402 = vld [vmem:[%s176 + $0x450] sm:$0xff]
        %v403 = vld [vmem:[%s176 + $0x458] sm:$0xff]
        %v404 = vld [vmem:[%s176 + $0x460] sm:$0xff]
        %v405 = vld [vmem:[%s176 + $0x468] sm:$0xff]
        %v406 = vld [vmem:[%s176 + $0x470] sm:$0xff]
        %v407 = vld [vmem:[%s176 + $0x478] sm:$0xff]
        %v408 = vld [vmem:[%s176 + $0x480] sm:$0xff]
        %v409 = vld [vmem:[%s176 + $0x488] sm:$0xff]
        %v410 = vld [vmem:[%s176 + $0x490] sm:$0xff]
        %v411 = vld [vmem:[%s176 + $0x498] sm:$0xff]
        %v412 = vld [vmem:[%s176 + $0x4a0] sm:$0xff]
        %v413 = vld [vmem:[%s176 + $0x4a8] sm:$0xff]
        %v414 = vld [vmem:[%s176 + $0x4b0] sm:$0xff]
        %v415 = vld [vmem:[%s176 + $0x4b8] sm:$0xff]
        %v416 = vld [vmem:[%s176 + $0x4c0] sm:$0xff]
        %v417 = vld [vmem:[%s176 + $0x4c8] sm:$0xff]
        %v418 = vld [vmem:[%s176 + $0x4d0] sm:$0xff]
        %v419 = vld [vmem:[%s176 + $0x4d8] sm:$0xff]
        %v420 = vld [vmem:[%s176 + $0x4e0] sm:$0xff]
        %v421 = vld [vmem:[%s176 + $0x4e8] sm:$0xff]
        %v422 = vld [vmem:[%s176 + $0x4f0] sm:$0xff]
        %v423 = vld [vmem:[%s176 + $0x4f8] sm:$0xff]
        %v424 = vld [vmem:[%s176 + $0x500] sm:$0xff]
        %v425 = vld [vmem:[%s176 + $0x508] sm:$0xff]
        %v426 = vld [vmem:[%s176 + $0x510] sm:$0xff]
        %v427 = vld [vmem:[%s176 + $0x518] sm:$0xff]
        %v428 = vld [vmem:[%s176 + $0x520] sm:$0xff]
        %v429 = vld [vmem:[%s176 + $0x528] sm:$0xff]
        %v430 = vld [vmem:[%s176 + $0x530] sm:$0xff]
        %v431 = vld [vmem:[%s176 + $0x538] sm:$0xff]
        %v432 = vld [vmem:[%s176 + $0x540] sm:$0xff]
        %v433 = vld [vmem:[%s176 + $0x548] sm:$0xff]
        %v434 = vld [vmem:[%s176 + $0x550] sm:$0xff]
        %v435 = vld [vmem:[%s176 + $0x558] sm:$0xff]
        %v436 = vld [vmem:[%s176 + $0x560] sm:$0xff]
        %v437 = vld [vmem:[%s176 + $0x568] sm:$0xff]
        %v438 = vld [vmem:[%s176 + $0x570] sm:$0xff]
        %v439 = vld [vmem:[%s176 + $0x578] sm:$0xff]
        %v440 = vld [vmem:[%s176 + $0x580] sm:$0xff]
        %v441 = vld [vmem:[%s176 + $0x588] sm:$0xff]
        %v442 = vld [vmem:[%s176 + $0x590] sm:$0xff]
        %v443 = vld [vmem:[%s176 + $0x598] sm:$0xff]
        %v444 = vld [vmem:[%s176 + $0x5a0] sm:$0xff]
        %v445 = vld [vmem:[%s176 + $0x5a8] sm:$0xff]
        %v446 = vld [vmem:[%s176 + $0x5b0] sm:$0xff]
        %v447 = vld [vmem:[%s176 + $0x5b8] sm:$0xff]
        %v448 = vld [vmem:[%s176 + $0x5c0] sm:$0xff]
        %v449 = vld [vmem:[%s176 + $0x5c8] sm:$0xff]
        %v450 = vld [vmem:[%s176 + $0x5d0] sm:$0xff]
        %v451 = vld [vmem:[%s176 + $0x5d8] sm:$0xff]
        %v452 = vld [vmem:[%s176 + $0x5e0] sm:$0xff]
        %v453 = vld [vmem:[%s176 + $0x5e8] sm:$0xff]
        %v454 = vld [vmem:[%s176 + $0x5f0] sm:$0xff]
        %v455 = vld [vmem:[%s176 + $0x5f8] sm:$0xff]
        %v456 = vld [vmem:[%s176 + $0x600] sm:$0xff]
        %v457 = vld [vmem:[%s176 + $0x608] sm:$0xff]
        %v458 = vld [vmem:[%s176 + $0x610] sm:$0xff]
        %v459 = vld [vmem:[%s176 + $0x618] sm:$0xff]
        %v460 = vld [vmem:[%s176 + $0x620] sm:$0xff]
        %v461 = vld [vmem:[%s176 + $0x628] sm:$0xff]
        %v462 = vld [vmem:[%s176 + $0x630] sm:$0xff]
        %v463 = vld [vmem:[%s176 + $0x638] sm:$0xff]
        %v464 = vld [vmem:[%s176 + $0x640] sm:$0xff]
        %v465 = vld [vmem:[%s176 + $0x648] sm:$0xff]
        %v466 = vld [vmem:[%s176 + $0x650] sm:$0xff]
        %v467 = vld [vmem:[%s176 + $0x658] sm:$0xff]
        %v468 = vld [vmem:[%s176 + $0x660] sm:$0xff]
        %v469 = vld [vmem:[%s176 + $0x668] sm:$0xff]
        %v470 = vld [vmem:[%s176 + $0x670] sm:$0xff]
        %v471 = vld [vmem:[%s176 + $0x678] sm:$0xff]
        %v472 = vld [vmem:[%s176 + $0x680] sm:$0xff]
        %v473 = vld [vmem:[%s176 + $0x688] sm:$0xff]
        %v474 = vld [vmem:[%s176 + $0x690] sm:$0xff]
        %v475 = vld [vmem:[%s176 + $0x698] sm:$0xff]
        %v476 = vld [vmem:[%s176 + $0x6a0] sm:$0xff]
        %v477 = vld [vmem:[%s176 + $0x6a8] sm:$0xff]
        %v478 = vld [vmem:[%s176 + $0x6b0] sm:$0xff]
        %v479 = vld [vmem:[%s176 + $0x6b8] sm:$0xff]
        %v480 = vld [vmem:[%s176 + $0x6c0] sm:$0xff]
        %v481 = vld [vmem:[%s176 + $0x6c8] sm:$0xff]
        %v482 = vld [vmem:[%s176 + $0x6d0] sm:$0xff]
        %v483 = vld [vmem:[%s176 + $0x6d8] sm:$0xff]
        %v484 = vld [vmem:[%s176 + $0x6e0] sm:$0xff]
        %v485 = vld [vmem:[%s176 + $0x6e8] sm:$0xff]
        %v486 = vld [vmem:[%s176 + $0x6f0] sm:$0xff]
        %v487 = vld [vmem:[%s176 + $0x6f8] sm:$0xff]
        %v488 = vld [vmem:[%s176 + $0x700] sm:$0xff]
        %v489 = vld [vmem:[%s176 + $0x708] sm:$0xff]
        %v490 = vld [vmem:[%s176 + $0x710] sm:$0xff]
        %v491 = vld [vmem:[%s176 + $0x718] sm:$0xff]
        %v492 = vld [vmem:[%s176 + $0x720] sm:$0xff]
        %v493 = vld [vmem:[%s176 + $0x728] sm:$0xff]
        %v494 = vld [vmem:[%s176 + $0x730] sm:$0xff]
        %v495 = vld [vmem:[%s176 + $0x738] sm:$0xff]
        %v496 = vld [vmem:[%s176 + $0x740] sm:$0xff]
        %v497 = vld [vmem:[%s176 + $0x748] sm:$0xff]
        %v498 = vld [vmem:[%s176 + $0x750] sm:$0xff]
        %v499 = vld [vmem:[%s176 + $0x758] sm:$0xff]
        %v500 = vld [vmem:[%s176 + $0x760] sm:$0xff]
        %v501 = vld [vmem:[%s176 + $0x768] sm:$0xff]
        %v502 = vld [vmem:[%s176 + $0x770] sm:$0xff]
        %v503 = vld [vmem:[%s176 + $0x778] sm:$0xff]
        %v504 = vld [vmem:[%s176 + $0x780] sm:$0xff]
        %v505 = vld [vmem:[%s176 + $0x788] sm:$0xff]
        %v506 = vld [vmem:[%s176 + $0x790] sm:$0xff]
        %v507 = vld [vmem:[%s176 + $0x798] sm:$0xff]
        %v508 = vld [vmem:[%s176 + $0x7a0] sm:$0xff]
        %v509 = vld [vmem:[%s176 + $0x7a8] sm:$0xff]
        %v510 = vld [vmem:[%s176 + $0x7b0] sm:$0xff]
        %v511 = vld [vmem:[%s176 + $0x7b8] sm:$0xff]
        %v512 = vld [vmem:[%s176 + $0x7c0] sm:$0xff]
        %v513 = vld [vmem:[%s176 + $0x7c8] sm:$0xff]
        %v514 = vld [vmem:[%s176 + $0x7d0] sm:$0xff]
        %v515 = vld [vmem:[%s176 + $0x7d8] sm:$0xff]
        %v516 = vld [vmem:[%s176 + $0x7e0] sm:$0xff]
        %v517 = vld [vmem:[%s176 + $0x7e8] sm:$0xff]
        %v518 = vld [vmem:[%s176 + $0x7f0] sm:$0xff]
        %v519 = vld [vmem:[%s176 + $0x7f8] sm:$0xff]
        %v520 = vld [vmem:[%s176 + $0x800] sm:$0xff]
        %v521 = vld [vmem:[%s176 + $0x808] sm:$0xff]
        %v522 = vld [vmem:[%s176 + $0x810] sm:$0xff]
        %v523 = vld [vmem:[%s176 + $0x818] sm:$0xff]
        %v524 = vld [vmem:[%s176 + $0x820] sm:$0xff]
        %v525 = vld [vmem:[%s176 + $0x828] sm:$0xff]
        %v526 = vld [vmem:[%s176 + $0x830] sm:$0xff]
        %v527 = vld [vmem:[%s176 + $0x838] sm:$0xff]
        %v528 = vld [vmem:[%s176 + $0x840] sm:$0xff]
        %v529 = vld [vmem:[%s176 + $0x848] sm:$0xff]
        %v530 = vld [vmem:[%s176 + $0x850] sm:$0xff]
        %v531 = vld [vmem:[%s176 + $0x858] sm:$0xff]
        %v532 = vld [vmem:[%s176 + $0x860] sm:$0xff]
        %v533 = vld [vmem:[%s176 + $0x868] sm:$0xff]
        %v534 = vld [vmem:[%s176 + $0x870] sm:$0xff]
        %v535 = vld [vmem:[%s176 + $0x878] sm:$0xff]
        %v536 = vld [vmem:[%s176 + $0x880] sm:$0xff]
        %v537 = vld [vmem:[%s176 + $0x888] sm:$0xff]
        %v538 = vld [vmem:[%s176 + $0x890] sm:$0xff]
        %v539 = vld [vmem:[%s176 + $0x898] sm:$0xff]
        %v540 = vld [vmem:[%s176 + $0x8a0] sm:$0xff]
        %v541 = vld [vmem:[%s176 + $0x8a8] sm:$0xff]
        %v542 = vld [vmem:[%s176 + $0x8b0] sm:$0xff]
        %v543 = vld [vmem:[%s176 + $0x8b8] sm:$0xff]
        %v544 = vld [vmem:[%s176 + $0x8c0] sm:$0xff]
        %v545 = vld [vmem:[%s176 + $0x8c8] sm:$0xff]
        %v546 = vld [vmem:[%s176 + $0x8d0] sm:$0xff]
        %v547 = vld [vmem:[%s176 + $0x8d8] sm:$0xff]
        %v548 = vld [vmem:[%s176 + $0x8e0] sm:$0xff]
        %v549 = vld [vmem:[%s176 + $0x8e8] sm:$0xff]
        %v550 = vld [vmem:[%s176 + $0x8f0] sm:$0xff]
        %v551 = vld [vmem:[%s176 + $0x8f8] sm:$0xff]
        %v552 = vld [vmem:[%s176 + $0x900] sm:$0xff]
        %v553 = vld [vmem:[%s176 + $0x908] sm:$0xff]
        %v554 = vld [vmem:[%s176 + $0x910] sm:$0xff]
        %v555 = vld [vmem:[%s176 + $0x918] sm:$0xff]
        %v556 = vld [vmem:[%s176 + $0x920] sm:$0xff]
        %v557 = vld [vmem:[%s176 + $0x928] sm:$0xff]
        %v558 = vld [vmem:[%s176 + $0x930] sm:$0xff]
        %v559 = vld [vmem:[%s176 + $0x938] sm:$0xff]
        %v560 = vld [vmem:[%s176 + $0x940] sm:$0xff]
        %v561 = vld [vmem:[%s176 + $0x948] sm:$0xff]
        %v562 = vld [vmem:[%s176 + $0x950] sm:$0xff]
        %v563 = vld [vmem:[%s176 + $0x958] sm:$0xff]
        %v564 = vld [vmem:[%s176 + $0x960] sm:$0xff]
        %v565 = vld [vmem:[%s176 + $0x968] sm:$0xff]
        %v566 = vld [vmem:[%s176 + $0x970] sm:$0xff]
        %v567 = vld [vmem:[%s176 + $0x978] sm:$0xff]
        %v568 = vld [vmem:[%s176 + $0x980] sm:$0xff]
        %v569 = vld [vmem:[%s176 + $0x988] sm:$0xff]
        %v570 = vld [vmem:[%s176 + $0x990] sm:$0xff]
        %v571 = vld [vmem:[%s176 + $0x998] sm:$0xff]
        %v572 = vld [vmem:[%s176 + $0x9a0] sm:$0xff]
        %v573 = vld [vmem:[%s176 + $0x9a8] sm:$0xff]
        %v574 = vld [vmem:[%s176 + $0x9b0] sm:$0xff]
        %v575 = vld [vmem:[%s176 + $0x9b8] sm:$0xff]
        %v576 = vld [vmem:[%s176 + $0x9c0] sm:$0xff]
        %v577 = vld [vmem:[%s176 + $0x9c8] sm:$0xff]
        %v578 = vld [vmem:[%s176 + $0x9d0] sm:$0xff]
        %v579 = vld [vmem:[%s176 + $0x9d8] sm:$0xff]
        %v580 = vld [vmem:[%s176 + $0x9e0] sm:$0xff]
        %v581 = vld [vmem:[%s176 + $0x9e8] sm:$0xff]
        %v582 = vld [vmem:[%s176 + $0x9f0] sm:$0xff]
        %v583 = vld [vmem:[%s176 + $0x9f8] sm:$0xff]
        %v584 = vld [vmem:[%s176 + $0xa00] sm:$0xff]
        %v585 = vld [vmem:[%s176 + $0xa08] sm:$0xff]
        %v586 = vld [vmem:[%s176 + $0xa10] sm:$0xff]
        %v587 = vld [vmem:[%s176 + $0xa18] sm:$0xff]
        %v588 = vld [vmem:[%s176 + $0xa20] sm:$0xff]
        %v589 = vld [vmem:[%s176 + $0xa28] sm:$0xff]
        %v590 = vld [vmem:[%s176 + $0xa30] sm:$0xff]
        %v591 = vld [vmem:[%s176 + $0xa38] sm:$0xff]
        %v592 = vld [vmem:[%s176 + $0xa40] sm:$0xff]
        %v593 = vld [vmem:[%s176 + $0xa48] sm:$0xff]
        %v594 = vld [vmem:[%s176 + $0xa50] sm:$0xff]
        %v595 = vld [vmem:[%s176 + $0xa58] sm:$0xff]
        %v596 = vld [vmem:[%s176 + $0xa60] sm:$0xff]
        %v597 = vld [vmem:[%s176 + $0xa68] sm:$0xff]
        %v598 = vld [vmem:[%s176 + $0xa70] sm:$0xff]
        %v599 = vld [vmem:[%s176 + $0xa78] sm:$0xff]
        %v600 = vld [vmem:[%s176 + $0xa80] sm:$0xff]
        %v601 = vld [vmem:[%s176 + $0xa88] sm:$0xff]
        %v602 = vld [vmem:[%s176 + $0xa90] sm:$0xff]
        %v603 = vld [vmem:[%s176 + $0xa98] sm:$0xff]
        %v604 = vld [vmem:[%s176 + $0xaa0] sm:$0xff]
        %v605 = vld [vmem:[%s176 + $0xaa8] sm:$0xff]
        %v606 = vld [vmem:[%s176 + $0xab0] sm:$0xff]
        %v607 = vld [vmem:[%s176 + $0xab8] sm:$0xff]
        %v608 = vld [vmem:[%s176 + $0xac0] sm:$0xff]
        %v609 = vld [vmem:[%s176 + $0xac8] sm:$0xff]
        %v610 = vld [vmem:[%s176 + $0xad0] sm:$0xff]
        %v611 = vld [vmem:[%s176 + $0xad8] sm:$0xff]
        %v612 = vld [vmem:[%s176 + $0xae0] sm:$0xff]
        %v613 = vld [vmem:[%s176 + $0xae8] sm:$0xff]
        %v614 = vld [vmem:[%s176 + $0xaf0] sm:$0xff]
        %v615 = vld [vmem:[%s176 + $0xaf8] sm:$0xff]
        %v616 = vld [vmem:[%s176 + $0xb00] sm:$0xff]
        %v617 = vld [vmem:[%s176 + $0xb08] sm:$0xff]
        %v618 = vld [vmem:[%s176 + $0xb10] sm:$0xff]
        %v619 = vld [vmem:[%s176 + $0xb18] sm:$0xff]
        %v620 = vld [vmem:[%s176 + $0xb20] sm:$0xff]
        %v621 = vld [vmem:[%s176 + $0xb28] sm:$0xff]
        %v622 = vld [vmem:[%s176 + $0xb30] sm:$0xff]
        %v623 = vld [vmem:[%s176 + $0xb38] sm:$0xff]
        %v624 = vld [vmem:[%s176 + $0xb40] sm:$0xff]
        %v625 = vld [vmem:[%s176 + $0xb48] sm:$0xff]
        %v626 = vld [vmem:[%s176 + $0xb50] sm:$0xff]
        %v627 = vld [vmem:[%s176 + $0xb58] sm:$0xff]
        %v628 = vld [vmem:[%s176 + $0xb60] sm:$0xff]
        %v629 = vld [vmem:[%s176 + $0xb68] sm:$0xff]
        %v630 = vld [vmem:[%s176 + $0xb70] sm:$0xff]
        %v631 = vld [vmem:[%s176 + $0xb78] sm:$0xff]
        %v632 = vld [vmem:[%s176 + $0xb80] sm:$0xff]
        %v633 = vld [vmem:[%s176 + $0xb88] sm:$0xff]
        %v634 = vld [vmem:[%s176 + $0xb90] sm:$0xff]
        %v635 = vld [vmem:[%s176 + $0xb98] sm:$0xff]
        %v636 = vld [vmem:[%s176 + $0xba0] sm:$0xff]
        %v637 = vld [vmem:[%s176 + $0xba8] sm:$0xff]
        %v638 = vld [vmem:[%s176 + $0xbb0] sm:$0xff]
        %v639 = vld [vmem:[%s176 + $0xbb8] sm:$0xff]
        %v640 = vld [vmem:[%s176 + $0xbc0] sm:$0xff]
        %v641 = vld [vmem:[%s176 + $0xbc8] sm:$0xff]
        %v642 = vld [vmem:[%s176 + $0xbd0] sm:$0xff]
        %v643 = vld [vmem:[%s176 + $0xbd8] sm:$0xff]
        %v644 = vld [vmem:[%s176 + $0xbe0] sm:$0xff]
        %v645 = vld [vmem:[%s176 + $0xbe8] sm:$0xff]
        %v646 = vld [vmem:[%s176 + $0xbf0] sm:$0xff]
        %v647 = vld [vmem:[%s176 + $0xbf8] sm:$0xff]
        %v648 = vld [vmem:[%s176 + $0xc00] sm:$0xff]
        %v649 = vld [vmem:[%s176 + $0xc08] sm:$0xff]
        %v650 = vld [vmem:[%s176 + $0xc10] sm:$0xff]
        %v651 = vld [vmem:[%s176 + $0xc18] sm:$0xff]
        %v652 = vld [vmem:[%s176 + $0xc20] sm:$0xff]
        %v653 = vld [vmem:[%s176 + $0xc28] sm:$0xff]
        %v654 = vld [vmem:[%s176 + $0xc30] sm:$0xff]
        %v655 = vld [vmem:[%s176 + $0xc38] sm:$0xff]
        %v656 = vld [vmem:[%s176 + $0xc40] sm:$0xff]
        %v657 = vld [vmem:[%s176 + $0xc48] sm:$0xff]
        %v658 = vld [vmem:[%s176 + $0xc50] sm:$0xff]
        %v659 = vld [vmem:[%s176 + $0xc58] sm:$0xff]
        %v660 = vld [vmem:[%s176 + $0xc60] sm:$0xff]
        %v661 = vld [vmem:[%s176 + $0xc68] sm:$0xff]
        %v662 = vld [vmem:[%s176 + $0xc70] sm:$0xff]
        %v663 = vld [vmem:[%s176 + $0xc78] sm:$0xff]
        %v664 = vld [vmem:[%s176 + $0xc80] sm:$0xff]
        %v665 = vld [vmem:[%s176 + $0xc88] sm:$0xff]
        %v666 = vld [vmem:[%s176 + $0xc90] sm:$0xff]
        %v667 = vld [vmem:[%s176 + $0xc98] sm:$0xff]
        %v668 = vld [vmem:[%s176 + $0xca0] sm:$0xff]
        %v669 = vld [vmem:[%s176 + $0xca8] sm:$0xff]
        %v670 = vld [vmem:[%s176 + $0xcb0] sm:$0xff]
        %v671 = vld [vmem:[%s176 + $0xcb8] sm:$0xff]
        %v672 = vld [vmem:[%s176 + $0xcc0] sm:$0xff]
        %v673 = vld [vmem:[%s176 + $0xcc8] sm:$0xff]
        %v674 = vld [vmem:[%s176 + $0xcd0] sm:$0xff]
        %v675 = vld [vmem:[%s176 + $0xcd8] sm:$0xff]
        %v676 = vld [vmem:[%s176 + $0xce0] sm:$0xff]
        %v677 = vld [vmem:[%s176 + $0xce8] sm:$0xff]
        %v678 = vld [vmem:[%s176 + $0xcf0] sm:$0xff]
        %v679 = vld [vmem:[%s176 + $0xcf8] sm:$0xff]
        %v680 = vld [vmem:[%s176 + $0xd00] sm:$0xff]
        %v681 = vld [vmem:[%s176 + $0xd08] sm:$0xff]
        %v682 = vld [vmem:[%s176 + $0xd10] sm:$0xff]
        %v683 = vld [vmem:[%s176 + $0xd18] sm:$0xff]
        %v684 = vld [vmem:[%s176 + $0xd20] sm:$0xff]
        %v685 = vld [vmem:[%s176 + $0xd28] sm:$0xff]
        %v686 = vld [vmem:[%s176 + $0xd30] sm:$0xff]
        %v687 = vld [vmem:[%s176 + $0xd38] sm:$0xff]
        %v688 = vld [vmem:[%s176 + $0xd40] sm:$0xff]
        %v689 = vld [vmem:[%s176 + $0xd48] sm:$0xff]
        %v690 = vld [vmem:[%s176 + $0xd50] sm:$0xff]
        %v691 = vld [vmem:[%s176 + $0xd58] sm:$0xff]
        %v692 = vld [vmem:[%s176 + $0xd60] sm:$0xff]
        %v693 = vld [vmem:[%s176 + $0xd68] sm:$0xff]
        %v694 = vld [vmem:[%s176 + $0xd70] sm:$0xff]
        %v695 = vld [vmem:[%s176 + $0xd78] sm:$0xff]
        %v696 = vld [vmem:[%s176 + $0xd80] sm:$0xff]
        %v697 = vld [vmem:[%s176 + $0xd88] sm:$0xff]
        %v698 = vld [vmem:[%s176 + $0xd90] sm:$0xff]
        %v699 = vld [vmem:[%s176 + $0xd98] sm:$0xff]
        %v700 = vld [vmem:[%s176 + $0xda0] sm:$0xff]
        %v701 = vld [vmem:[%s176 + $0xda8] sm:$0xff]
        %v702 = vld [vmem:[%s176 + $0xdb0] sm:$0xff]
        %v703 = vld [vmem:[%s176 + $0xdb8] sm:$0xff]
        %v704 = vld [vmem:[%s176 + $0xdc0] sm:$0xff]
        %v705 = vld [vmem:[%s176 + $0xdc8] sm:$0xff]
        %v706 = vld [vmem:[%s176 + $0xdd0] sm:$0xff]
        %v707 = vld [vmem:[%s176 + $0xdd8] sm:$0xff]
        %v708 = vld [vmem:[%s176 + $0xde0] sm:$0xff]
        %v709 = vld [vmem:[%s176 + $0xde8] sm:$0xff]
        %v710 = vld [vmem:[%s176 + $0xdf0] sm:$0xff]
        %v711 = vld [vmem:[%s176 + $0xdf8] sm:$0xff]
        %v712 = vld [vmem:[%s176 + $0xe00] sm:$0xff]
        %v713 = vld [vmem:[%s176 + $0xe08] sm:$0xff]
        %v714 = vld [vmem:[%s176 + $0xe10] sm:$0xff]
        %v715 = vld [vmem:[%s176 + $0xe18] sm:$0xff]
        %v716 = vld [vmem:[%s176 + $0xe20] sm:$0xff]
        %v717 = vld [vmem:[%s176 + $0xe28] sm:$0xff]
        %v718 = vld [vmem:[%s176 + $0xe30] sm:$0xff]
        %v719 = vld [vmem:[%s176 + $0xe38] sm:$0xff]
        %v720 = vld [vmem:[%s176 + $0xe40] sm:$0xff]
        %v721 = vld [vmem:[%s176 + $0xe48] sm:$0xff]
        %v722 = vld [vmem:[%s176 + $0xe50] sm:$0xff]
        %v723 = vld [vmem:[%s176 + $0xe58] sm:$0xff]
        %v724 = vld [vmem:[%s176 + $0xe60] sm:$0xff]
        %v725 = vld [vmem:[%s176 + $0xe68] sm:$0xff]
        %v726 = vld [vmem:[%s176 + $0xe70] sm:$0xff]
        %v727 = vld [vmem:[%s176 + $0xe78] sm:$0xff]
        %v728 = vld [vmem:[%s176 + $0xe80] sm:$0xff]
        %v729 = vld [vmem:[%s176 + $0xe88] sm:$0xff]
        %v730 = vld [vmem:[%s176 + $0xe90] sm:$0xff]
        %v731 = vld [vmem:[%s176 + $0xe98] sm:$0xff]
        %v732 = vld [vmem:[%s176 + $0xea0] sm:$0xff]
        %v733 = vld [vmem:[%s176 + $0xea8] sm:$0xff]
        %v734 = vld [vmem:[%s176 + $0xeb0] sm:$0xff]
        %v735 = vld [vmem:[%s176 + $0xeb8] sm:$0xff]
        %v736 = vld [vmem:[%s176 + $0xec0] sm:$0xff]
        %v737 = vld [vmem:[%s176 + $0xec8] sm:$0xff]
        %v738 = vld [vmem:[%s176 + $0xed0] sm:$0xff]
        %v739 = vld [vmem:[%s176 + $0xed8] sm:$0xff]
        %v740 = vld [vmem:[%s176 + $0xee0] sm:$0xff]
        %v741 = vld [vmem:[%s176 + $0xee8] sm:$0xff]
        %v742 = vld [vmem:[%s176 + $0xef0] sm:$0xff]
        %v743 = vld [vmem:[%s176 + $0xef8] sm:$0xff]
        %v744 = vld [vmem:[%s176 + $0xf00] sm:$0xff]
        %v745 = vld [vmem:[%s176 + $0xf08] sm:$0xff]
        %v746 = vld [vmem:[%s176 + $0xf10] sm:$0xff]
        %v747 = vld [vmem:[%s176 + $0xf18] sm:$0xff]
        %v748 = vld [vmem:[%s176 + $0xf20] sm:$0xff]
        %v749 = vld [vmem:[%s176 + $0xf28] sm:$0xff]
        %v750 = vld [vmem:[%s176 + $0xf30] sm:$0xff]
        %v751 = vld [vmem:[%s176 + $0xf38] sm:$0xff]
        %v752 = vld [vmem:[%s176 + $0xf40] sm:$0xff]
        %v753 = vld [vmem:[%s176 + $0xf48] sm:$0xff]
        %v754 = vld [vmem:[%s176 + $0xf50] sm:$0xff]
        %v755 = vld [vmem:[%s176 + $0xf58] sm:$0xff]
        %v756 = vld [vmem:[%s176 + $0xf60] sm:$0xff]
        %v757 = vld [vmem:[%s176 + $0xf68] sm:$0xff]
        %v758 = vld [vmem:[%s176 + $0xf70] sm:$0xff]
        %v759 = vld [vmem:[%s176 + $0xf78] sm:$0xff]
        %v760 = vld [vmem:[%s176 + $0xf80] sm:$0xff]
        %v761 = vld [vmem:[%s176 + $0xf88] sm:$0xff]
        %v762 = vld [vmem:[%s176 + $0xf90] sm:$0xff]
        %v763 = vld [vmem:[%s176 + $0xf98] sm:$0xff]
        %v764 = vld [vmem:[%s176 + $0xfa0] sm:$0xff]
        %v765 = vld [vmem:[%s176 + $0xfa8] sm:$0xff]
        %v766 = vld [vmem:[%s176 + $0xfb0] sm:$0xff]
        %v767 = vld [vmem:[%s176 + $0xfb8] sm:$0xff]
        %v768 = vld [vmem:[%s176 + $0xfc0] sm:$0xff]
        %v769 = vld [vmem:[%s176 + $0xfc8] sm:$0xff]
        %v770 = vld [vmem:[%s176 + $0xfd0] sm:$0xff]
        %v771 = vld [vmem:[%s176 + $0xfd8] sm:$0xff]
        %v772 = vld [vmem:[%s176 + $0xfe0] sm:$0xff]
        %v773 = vld [vmem:[%s176 + $0xfe8] sm:$0xff]
        %v774 = vld [vmem:[%s176 + $0xff0] sm:$0xff]
        %v775 = vld [vmem:[%s176 + $0xff8] sm:$0xff]
        %v776 = vld [vmem:[%s176 + $0x1000] sm:$0xff]
        %v777 = vld [vmem:[%s176 + $0x1008] sm:$0xff]
        %v778 = vld [vmem:[%s176 + $0x1010] sm:$0xff]
        %v779 = vld [vmem:[%s176 + $0x1018] sm:$0xff]
        %v780 = vld [vmem:[%s176 + $0x1020] sm:$0xff]
        %v781 = vld [vmem:[%s176 + $0x1028] sm:$0xff]
        %v782 = vld [vmem:[%s176 + $0x1030] sm:$0xff]
        %v783 = vld [vmem:[%s176 + $0x1038] sm:$0xff]
        %v784 = vld [vmem:[%s176 + $0x1040] sm:$0xff]
        %v785 = vld [vmem:[%s176 + $0x1048] sm:$0xff]
        %v786 = vld [vmem:[%s176 + $0x1050] sm:$0xff]
        %v787 = vld [vmem:[%s176 + $0x1058] sm:$0xff]
        %v788 = vld [vmem:[%s176 + $0x1060] sm:$0xff]
        %v789 = vld [vmem:[%s176 + $0x1068] sm:$0xff]
        %v790 = vld [vmem:[%s176 + $0x1070] sm:$0xff]
        %v791 = vld [vmem:[%s176 + $0x1078] sm:$0xff]
        %v792 = vld [vmem:[%s176 + $0x1080] sm:$0xff]
        %v793 = vld [vmem:[%s176 + $0x1088] sm:$0xff]
        %v794 = vld [vmem:[%s176 + $0x1090] sm:$0xff]
        %v795 = vld [vmem:[%s176 + $0x1098] sm:$0xff]
        %v796 = vld [vmem:[%s176 + $0x10a0] sm:$0xff]
        %v797 = vld [vmem:[%s176 + $0x10a8] sm:$0xff]
        %v798 = vld [vmem:[%s176 + $0x10b0] sm:$0xff]
        %v799 = vld [vmem:[%s176 + $0x10b8] sm:$0xff]
        %v800 = vld [vmem:[%s176 + $0x10c0] sm:$0xff]
        %v801 = vld [vmem:[%s176 + $0x10c8] sm:$0xff]
        %v802 = vld [vmem:[%s176 + $0x10d0] sm:$0xff]
        %v803 = vld [vmem:[%s176 + $0x10d8] sm:$0xff]
        %v804 = vld [vmem:[%s176 + $0x10e0] sm:$0xff]
        %v805 = vld [vmem:[%s176 + $0x10e8] sm:$0xff]
        %v806 = vld [vmem:[%s176 + $0x10f0] sm:$0xff]
        %v807 = vld [vmem:[%s176 + $0x10f8] sm:$0xff]
        %v808 = vld [vmem:[%s176 + $0x1100] sm:$0xff]
        %v809 = vld [vmem:[%s176 + $0x1108] sm:$0xff]
        %v810 = vld [vmem:[%s176 + $0x1110] sm:$0xff]
        %v811 = vld [vmem:[%s176 + $0x1118] sm:$0xff]
        %v812 = vld [vmem:[%s176 + $0x1120] sm:$0xff]
        %v813 = vld [vmem:[%s176 + $0x1128] sm:$0xff]
        %v814 = vld [vmem:[%s176 + $0x1130] sm:$0xff]
        %v815 = vld [vmem:[%s176 + $0x1138] sm:$0xff]
        %v816 = vld [vmem:[%s176 + $0x1140] sm:$0xff]
        %v817 = vld [vmem:[%s176 + $0x1148] sm:$0xff]
        %v818 = vld [vmem:[%s176 + $0x1150] sm:$0xff]
        %v819 = vld [vmem:[%s176 + $0x1158] sm:$0xff]
        %v820 = vld [vmem:[%s176 + $0x1160] sm:$0xff]
        %v821 = vld [vmem:[%s176 + $0x1168] sm:$0xff]
        %v822 = vld [vmem:[%s176 + $0x1170] sm:$0xff]
        %v823 = vld [vmem:[%s176 + $0x1178] sm:$0xff]
        %v824 = vld [vmem:[%s176 + $0x1180] sm:$0xff]
        %v825 = vld [vmem:[%s176 + $0x1188] sm:$0xff]
        %v826 = vld [vmem:[%s176 + $0x1190] sm:$0xff]
        %v827 = vld [vmem:[%s176 + $0x1198] sm:$0xff]
        %v828 = vld [vmem:[%s176 + $0x11a0] sm:$0xff]
        %v829 = vld [vmem:[%s176 + $0x11a8] sm:$0xff]
        %v830 = vld [vmem:[%s176 + $0x11b0] sm:$0xff]
        %v831 = vld [vmem:[%s176 + $0x11b8] sm:$0xff]
        %v832 = vld [vmem:[%s176 + $0x11c0] sm:$0xff]
        %v833 = vld [vmem:[%s176 + $0x11c8] sm:$0xff]
        %v834 = vld [vmem:[%s176 + $0x11d0] sm:$0xff]
        %v835 = vld [vmem:[%s176 + $0x11d8] sm:$0xff]
        %v836 = vld [vmem:[%s176 + $0x11e0] sm:$0xff]
        %v837 = vld [vmem:[%s176 + $0x11e8] sm:$0xff]
        %v838 = vld [vmem:[%s176 + $0x11f0] sm:$0xff]
        %v839 = vld [vmem:[%s176 + $0x11f8] sm:$0xff]
        %v840 = vld [vmem:[%s176 + $0x1200] sm:$0xff]
        %v841 = vld [vmem:[%s176 + $0x1208] sm:$0xff]
        %v842 = vld [vmem:[%s176 + $0x1210] sm:$0xff]
        %v843 = vld [vmem:[%s176 + $0x1218] sm:$0xff]
        %v844 = vld [vmem:[%s176 + $0x1220] sm:$0xff]
        %v845 = vld [vmem:[%s176 + $0x1228] sm:$0xff]
        %v846 = vld [vmem:[%s176 + $0x1230] sm:$0xff]
        %v847 = vld [vmem:[%s176 + $0x1238] sm:$0xff]
        %v848 = vld [vmem:[%s176 + $0x1240] sm:$0xff]
        %v849 = vld [vmem:[%s176 + $0x1248] sm:$0xff]
        %v850 = vld [vmem:[%s176 + $0x1250] sm:$0xff]
        %v851 = vld [vmem:[%s176 + $0x1258] sm:$0xff]
        %v852 = vld [vmem:[%s176 + $0x1260] sm:$0xff]
        %v853 = vld [vmem:[%s176 + $0x1268] sm:$0xff]
        %v854 = vld [vmem:[%s176 + $0x1270] sm:$0xff]
        %v855 = vld [vmem:[%s176 + $0x1278] sm:$0xff]
        %v856 = vld [vmem:[%s176 + $0x1280] sm:$0xff]
        %v857 = vld [vmem:[%s176 + $0x1288] sm:$0xff]
        %v858 = vld [vmem:[%s176 + $0x1290] sm:$0xff]
        %v859 = vld [vmem:[%s176 + $0x1298] sm:$0xff]
        %v860 = vld [vmem:[%s176 + $0x12a0] sm:$0xff]
        %v861 = vld [vmem:[%s176 + $0x12a8] sm:$0xff]
        %v862 = vld [vmem:[%s176 + $0x12b0] sm:$0xff]
        %v863 = vld [vmem:[%s176 + $0x12b8] sm:$0xff]
        %v864 = vld [vmem:[%s176 + $0x12c0] sm:$0xff]
        %v865 = vld [vmem:[%s176 + $0x12c8] sm:$0xff]
        %v866 = vld [vmem:[%s176 + $0x12d0] sm:$0xff]
        %v867 = vld [vmem:[%s176 + $0x12d8] sm:$0xff]
        %v868 = vld [vmem:[%s176 + $0x12e0] sm:$0xff]
        %v869 = vld [vmem:[%s176 + $0x12e8] sm:$0xff]
        %v870 = vld [vmem:[%s176 + $0x12f0] sm:$0xff]
        %v871 = vld [vmem:[%s176 + $0x12f8] sm:$0xff]
        %v872 = vld [vmem:[%s176 + $0x1300] sm:$0xff]
        %v873 = vld [vmem:[%s176 + $0x1308] sm:$0xff]
        %v874 = vld [vmem:[%s176 + $0x1310] sm:$0xff]
        %v875 = vld [vmem:[%s176 + $0x1318] sm:$0xff]
        %v876 = vld [vmem:[%s176 + $0x1320] sm:$0xff]
        %v877 = vld [vmem:[%s176 + $0x1328] sm:$0xff]
        %v878 = vld [vmem:[%s176 + $0x1330] sm:$0xff]
        %v879 = vld [vmem:[%s176 + $0x1338] sm:$0xff]
        %v880 = vld [vmem:[%s176 + $0x1340] sm:$0xff]
        %v881 = vld [vmem:[%s176 + $0x1348] sm:$0xff]
        %v882 = vld [vmem:[%s176 + $0x1350] sm:$0xff]
        %v883 = vld [vmem:[%s176 + $0x1358] sm:$0xff]
        %v884 = vld [vmem:[%s176 + $0x1360] sm:$0xff]
        %v885 = vld [vmem:[%s176 + $0x1368] sm:$0xff]
        %v886 = vld [vmem:[%s176 + $0x1370] sm:$0xff]
        %v887 = vld [vmem:[%s176 + $0x1378] sm:$0xff]
        %v888 = vld [vmem:[%s176 + $0x1380] sm:$0xff]
        %v889 = vld [vmem:[%s176 + $0x1388] sm:$0xff]
        %v890 = vld [vmem:[%s176 + $0x1390] sm:$0xff]
        %v891 = vld [vmem:[%s176 + $0x1398] sm:$0xff]
        %v892 = vld [vmem:[%s176 + $0x13a0] sm:$0xff]
        %v893 = vld [vmem:[%s176 + $0x13a8] sm:$0xff]
        %v894 = vld [vmem:[%s176 + $0x13b0] sm:$0xff]
        %v895 = vld [vmem:[%s176 + $0x13b8] sm:$0xff]
        %v896 = vld [vmem:[%s176 + $0x13c0] sm:$0xff]
        %v897 = vld [vmem:[%s176 + $0x13c8] sm:$0xff]
        %v898 = vld [vmem:[%s176 + $0x13d0] sm:$0xff]
        %v899 = vld [vmem:[%s176 + $0x13d8] sm:$0xff]
        %v900 = vld [vmem:[%s176 + $0x13e0] sm:$0xff]
        %v901 = vld [vmem:[%s176 + $0x13e8] sm:$0xff]
        %v902 = vld [vmem:[%s176 + $0x13f0] sm:$0xff]
        %v903 = vld [vmem:[%s176 + $0x13f8] sm:$0xff]
        %v904 = vld [vmem:[%s176 + $0x1400] sm:$0xff]
        %v905 = vld [vmem:[%s176 + $0x1408] sm:$0xff]
        %v906 = vld [vmem:[%s176 + $0x1410] sm:$0xff]
        %v907 = vld [vmem:[%s176 + $0x1418] sm:$0xff]
        %v908 = vld [vmem:[%s176 + $0x1420] sm:$0xff]
        %v909 = vld [vmem:[%s176 + $0x1428] sm:$0xff]
        %v910 = vld [vmem:[%s176 + $0x1430] sm:$0xff]
        %v911 = vld [vmem:[%s176 + $0x1438] sm:$0xff]
        %v912 = vld [vmem:[%s176 + $0x1440] sm:$0xff]
        %v913 = vld [vmem:[%s176 + $0x1448] sm:$0xff]
        %v914 = vld [vmem:[%s176 + $0x1450] sm:$0xff]
        %v915 = vld [vmem:[%s176 + $0x1458] sm:$0xff]
        %v916 = vld [vmem:[%s176 + $0x1460] sm:$0xff]
        %v917 = vld [vmem:[%s176 + $0x1468] sm:$0xff]
        %v918 = vld [vmem:[%s176 + $0x1470] sm:$0xff]
        %v919 = vld [vmem:[%s176 + $0x1478] sm:$0xff]
        %v920 = vld [vmem:[%s176 + $0x1480] sm:$0xff]
        %v921 = vld [vmem:[%s176 + $0x1488] sm:$0xff]
        %v922 = vld [vmem:[%s176 + $0x1490] sm:$0xff]
        %v923 = vld [vmem:[%s176 + $0x1498] sm:$0xff]
        %v924 = vld [vmem:[%s176 + $0x14a0] sm:$0xff]
        %v925 = vld [vmem:[%s176 + $0x14a8] sm:$0xff]
        %v926 = vld [vmem:[%s176 + $0x14b0] sm:$0xff]
        %v927 = vld [vmem:[%s176 + $0x14b8] sm:$0xff]
        %v928 = vld [vmem:[%s176 + $0x14c0] sm:$0xff]
        %v929 = vld [vmem:[%s176 + $0x14c8] sm:$0xff]
        %v930 = vld [vmem:[%s176 + $0x14d0] sm:$0xff]
        %v931 = vld [vmem:[%s176 + $0x14d8] sm:$0xff]
        %v932 = vld [vmem:[%s176 + $0x14e0] sm:$0xff]
        %v933 = vld [vmem:[%s176 + $0x14e8] sm:$0xff]
        %v934 = vld [vmem:[%s176 + $0x14f0] sm:$0xff]
        %v935 = vld [vmem:[%s176 + $0x14f8] sm:$0xff]
        %v936 = vld [vmem:[%s176 + $0x1500] sm:$0xff]
        %v937 = vld [vmem:[%s176 + $0x1508] sm:$0xff]
        %v938 = vld [vmem:[%s176 + $0x1510] sm:$0xff]
        %v939 = vld [vmem:[%s176 + $0x1518] sm:$0xff]
        %v940 = vld [vmem:[%s176 + $0x1520] sm:$0xff]
        %v941 = vld [vmem:[%s176 + $0x1528] sm:$0xff]
        %v942 = vld [vmem:[%s176 + $0x1530] sm:$0xff]
        %v943 = vld [vmem:[%s176 + $0x1538] sm:$0xff]
        %v944 = vld [vmem:[%s176 + $0x1540] sm:$0xff]
        %v945 = vld [vmem:[%s176 + $0x1548] sm:$0xff]
        %v946 = vld [vmem:[%s176 + $0x1550] sm:$0xff]
        %v947 = vld [vmem:[%s176 + $0x1558] sm:$0xff]
        %v948 = vld [vmem:[%s176 + $0x1560] sm:$0xff]
        %v949 = vld [vmem:[%s176 + $0x1568] sm:$0xff]
        %v950 = vld [vmem:[%s176 + $0x1570] sm:$0xff]
        %v951 = vld [vmem:[%s176 + $0x1578] sm:$0xff]
        %v952 = vld [vmem:[%s176 + $0x1580] sm:$0xff]
        %v953 = vld [vmem:[%s176 + $0x1588] sm:$0xff]
        %v954 = vld [vmem:[%s176 + $0x1590] sm:$0xff]
        %v955 = vld [vmem:[%s176 + $0x1598] sm:$0xff]
        %v956 = vld [vmem:[%s176 + $0x15a0] sm:$0xff]
        %v957 = vld [vmem:[%s176 + $0x15a8] sm:$0xff]
        %v958 = vld [vmem:[%s176 + $0x15b0] sm:$0xff]
        %v959 = vld [vmem:[%s176 + $0x15b8] sm:$0xff]
        %v960 = vld [vmem:[%s176 + $0x15c0] sm:$0xff]
        %v961 = vld [vmem:[%s176 + $0x15c8] sm:$0xff]
        %v962 = vld [vmem:[%s176 + $0x15d0] sm:$0xff]
        %v963 = vld [vmem:[%s176 + $0x15d8] sm:$0xff]
        %v964 = vld [vmem:[%s176 + $0x15e0] sm:$0xff]
        %v965 = vld [vmem:[%s176 + $0x15e8] sm:$0xff]
        %v966 = vld [vmem:[%s176 + $0x15f0] sm:$0xff]
        %v967 = vld [vmem:[%s176 + $0x15f8] sm:$0xff]
        %v968 = vld [vmem:[%s176 + $0x1600] sm:$0xff]
        %v969 = vld [vmem:[%s176 + $0x1608] sm:$0xff]
        %v970 = vld [vmem:[%s176 + $0x1610] sm:$0xff]
        %v971 = vld [vmem:[%s176 + $0x1618] sm:$0xff]
        %v972 = vld [vmem:[%s176 + $0x1620] sm:$0xff]
        %v973 = vld [vmem:[%s176 + $0x1628] sm:$0xff]
        %v974 = vld [vmem:[%s176 + $0x1630] sm:$0xff]
        %v975 = vld [vmem:[%s176 + $0x1638] sm:$0xff]
        %v976 = vld [vmem:[%s176 + $0x1640] sm:$0xff]
        %v977 = vld [vmem:[%s176 + $0x1648] sm:$0xff]
        %v978 = vld [vmem:[%s176 + $0x1650] sm:$0xff]
        %v979 = vld [vmem:[%s176 + $0x1658] sm:$0xff]
        %v980 = vld [vmem:[%s176 + $0x1660] sm:$0xff]
        %v981 = vld [vmem:[%s176 + $0x1668] sm:$0xff]
        %v982 = vld [vmem:[%s176 + $0x1670] sm:$0xff]
        %v983 = vld [vmem:[%s176 + $0x1678] sm:$0xff]
        %v984 = vld [vmem:[%s176 + $0x1680] sm:$0xff]
        %v985 = vld [vmem:[%s176 + $0x1688] sm:$0xff]
        %v986 = vld [vmem:[%s176 + $0x1690] sm:$0xff]
        %v987 = vld [vmem:[%s176 + $0x1698] sm:$0xff]
        %v988 = vld [vmem:[%s176 + $0x16a0] sm:$0xff]
        %v989 = vld [vmem:[%s176 + $0x16a8] sm:$0xff]
        %v990 = vld [vmem:[%s176 + $0x16b0] sm:$0xff]
        %v991 = vld [vmem:[%s176 + $0x16b8] sm:$0xff]
        %v992 = vld [vmem:[%s176 + $0x16c0] sm:$0xff]
        %v993 = vld [vmem:[%s176 + $0x16c8] sm:$0xff]
        %v994 = vld [vmem:[%s176 + $0x16d0] sm:$0xff]
        %v995 = vld [vmem:[%s176 + $0x16d8] sm:$0xff]
        %v996 = vld [vmem:[%s176 + $0x16e0] sm:$0xff]
        %v997 = vld [vmem:[%s176 + $0x16e8] sm:$0xff]
        %v998 = vld [vmem:[%s176 + $0x16f0] sm:$0xff]
        %v999 = vld [vmem:[%s176 + $0x16f8] sm:$0xff]
        %v1000 = vld [vmem:[%s176 + $0x1700] sm:$0xff]
        %v1001 = vld [vmem:[%s176 + $0x1708] sm:$0xff]
        %v1002 = vld [vmem:[%s176 + $0x1710] sm:$0xff]
        %v1003 = vld [vmem:[%s176 + $0x1718] sm:$0xff]
        %v1004 = vld [vmem:[%s176 + $0x1720] sm:$0xff]
        %v1005 = vld [vmem:[%s176 + $0x1728] sm:$0xff]
        %v1006 = vld [vmem:[%s176 + $0x1730] sm:$0xff]
        %v1007 = vld [vmem:[%s176 + $0x1738] sm:$0xff]
        %v1008 = vld [vmem:[%s176 + $0x1740] sm:$0xff]
        %v1009 = vld [vmem:[%s176 + $0x1748] sm:$0xff]
        %v1010 = vld [vmem:[%s176 + $0x1750] sm:$0xff]
        %v1011 = vld [vmem:[%s176 + $0x1758] sm:$0xff]
        %v1012 = vld [vmem:[%s176 + $0x1760] sm:$0xff]
        %v1013 = vld [vmem:[%s176 + $0x1768] sm:$0xff]
        %v1014 = vld [vmem:[%s176 + $0x1770] sm:$0xff]
        %v1015 = vld [vmem:[%s176 + $0x1778] sm:$0xff]
        %v1016 = vld [vmem:[%s176 + $0x1780] sm:$0xff]
        %v1017 = vld [vmem:[%s176 + $0x1788] sm:$0xff]
        %v1018 = vld [vmem:[%s176 + $0x1790] sm:$0xff]
        %v1019 = vld [vmem:[%s176 + $0x1798] sm:$0xff]
        %v1020 = vld [vmem:[%s176 + $0x17a0] sm:$0xff]
        %v1021 = vld [vmem:[%s176 + $0x17a8] sm:$0xff]
        %v1022 = vld [vmem:[%s176 + $0x17b0] sm:$0xff]
        %v1023 = vld [vmem:[%s176 + $0x17b8] sm:$0xff]
        %v1024 = vld [vmem:[%s176 + $0x17c0] sm:$0xff]
        %v1025 = vld [vmem:[%s176 + $0x17c8] sm:$0xff]
        %v1026 = vld [vmem:[%s176 + $0x17d0] sm:$0xff]
        %v1027 = vld [vmem:[%s176 + $0x17d8] sm:$0xff]
        %v1028 = vld [vmem:[%s176 + $0x17e0] sm:$0xff]
        %v1029 = vld [vmem:[%s176 + $0x17e8] sm:$0xff]
        %v1030 = vld [vmem:[%s176 + $0x17f0] sm:$0xff]
        %v1031 = vld [vmem:[%s176 + $0x17f8] sm:$0xff]
        %v1032 = vld [vmem:[%s207] sm:$0xff]
        %v1033 = vld [vmem:[%s207 + $0x8] sm:$0xf]
        %v1036 = vlaneseq
        %v1037 = vshrl.u32 %v1036, 7
        %v1038 = vsub.s32 0, %v1037
        %v1039 = vrot.slane %v1032, %v1038
        %v1040 = vlaneseq
        %v1041 = vshrl.u32 %v1040, 7
        %v1042 = vsub.s32 1, %v1041
        %v1043 = vrot.slane %v1032, %v1042
        %v1044 = vlaneseq
        %v1045 = vshrl.u32 %v1044, 7
        %v1046 = vsub.s32 2, %v1045
        %v1047 = vrot.slane %v1032, %v1046
        %v1048 = vlaneseq
        %v1049 = vshrl.u32 %v1048, 7
        %v1050 = vsub.s32 3, %v1049
        %v1051 = vrot.slane %v1032, %v1050
        %v1052 = vlaneseq
        %v1053 = vshrl.u32 %v1052, 7
        %v1054 = vsub.s32 4, %v1053
        %v1055 = vrot.slane %v1032, %v1054
        %v1056 = vlaneseq
        %v1057 = vshrl.u32 %v1056, 7
        %v1058 = vsub.s32 5, %v1057
        %v1059 = vrot.slane %v1032, %v1058
        %v1060 = vlaneseq
        %v1061 = vshrl.u32 %v1060, 7
        %v1062 = vsub.s32 6, %v1061
        %v1063 = vrot.slane %v1032, %v1062
        %v1064 = vlaneseq
        %v1065 = vshrl.u32 %v1064, 7
        %v1066 = vsub.s32 7, %v1065
        %v1067 = vrot.slane %v1032, %v1066
        %v1068 = vlaneseq
        %v1069 = vshrl.u32 %v1068, 7
        %v1070 = vsub.s32 0, %v1069
        %v1071 = vrot.slane %v1033, %v1070
        %v1072 = vlaneseq
        %v1073 = vshrl.u32 %v1072, 7
        %v1074 = vsub.s32 1, %v1073
        %v1075 = vrot.slane %v1033, %v1074
        %v1076 = vlaneseq
        %v1077 = vshrl.u32 %v1076, 7
        %v1078 = vsub.s32 2, %v1077
        %v1079 = vrot.slane %v1033, %v1078
        %v1080 = vlaneseq
        %v1081 = vshrl.u32 %v1080, 7
        %v1082 = vsub.s32 3, %v1081
        %v1083 = vrot.slane %v1033, %v1082
        %v1864 = vunpack.c.l.b16 %v264
        %v1865 = vunpack.c.h.b16 %v264
        %v1866 = vunpack.c.l.b16 %v265
        %v1867 = vunpack.c.h.b16 %v265
        %v1868 = vunpack.c.l.b16 %v266
        %v1869 = vunpack.c.h.b16 %v266
        %v1870 = vunpack.c.l.b16 %v267
        %v1871 = vunpack.c.h.b16 %v267
        %v1872 = vunpack.c.l.b16 %v268
        %v1873 = vunpack.c.h.b16 %v268
        %v1874 = vunpack.c.l.b16 %v269
        %v1875 = vunpack.c.h.b16 %v269
        %v1876 = vunpack.c.l.b16 %v270
        %v1877 = vunpack.c.h.b16 %v270
        %v1878 = vunpack.c.l.b16 %v271
        %v1879 = vunpack.c.h.b16 %v271
        %v1880 = vunpack.c.l.b16 %v272
        %v1881 = vunpack.c.h.b16 %v272
        %v1882 = vunpack.c.l.b16 %v273
        %v1883 = vunpack.c.h.b16 %v273
        %v1884 = vunpack.c.l.b16 %v274
        %v1885 = vunpack.c.h.b16 %v274
        %v1886 = vunpack.c.l.b16 %v275
        %v1887 = vunpack.c.h.b16 %v275
        %v1888 = vunpack.c.l.b16 %v276
        %v1889 = vunpack.c.h.b16 %v276
        %v1890 = vunpack.c.l.b16 %v277
        %v1891 = vunpack.c.h.b16 %v277
        %v1892 = vunpack.c.l.b16 %v278
        %v1893 = vunpack.c.h.b16 %v278
        %v1894 = vunpack.c.l.b16 %v279
        %v1895 = vunpack.c.h.b16 %v279
        %v1896 = vunpack.c.l.b16 %v280
        %v1897 = vunpack.c.h.b16 %v280
        %v1898 = vunpack.c.l.b16 %v281
        %v1899 = vunpack.c.h.b16 %v281
        %v1900 = vunpack.c.l.b16 %v282
        %v1901 = vunpack.c.h.b16 %v282
        %v1902 = vunpack.c.l.b16 %v283
        %v1903 = vunpack.c.h.b16 %v283
        %v1904 = vunpack.c.l.b16 %v284
        %v1905 = vunpack.c.h.b16 %v284
        %v1906 = vunpack.c.l.b16 %v285
        %v1907 = vunpack.c.h.b16 %v285
        %v1908 = vunpack.c.l.b16 %v286
        %v1909 = vunpack.c.h.b16 %v286
        %v1910 = vunpack.c.l.b16 %v287
        %v1911 = vunpack.c.h.b16 %v287
        %v1912 = vunpack.c.l.b16 %v288
        %v1913 = vunpack.c.h.b16 %v288
        %v1914 = vunpack.c.l.b16 %v289
        %v1915 = vunpack.c.h.b16 %v289
        %v1916 = vunpack.c.l.b16 %v290
        %v1917 = vunpack.c.h.b16 %v290
        %v1918 = vunpack.c.l.b16 %v291
        %v1919 = vunpack.c.h.b16 %v291
        %v1920 = vunpack.c.l.b16 %v292
        %v1921 = vunpack.c.h.b16 %v292
        %v1922 = vunpack.c.l.b16 %v293
        %v1923 = vunpack.c.h.b16 %v293
        %v1924 = vunpack.c.l.b16 %v294
        %v1925 = vunpack.c.h.b16 %v294
        %v1926 = vunpack.c.l.b16 %v295
        %v1927 = vunpack.c.h.b16 %v295
        %v1928 = vunpack.c.l.b16 %v296
        %v1929 = vunpack.c.h.b16 %v296
        %v1930 = vunpack.c.l.b16 %v297
        %v1931 = vunpack.c.h.b16 %v297
        %v1932 = vunpack.c.l.b16 %v298
        %v1933 = vunpack.c.h.b16 %v298
        %v1934 = vunpack.c.l.b16 %v299
        %v1935 = vunpack.c.h.b16 %v299
        %v1936 = vunpack.c.l.b16 %v300
        %v1937 = vunpack.c.h.b16 %v300
        %v1938 = vunpack.c.l.b16 %v301
        %v1939 = vunpack.c.h.b16 %v301
        %v1940 = vunpack.c.l.b16 %v302
        %v1941 = vunpack.c.h.b16 %v302
        %v1942 = vunpack.c.l.b16 %v303
        %v1943 = vunpack.c.h.b16 %v303
        %v1944 = vunpack.c.l.b16 %v304
        %v1945 = vunpack.c.h.b16 %v304
        %v1946 = vunpack.c.l.b16 %v305
        %v1947 = vunpack.c.h.b16 %v305
        %v1948 = vunpack.c.l.b16 %v306
        %v1949 = vunpack.c.h.b16 %v306
        %v1950 = vunpack.c.l.b16 %v307
        %v1951 = vunpack.c.h.b16 %v307
        %v1952 = vunpack.c.l.b16 %v308
        %v1953 = vunpack.c.h.b16 %v308
        %v1954 = vunpack.c.l.b16 %v309
        %v1955 = vunpack.c.h.b16 %v309
        %v1956 = vunpack.c.l.b16 %v310
        %v1957 = vunpack.c.h.b16 %v310
        %v1958 = vunpack.c.l.b16 %v311
        %v1959 = vunpack.c.h.b16 %v311
        %v1960 = vunpack.c.l.b16 %v312
        %v1961 = vunpack.c.h.b16 %v312
        %v1962 = vunpack.c.l.b16 %v313
        %v1963 = vunpack.c.h.b16 %v313
        %v1964 = vunpack.c.l.b16 %v314
        %v1965 = vunpack.c.h.b16 %v314
        %v1966 = vunpack.c.l.b16 %v315
        %v1967 = vunpack.c.h.b16 %v315
        %v1968 = vunpack.c.l.b16 %v316
        %v1969 = vunpack.c.h.b16 %v316
        %v1970 = vunpack.c.l.b16 %v317
        %v1971 = vunpack.c.h.b16 %v317
        %v1972 = vunpack.c.l.b16 %v318
        %v1973 = vunpack.c.h.b16 %v318
        %v1974 = vunpack.c.l.b16 %v319
        %v1975 = vunpack.c.h.b16 %v319
        %v1976 = vunpack.c.l.b16 %v320
        %v1977 = vunpack.c.h.b16 %v320
        %v1978 = vunpack.c.l.b16 %v321
        %v1979 = vunpack.c.h.b16 %v321
        %v1980 = vunpack.c.l.b16 %v322
        %v1981 = vunpack.c.h.b16 %v322
        %v1982 = vunpack.c.l.b16 %v323
        %v1983 = vunpack.c.h.b16 %v323
        %v1984 = vunpack.c.l.b16 %v324
        %v1985 = vunpack.c.h.b16 %v324
        %v1986 = vunpack.c.l.b16 %v325
        %v1987 = vunpack.c.h.b16 %v325
        %v1988 = vunpack.c.l.b16 %v326
        %v1989 = vunpack.c.h.b16 %v326
        %v1990 = vunpack.c.l.b16 %v327
        %v1991 = vunpack.c.h.b16 %v327
        %v1992 = vunpack.c.l.b16 %v328
        %v1993 = vunpack.c.h.b16 %v328
        %v1994 = vunpack.c.l.b16 %v329
        %v1995 = vunpack.c.h.b16 %v329
        %v1996 = vunpack.c.l.b16 %v330
        %v1997 = vunpack.c.h.b16 %v330
        %v1998 = vunpack.c.l.b16 %v331
        %v1999 = vunpack.c.h.b16 %v331
        %v2000 = vunpack.c.l.b16 %v332
        %v2001 = vunpack.c.h.b16 %v332
        %v2002 = vunpack.c.l.b16 %v333
        %v2003 = vunpack.c.h.b16 %v333
        %v2004 = vunpack.c.l.b16 %v334
        %v2005 = vunpack.c.h.b16 %v334
        %v2006 = vunpack.c.l.b16 %v335
        %v2007 = vunpack.c.h.b16 %v335
        %v2008 = vunpack.c.l.b16 %v336
        %v2009 = vunpack.c.h.b16 %v336
        %v2010 = vunpack.c.l.b16 %v337
        %v2011 = vunpack.c.h.b16 %v337
        %v2012 = vunpack.c.l.b16 %v338
        %v2013 = vunpack.c.h.b16 %v338
        %v2014 = vunpack.c.l.b16 %v339
        %v2015 = vunpack.c.h.b16 %v339
        %v2016 = vunpack.c.l.b16 %v340
        %v2017 = vunpack.c.h.b16 %v340
        %v2018 = vunpack.c.l.b16 %v341
        %v2019 = vunpack.c.h.b16 %v341
        %v2020 = vunpack.c.l.b16 %v342
        %v2021 = vunpack.c.h.b16 %v342
        %v2022 = vunpack.c.l.b16 %v343
        %v2023 = vunpack.c.h.b16 %v343
        %v2024 = vunpack.c.l.b16 %v344
        %v2025 = vunpack.c.h.b16 %v344
        %v2026 = vunpack.c.l.b16 %v345
        %v2027 = vunpack.c.h.b16 %v345
        %v2028 = vunpack.c.l.b16 %v346
        %v2029 = vunpack.c.h.b16 %v346
        %v2030 = vunpack.c.l.b16 %v347
        %v2031 = vunpack.c.h.b16 %v347
        %v2032 = vunpack.c.l.b16 %v348
        %v2033 = vunpack.c.h.b16 %v348
        %v2034 = vunpack.c.l.b16 %v349
        %v2035 = vunpack.c.h.b16 %v349
        %v2036 = vunpack.c.l.b16 %v350
        %v2037 = vunpack.c.h.b16 %v350
        %v2038 = vunpack.c.l.b16 %v351
        %v2039 = vunpack.c.h.b16 %v351
        %v2040 = vunpack.c.l.b16 %v352
        %v2041 = vunpack.c.h.b16 %v352
        %v2042 = vunpack.c.l.b16 %v353
        %v2043 = vunpack.c.h.b16 %v353
        %v2044 = vunpack.c.l.b16 %v354
        %v2045 = vunpack.c.h.b16 %v354
        %v2046 = vunpack.c.l.b16 %v355
        %v2047 = vunpack.c.h.b16 %v355
        %v2048 = vunpack.c.l.b16 %v356
        %v2049 = vunpack.c.h.b16 %v356
        %v2050 = vunpack.c.l.b16 %v357
        %v2051 = vunpack.c.h.b16 %v357
        %v2052 = vunpack.c.l.b16 %v358
        %v2053 = vunpack.c.h.b16 %v358
        %v2054 = vunpack.c.l.b16 %v359
        %v2055 = vunpack.c.h.b16 %v359
        %v2056 = vunpack.c.l.b16 %v360
        %v2057 = vunpack.c.h.b16 %v360
        %v2058 = vunpack.c.l.b16 %v361
        %v2059 = vunpack.c.h.b16 %v361
        %v2060 = vunpack.c.l.b16 %v362
        %v2061 = vunpack.c.h.b16 %v362
        %v2062 = vunpack.c.l.b16 %v363
        %v2063 = vunpack.c.h.b16 %v363
        %v2064 = vunpack.c.l.b16 %v364
        %v2065 = vunpack.c.h.b16 %v364
        %v2066 = vunpack.c.l.b16 %v365
        %v2067 = vunpack.c.h.b16 %v365
        %v2068 = vunpack.c.l.b16 %v366
        %v2069 = vunpack.c.h.b16 %v366
        %v2070 = vunpack.c.l.b16 %v367
        %v2071 = vunpack.c.h.b16 %v367
        %v2072 = vunpack.c.l.b16 %v368
        %v2073 = vunpack.c.h.b16 %v368
        %v2074 = vunpack.c.l.b16 %v369
        %v2075 = vunpack.c.h.b16 %v369
        %v2076 = vunpack.c.l.b16 %v370
        %v2077 = vunpack.c.h.b16 %v370
        %v2078 = vunpack.c.l.b16 %v371
        %v2079 = vunpack.c.h.b16 %v371
        %v2080 = vunpack.c.l.b16 %v372
        %v2081 = vunpack.c.h.b16 %v372
        %v2082 = vunpack.c.l.b16 %v373
        %v2083 = vunpack.c.h.b16 %v373
        %v2084 = vunpack.c.l.b16 %v374
        %v2085 = vunpack.c.h.b16 %v374
        %v2086 = vunpack.c.l.b16 %v375
        %v2087 = vunpack.c.h.b16 %v375
        %v2088 = vunpack.c.l.b16 %v376
        %v2089 = vunpack.c.h.b16 %v376
        %v2090 = vunpack.c.l.b16 %v377
        %v2091 = vunpack.c.h.b16 %v377
        %v2092 = vunpack.c.l.b16 %v378
        %v2093 = vunpack.c.h.b16 %v378
        %v2094 = vunpack.c.l.b16 %v379
        %v2095 = vunpack.c.h.b16 %v379
        %v2096 = vunpack.c.l.b16 %v380
        %v2097 = vunpack.c.h.b16 %v380
        %v2098 = vunpack.c.l.b16 %v381
        %v2099 = vunpack.c.h.b16 %v381
        %v2100 = vunpack.c.l.b16 %v382
        %v2101 = vunpack.c.h.b16 %v382
        %v2102 = vunpack.c.l.b16 %v383
        %v2103 = vunpack.c.h.b16 %v383
        %v2104 = vunpack.c.l.b16 %v384
        %v2105 = vunpack.c.h.b16 %v384
        %v2106 = vunpack.c.l.b16 %v385
        %v2107 = vunpack.c.h.b16 %v385
        %v2108 = vunpack.c.l.b16 %v386
        %v2109 = vunpack.c.h.b16 %v386
        %v2110 = vunpack.c.l.b16 %v387
        %v2111 = vunpack.c.h.b16 %v387
        %v2112 = vunpack.c.l.b16 %v388
        %v2113 = vunpack.c.h.b16 %v388
        %v2114 = vunpack.c.l.b16 %v389
        %v2115 = vunpack.c.h.b16 %v389
        %v2116 = vunpack.c.l.b16 %v390
        %v2117 = vunpack.c.h.b16 %v390
        %v2118 = vunpack.c.l.b16 %v391
        %v2119 = vunpack.c.h.b16 %v391
        %v2120 = vunpack.c.l.b16 %v392
        %v2121 = vunpack.c.h.b16 %v392
        %v2122 = vunpack.c.l.b16 %v393
        %v2123 = vunpack.c.h.b16 %v393
        %v2124 = vunpack.c.l.b16 %v394
        %v2125 = vunpack.c.h.b16 %v394
        %v2126 = vunpack.c.l.b16 %v395
        %v2127 = vunpack.c.h.b16 %v395
        %v2128 = vunpack.c.l.b16 %v396
        %v2129 = vunpack.c.h.b16 %v396
        %v2130 = vunpack.c.l.b16 %v397
        %v2131 = vunpack.c.h.b16 %v397
        %v2132 = vunpack.c.l.b16 %v398
        %v2133 = vunpack.c.h.b16 %v398
        %v2134 = vunpack.c.l.b16 %v399
        %v2135 = vunpack.c.h.b16 %v399
        %v2136 = vunpack.c.l.b16 %v400
        %v2137 = vunpack.c.h.b16 %v400
        %v2138 = vunpack.c.l.b16 %v401
        %v2139 = vunpack.c.h.b16 %v401
        %v2140 = vunpack.c.l.b16 %v402
        %v2141 = vunpack.c.h.b16 %v402
        %v2142 = vunpack.c.l.b16 %v403
        %v2143 = vunpack.c.h.b16 %v403
        %v2144 = vunpack.c.l.b16 %v404
        %v2145 = vunpack.c.h.b16 %v404
        %v2146 = vunpack.c.l.b16 %v405
        %v2147 = vunpack.c.h.b16 %v405
        %v2148 = vunpack.c.l.b16 %v406
        %v2149 = vunpack.c.h.b16 %v406
        %v2150 = vunpack.c.l.b16 %v407
        %v2151 = vunpack.c.h.b16 %v407
        %v2152 = vunpack.c.l.b16 %v408
        %v2153 = vunpack.c.h.b16 %v408
        %v2154 = vunpack.c.l.b16 %v409
        %v2155 = vunpack.c.h.b16 %v409
        %v2156 = vunpack.c.l.b16 %v410
        %v2157 = vunpack.c.h.b16 %v410
        %v2158 = vunpack.c.l.b16 %v411
        %v2159 = vunpack.c.h.b16 %v411
        %v2160 = vunpack.c.l.b16 %v412
        %v2161 = vunpack.c.h.b16 %v412
        %v2162 = vunpack.c.l.b16 %v413
        %v2163 = vunpack.c.h.b16 %v413
        %v2164 = vunpack.c.l.b16 %v414
        %v2165 = vunpack.c.h.b16 %v414
        %v2166 = vunpack.c.l.b16 %v415
        %v2167 = vunpack.c.h.b16 %v415
        %v2168 = vunpack.c.l.b16 %v416
        %v2169 = vunpack.c.h.b16 %v416
        %v2170 = vunpack.c.l.b16 %v417
        %v2171 = vunpack.c.h.b16 %v417
        %v2172 = vunpack.c.l.b16 %v418
        %v2173 = vunpack.c.h.b16 %v418
        %v2174 = vunpack.c.l.b16 %v419
        %v2175 = vunpack.c.h.b16 %v419
        %v2176 = vunpack.c.l.b16 %v420
        %v2177 = vunpack.c.h.b16 %v420
        %v2178 = vunpack.c.l.b16 %v421
        %v2179 = vunpack.c.h.b16 %v421
        %v2180 = vunpack.c.l.b16 %v422
        %v2181 = vunpack.c.h.b16 %v422
        %v2182 = vunpack.c.l.b16 %v423
        %v2183 = vunpack.c.h.b16 %v423
        %v2184 = vunpack.c.l.b16 %v424
        %v2185 = vunpack.c.h.b16 %v424
        %v2186 = vunpack.c.l.b16 %v425
        %v2187 = vunpack.c.h.b16 %v425
        %v2188 = vunpack.c.l.b16 %v426
        %v2189 = vunpack.c.h.b16 %v426
        %v2190 = vunpack.c.l.b16 %v427
        %v2191 = vunpack.c.h.b16 %v427
        %v2192 = vunpack.c.l.b16 %v428
        %v2193 = vunpack.c.h.b16 %v428
        %v2194 = vunpack.c.l.b16 %v429
        %v2195 = vunpack.c.h.b16 %v429
        %v2196 = vunpack.c.l.b16 %v430
        %v2197 = vunpack.c.h.b16 %v430
        %v2198 = vunpack.c.l.b16 %v431
        %v2199 = vunpack.c.h.b16 %v431
        %v2200 = vunpack.c.l.b16 %v432
        %v2201 = vunpack.c.h.b16 %v432
        %v2202 = vunpack.c.l.b16 %v433
        %v2203 = vunpack.c.h.b16 %v433
        %v2204 = vunpack.c.l.b16 %v434
        %v2205 = vunpack.c.h.b16 %v434
        %v2206 = vunpack.c.l.b16 %v435
        %v2207 = vunpack.c.h.b16 %v435
        %v2208 = vunpack.c.l.b16 %v436
        %v2209 = vunpack.c.h.b16 %v436
        %v2210 = vunpack.c.l.b16 %v437
        %v2211 = vunpack.c.h.b16 %v437
        %v2212 = vunpack.c.l.b16 %v438
        %v2213 = vunpack.c.h.b16 %v438
        %v2214 = vunpack.c.l.b16 %v439
        %v2215 = vunpack.c.h.b16 %v439
        %v2216 = vunpack.c.l.b16 %v440
        %v2217 = vunpack.c.h.b16 %v440
        %v2218 = vunpack.c.l.b16 %v441
        %v2219 = vunpack.c.h.b16 %v441
        %v2220 = vunpack.c.l.b16 %v442
        %v2221 = vunpack.c.h.b16 %v442
        %v2222 = vunpack.c.l.b16 %v443
        %v2223 = vunpack.c.h.b16 %v443
        %v2224 = vunpack.c.l.b16 %v444
        %v2225 = vunpack.c.h.b16 %v444
        %v2226 = vunpack.c.l.b16 %v445
        %v2227 = vunpack.c.h.b16 %v445
        %v2228 = vunpack.c.l.b16 %v446
        %v2229 = vunpack.c.h.b16 %v446
        %v2230 = vunpack.c.l.b16 %v447
        %v2231 = vunpack.c.h.b16 %v447
        %v2232 = vunpack.c.l.b16 %v448
        %v2233 = vunpack.c.h.b16 %v448
        %v2234 = vunpack.c.l.b16 %v449
        %v2235 = vunpack.c.h.b16 %v449
        %v2236 = vunpack.c.l.b16 %v450
        %v2237 = vunpack.c.h.b16 %v450
        %v2238 = vunpack.c.l.b16 %v451
        %v2239 = vunpack.c.h.b16 %v451
        %v2240 = vunpack.c.l.b16 %v452
        %v2241 = vunpack.c.h.b16 %v452
        %v2242 = vunpack.c.l.b16 %v453
        %v2243 = vunpack.c.h.b16 %v453
        %v2244 = vunpack.c.l.b16 %v454
        %v2245 = vunpack.c.h.b16 %v454
        %v2246 = vunpack.c.l.b16 %v455
        %v2247 = vunpack.c.h.b16 %v455
        %v2248 = vunpack.c.l.b16 %v456
        %v2249 = vunpack.c.h.b16 %v456
        %v2250 = vunpack.c.l.b16 %v457
        %v2251 = vunpack.c.h.b16 %v457
        %v2252 = vunpack.c.l.b16 %v458
        %v2253 = vunpack.c.h.b16 %v458
        %v2254 = vunpack.c.l.b16 %v459
        %v2255 = vunpack.c.h.b16 %v459
        %v2256 = vunpack.c.l.b16 %v460
        %v2257 = vunpack.c.h.b16 %v460
        %v2258 = vunpack.c.l.b16 %v461
        %v2259 = vunpack.c.h.b16 %v461
        %v2260 = vunpack.c.l.b16 %v462
        %v2261 = vunpack.c.h.b16 %v462
        %v2262 = vunpack.c.l.b16 %v463
        %v2263 = vunpack.c.h.b16 %v463
        %v2264 = vunpack.c.l.b16 %v464
        %v2265 = vunpack.c.h.b16 %v464
        %v2266 = vunpack.c.l.b16 %v465
        %v2267 = vunpack.c.h.b16 %v465
        %v2268 = vunpack.c.l.b16 %v466
        %v2269 = vunpack.c.h.b16 %v466
        %v2270 = vunpack.c.l.b16 %v467
        %v2271 = vunpack.c.h.b16 %v467
        %v2272 = vunpack.c.l.b16 %v468
        %v2273 = vunpack.c.h.b16 %v468
        %v2274 = vunpack.c.l.b16 %v469
        %v2275 = vunpack.c.h.b16 %v469
        %v2276 = vunpack.c.l.b16 %v470
        %v2277 = vunpack.c.h.b16 %v470
        %v2278 = vunpack.c.l.b16 %v471
        %v2279 = vunpack.c.h.b16 %v471
        %v2280 = vunpack.c.l.b16 %v472
        %v2281 = vunpack.c.h.b16 %v472
        %v2282 = vunpack.c.l.b16 %v473
        %v2283 = vunpack.c.h.b16 %v473
        %v2284 = vunpack.c.l.b16 %v474
        %v2285 = vunpack.c.h.b16 %v474
        %v2286 = vunpack.c.l.b16 %v475
        %v2287 = vunpack.c.h.b16 %v475
        %v2288 = vunpack.c.l.b16 %v476
        %v2289 = vunpack.c.h.b16 %v476
        %v2290 = vunpack.c.l.b16 %v477
        %v2291 = vunpack.c.h.b16 %v477
        %v2292 = vunpack.c.l.b16 %v478
        %v2293 = vunpack.c.h.b16 %v478
        %v2294 = vunpack.c.l.b16 %v479
        %v2295 = vunpack.c.h.b16 %v479
        %v2296 = vunpack.c.l.b16 %v480
        %v2297 = vunpack.c.h.b16 %v480
        %v2298 = vunpack.c.l.b16 %v481
        %v2299 = vunpack.c.h.b16 %v481
        %v2300 = vunpack.c.l.b16 %v482
        %v2301 = vunpack.c.h.b16 %v482
        %v2302 = vunpack.c.l.b16 %v483
        %v2303 = vunpack.c.h.b16 %v483
        %v2304 = vunpack.c.l.b16 %v484
        %v2305 = vunpack.c.h.b16 %v484
        %v2306 = vunpack.c.l.b16 %v485
        %v2307 = vunpack.c.h.b16 %v485
        %v2308 = vunpack.c.l.b16 %v486
        %v2309 = vunpack.c.h.b16 %v486
        %v2310 = vunpack.c.l.b16 %v487
        %v2311 = vunpack.c.h.b16 %v487
        %v2312 = vunpack.c.l.b16 %v488
        %v2313 = vunpack.c.h.b16 %v488
        %v2314 = vunpack.c.l.b16 %v489
        %v2315 = vunpack.c.h.b16 %v489
        %v2316 = vunpack.c.l.b16 %v490
        %v2317 = vunpack.c.h.b16 %v490
        %v2318 = vunpack.c.l.b16 %v491
        %v2319 = vunpack.c.h.b16 %v491
        %v2320 = vunpack.c.l.b16 %v492
        %v2321 = vunpack.c.h.b16 %v492
        %v2322 = vunpack.c.l.b16 %v493
        %v2323 = vunpack.c.h.b16 %v493
        %v2324 = vunpack.c.l.b16 %v494
        %v2325 = vunpack.c.h.b16 %v494
        %v2326 = vunpack.c.l.b16 %v495
        %v2327 = vunpack.c.h.b16 %v495
        %v2328 = vunpack.c.l.b16 %v496
        %v2329 = vunpack.c.h.b16 %v496
        %v2330 = vunpack.c.l.b16 %v497
        %v2331 = vunpack.c.h.b16 %v497
        %v2332 = vunpack.c.l.b16 %v498
        %v2333 = vunpack.c.h.b16 %v498
        %v2334 = vunpack.c.l.b16 %v499
        %v2335 = vunpack.c.h.b16 %v499
        %v2336 = vunpack.c.l.b16 %v500
        %v2337 = vunpack.c.h.b16 %v500
        %v2338 = vunpack.c.l.b16 %v501
        %v2339 = vunpack.c.h.b16 %v501
        %v2340 = vunpack.c.l.b16 %v502
        %v2341 = vunpack.c.h.b16 %v502
        %v2342 = vunpack.c.l.b16 %v503
        %v2343 = vunpack.c.h.b16 %v503
        %v2344 = vunpack.c.l.b16 %v504
        %v2345 = vunpack.c.h.b16 %v504
        %v2346 = vunpack.c.l.b16 %v505
        %v2347 = vunpack.c.h.b16 %v505
        %v2348 = vunpack.c.l.b16 %v506
        %v2349 = vunpack.c.h.b16 %v506
        %v2350 = vunpack.c.l.b16 %v507
        %v2351 = vunpack.c.h.b16 %v507
        %v2352 = vunpack.c.l.b16 %v508
        %v2353 = vunpack.c.h.b16 %v508
        %v2354 = vunpack.c.l.b16 %v509
        %v2355 = vunpack.c.h.b16 %v509
        %v2356 = vunpack.c.l.b16 %v510
        %v2357 = vunpack.c.h.b16 %v510
        %v2358 = vunpack.c.l.b16 %v511
        %v2359 = vunpack.c.h.b16 %v511
        %v2360 = vunpack.c.l.b16 %v512
        %v2361 = vunpack.c.h.b16 %v512
        %v2362 = vunpack.c.l.b16 %v513
        %v2363 = vunpack.c.h.b16 %v513
        %v2364 = vunpack.c.l.b16 %v514
        %v2365 = vunpack.c.h.b16 %v514
        %v2366 = vunpack.c.l.b16 %v515
        %v2367 = vunpack.c.h.b16 %v515
        %v2368 = vunpack.c.l.b16 %v516
        %v2369 = vunpack.c.h.b16 %v516
        %v2370 = vunpack.c.l.b16 %v517
        %v2371 = vunpack.c.h.b16 %v517
        %v2372 = vunpack.c.l.b16 %v518
        %v2373 = vunpack.c.h.b16 %v518
        %v2374 = vunpack.c.l.b16 %v519
        %v2375 = vunpack.c.h.b16 %v519
        %v2376 = vunpack.c.l.b16 %v520
        %v2377 = vunpack.c.h.b16 %v520
        %v2378 = vunpack.c.l.b16 %v521
        %v2379 = vunpack.c.h.b16 %v521
        %v2380 = vunpack.c.l.b16 %v522
        %v2381 = vunpack.c.h.b16 %v522
        %v2382 = vunpack.c.l.b16 %v523
        %v2383 = vunpack.c.h.b16 %v523
        %v2384 = vunpack.c.l.b16 %v524
        %v2385 = vunpack.c.h.b16 %v524
        %v2386 = vunpack.c.l.b16 %v525
        %v2387 = vunpack.c.h.b16 %v525
        %v2388 = vunpack.c.l.b16 %v526
        %v2389 = vunpack.c.h.b16 %v526
        %v2390 = vunpack.c.l.b16 %v527
        %v2391 = vunpack.c.h.b16 %v527
        %v2392 = vunpack.c.l.b16 %v528
        %v2393 = vunpack.c.h.b16 %v528
        %v2394 = vunpack.c.l.b16 %v529
        %v2395 = vunpack.c.h.b16 %v529
        %v2396 = vunpack.c.l.b16 %v530
        %v2397 = vunpack.c.h.b16 %v530
        %v2398 = vunpack.c.l.b16 %v531
        %v2399 = vunpack.c.h.b16 %v531
        %v2400 = vunpack.c.l.b16 %v532
        %v2401 = vunpack.c.h.b16 %v532
        %v2402 = vunpack.c.l.b16 %v533
        %v2403 = vunpack.c.h.b16 %v533
        %v2404 = vunpack.c.l.b16 %v534
        %v2405 = vunpack.c.h.b16 %v534
        %v2406 = vunpack.c.l.b16 %v535
        %v2407 = vunpack.c.h.b16 %v535
        %v2408 = vunpack.c.l.b16 %v536
        %v2409 = vunpack.c.h.b16 %v536
        %v2410 = vunpack.c.l.b16 %v537
        %v2411 = vunpack.c.h.b16 %v537
        %v2412 = vunpack.c.l.b16 %v538
        %v2413 = vunpack.c.h.b16 %v538
        %v2414 = vunpack.c.l.b16 %v539
        %v2415 = vunpack.c.h.b16 %v539
        %v2416 = vunpack.c.l.b16 %v540
        %v2417 = vunpack.c.h.b16 %v540
        %v2418 = vunpack.c.l.b16 %v541
        %v2419 = vunpack.c.h.b16 %v541
        %v2420 = vunpack.c.l.b16 %v542
        %v2421 = vunpack.c.h.b16 %v542
        %v2422 = vunpack.c.l.b16 %v543
        %v2423 = vunpack.c.h.b16 %v543
        %v2424 = vunpack.c.l.b16 %v544
        %v2425 = vunpack.c.h.b16 %v544
        %v2426 = vunpack.c.l.b16 %v545
        %v2427 = vunpack.c.h.b16 %v545
        %v2428 = vunpack.c.l.b16 %v546
        %v2429 = vunpack.c.h.b16 %v546
        %v2430 = vunpack.c.l.b16 %v547
        %v2431 = vunpack.c.h.b16 %v547
        %v2432 = vunpack.c.l.b16 %v548
        %v2433 = vunpack.c.h.b16 %v548
        %v2434 = vunpack.c.l.b16 %v549
        %v2435 = vunpack.c.h.b16 %v549
        %v2436 = vunpack.c.l.b16 %v550
        %v2437 = vunpack.c.h.b16 %v550
        %v2438 = vunpack.c.l.b16 %v551
        %v2439 = vunpack.c.h.b16 %v551
        %v2440 = vunpack.c.l.b16 %v552
        %v2441 = vunpack.c.h.b16 %v552
        %v2442 = vunpack.c.l.b16 %v553
        %v2443 = vunpack.c.h.b16 %v553
        %v2444 = vunpack.c.l.b16 %v554
        %v2445 = vunpack.c.h.b16 %v554
        %v2446 = vunpack.c.l.b16 %v555
        %v2447 = vunpack.c.h.b16 %v555
        %v2448 = vunpack.c.l.b16 %v556
        %v2449 = vunpack.c.h.b16 %v556
        %v2450 = vunpack.c.l.b16 %v557
        %v2451 = vunpack.c.h.b16 %v557
        %v2452 = vunpack.c.l.b16 %v558
        %v2453 = vunpack.c.h.b16 %v558
        %v2454 = vunpack.c.l.b16 %v559
        %v2455 = vunpack.c.h.b16 %v559
        %v2456 = vunpack.c.l.b16 %v560
        %v2457 = vunpack.c.h.b16 %v560
        %v2458 = vunpack.c.l.b16 %v561
        %v2459 = vunpack.c.h.b16 %v561
        %v2460 = vunpack.c.l.b16 %v562
        %v2461 = vunpack.c.h.b16 %v562
        %v2462 = vunpack.c.l.b16 %v563
        %v2463 = vunpack.c.h.b16 %v563
        %v2464 = vunpack.c.l.b16 %v564
        %v2465 = vunpack.c.h.b16 %v564
        %v2466 = vunpack.c.l.b16 %v565
        %v2467 = vunpack.c.h.b16 %v565
        %v2468 = vunpack.c.l.b16 %v566
        %v2469 = vunpack.c.h.b16 %v566
        %v2470 = vunpack.c.l.b16 %v567
        %v2471 = vunpack.c.h.b16 %v567
        %v2472 = vunpack.c.l.b16 %v568
        %v2473 = vunpack.c.h.b16 %v568
        %v2474 = vunpack.c.l.b16 %v569
        %v2475 = vunpack.c.h.b16 %v569
        %v2476 = vunpack.c.l.b16 %v570
        %v2477 = vunpack.c.h.b16 %v570
        %v2478 = vunpack.c.l.b16 %v571
        %v2479 = vunpack.c.h.b16 %v571
        %v2480 = vunpack.c.l.b16 %v572
        %v2481 = vunpack.c.h.b16 %v572
        %v2482 = vunpack.c.l.b16 %v573
        %v2483 = vunpack.c.h.b16 %v573
        %v2484 = vunpack.c.l.b16 %v574
        %v2485 = vunpack.c.h.b16 %v574
        %v2486 = vunpack.c.l.b16 %v575
        %v2487 = vunpack.c.h.b16 %v575
        %v2488 = vunpack.c.l.b16 %v576
        %v2489 = vunpack.c.h.b16 %v576
        %v2490 = vunpack.c.l.b16 %v577
        %v2491 = vunpack.c.h.b16 %v577
        %v2492 = vunpack.c.l.b16 %v578
        %v2493 = vunpack.c.h.b16 %v578
        %v2494 = vunpack.c.l.b16 %v579
        %v2495 = vunpack.c.h.b16 %v579
        %v2496 = vunpack.c.l.b16 %v580
        %v2497 = vunpack.c.h.b16 %v580
        %v2498 = vunpack.c.l.b16 %v581
        %v2499 = vunpack.c.h.b16 %v581
        %v2500 = vunpack.c.l.b16 %v582
        %v2501 = vunpack.c.h.b16 %v582
        %v2502 = vunpack.c.l.b16 %v583
        %v2503 = vunpack.c.h.b16 %v583
        %v2504 = vunpack.c.l.b16 %v584
        %v2505 = vunpack.c.h.b16 %v584
        %v2506 = vunpack.c.l.b16 %v585
        %v2507 = vunpack.c.h.b16 %v585
        %v2508 = vunpack.c.l.b16 %v586
        %v2509 = vunpack.c.h.b16 %v586
        %v2510 = vunpack.c.l.b16 %v587
        %v2511 = vunpack.c.h.b16 %v587
        %v2512 = vunpack.c.l.b16 %v588
        %v2513 = vunpack.c.h.b16 %v588
        %v2514 = vunpack.c.l.b16 %v589
        %v2515 = vunpack.c.h.b16 %v589
        %v2516 = vunpack.c.l.b16 %v590
        %v2517 = vunpack.c.h.b16 %v590
        %v2518 = vunpack.c.l.b16 %v591
        %v2519 = vunpack.c.h.b16 %v591
        %v2520 = vunpack.c.l.b16 %v592
        %v2521 = vunpack.c.h.b16 %v592
        %v2522 = vunpack.c.l.b16 %v593
        %v2523 = vunpack.c.h.b16 %v593
        %v2524 = vunpack.c.l.b16 %v594
        %v2525 = vunpack.c.h.b16 %v594
        %v2526 = vunpack.c.l.b16 %v595
        %v2527 = vunpack.c.h.b16 %v595
        %v2528 = vunpack.c.l.b16 %v596
        %v2529 = vunpack.c.h.b16 %v596
        %v2530 = vunpack.c.l.b16 %v597
        %v2531 = vunpack.c.h.b16 %v597
        %v2532 = vunpack.c.l.b16 %v598
        %v2533 = vunpack.c.h.b16 %v598
        %v2534 = vunpack.c.l.b16 %v599
        %v2535 = vunpack.c.h.b16 %v599
        %v2536 = vunpack.c.l.b16 %v600
        %v2537 = vunpack.c.h.b16 %v600
        %v2538 = vunpack.c.l.b16 %v601
        %v2539 = vunpack.c.h.b16 %v601
        %v2540 = vunpack.c.l.b16 %v602
        %v2541 = vunpack.c.h.b16 %v602
        %v2542 = vunpack.c.l.b16 %v603
        %v2543 = vunpack.c.h.b16 %v603
        %v2544 = vunpack.c.l.b16 %v604
        %v2545 = vunpack.c.h.b16 %v604
        %v2546 = vunpack.c.l.b16 %v605
        %v2547 = vunpack.c.h.b16 %v605
        %v2548 = vunpack.c.l.b16 %v606
        %v2549 = vunpack.c.h.b16 %v606
        %v2550 = vunpack.c.l.b16 %v607
        %v2551 = vunpack.c.h.b16 %v607
        %v2552 = vunpack.c.l.b16 %v608
        %v2553 = vunpack.c.h.b16 %v608
        %v2554 = vunpack.c.l.b16 %v609
        %v2555 = vunpack.c.h.b16 %v609
        %v2556 = vunpack.c.l.b16 %v610
        %v2557 = vunpack.c.h.b16 %v610
        %v2558 = vunpack.c.l.b16 %v611
        %v2559 = vunpack.c.h.b16 %v611
        %v2560 = vunpack.c.l.b16 %v612
        %v2561 = vunpack.c.h.b16 %v612
        %v2562 = vunpack.c.l.b16 %v613
        %v2563 = vunpack.c.h.b16 %v613
        %v2564 = vunpack.c.l.b16 %v614
        %v2565 = vunpack.c.h.b16 %v614
        %v2566 = vunpack.c.l.b16 %v615
        %v2567 = vunpack.c.h.b16 %v615
        %v2568 = vunpack.c.l.b16 %v616
        %v2569 = vunpack.c.h.b16 %v616
        %v2570 = vunpack.c.l.b16 %v617
        %v2571 = vunpack.c.h.b16 %v617
        %v2572 = vunpack.c.l.b16 %v618
        %v2573 = vunpack.c.h.b16 %v618
        %v2574 = vunpack.c.l.b16 %v619
        %v2575 = vunpack.c.h.b16 %v619
        %v2576 = vunpack.c.l.b16 %v620
        %v2577 = vunpack.c.h.b16 %v620
        %v2578 = vunpack.c.l.b16 %v621
        %v2579 = vunpack.c.h.b16 %v621
        %v2580 = vunpack.c.l.b16 %v622
        %v2581 = vunpack.c.h.b16 %v622
        %v2582 = vunpack.c.l.b16 %v623
        %v2583 = vunpack.c.h.b16 %v623
        %v2584 = vunpack.c.l.b16 %v624
        %v2585 = vunpack.c.h.b16 %v624
        %v2586 = vunpack.c.l.b16 %v625
        %v2587 = vunpack.c.h.b16 %v625
        %v2588 = vunpack.c.l.b16 %v626
        %v2589 = vunpack.c.h.b16 %v626
        %v2590 = vunpack.c.l.b16 %v627
        %v2591 = vunpack.c.h.b16 %v627
        %v2592 = vunpack.c.l.b16 %v628
        %v2593 = vunpack.c.h.b16 %v628
        %v2594 = vunpack.c.l.b16 %v629
        %v2595 = vunpack.c.h.b16 %v629
        %v2596 = vunpack.c.l.b16 %v630
        %v2597 = vunpack.c.h.b16 %v630
        %v2598 = vunpack.c.l.b16 %v631
        %v2599 = vunpack.c.h.b16 %v631
        %v2600 = vunpack.c.l.b16 %v632
        %v2601 = vunpack.c.h.b16 %v632
        %v2602 = vunpack.c.l.b16 %v633
        %v2603 = vunpack.c.h.b16 %v633
        %v2604 = vunpack.c.l.b16 %v634
        %v2605 = vunpack.c.h.b16 %v634
        %v2606 = vunpack.c.l.b16 %v635
        %v2607 = vunpack.c.h.b16 %v635
        %v2608 = vunpack.c.l.b16 %v636
        %v2609 = vunpack.c.h.b16 %v636
        %v2610 = vunpack.c.l.b16 %v637
        %v2611 = vunpack.c.h.b16 %v637
        %v2612 = vunpack.c.l.b16 %v638
        %v2613 = vunpack.c.h.b16 %v638
        %v2614 = vunpack.c.l.b16 %v639
        %v2615 = vunpack.c.h.b16 %v639
        %v2616 = vunpack.c.l.b16 %v640
        %v2617 = vunpack.c.h.b16 %v640
        %v2618 = vunpack.c.l.b16 %v641
        %v2619 = vunpack.c.h.b16 %v641
        %v2620 = vunpack.c.l.b16 %v642
        %v2621 = vunpack.c.h.b16 %v642
        %v2622 = vunpack.c.l.b16 %v643
        %v2623 = vunpack.c.h.b16 %v643
        %v2624 = vunpack.c.l.b16 %v644
        %v2625 = vunpack.c.h.b16 %v644
        %v2626 = vunpack.c.l.b16 %v645
        %v2627 = vunpack.c.h.b16 %v645
        %v2628 = vunpack.c.l.b16 %v646
        %v2629 = vunpack.c.h.b16 %v646
        %v2630 = vunpack.c.l.b16 %v647
        %v2631 = vunpack.c.h.b16 %v647
        %v2632 = vunpack.c.l.b16 %v648
        %v2633 = vunpack.c.h.b16 %v648
        %v2634 = vunpack.c.l.b16 %v649
        %v2635 = vunpack.c.h.b16 %v649
        %v2636 = vunpack.c.l.b16 %v650
        %v2637 = vunpack.c.h.b16 %v650
        %v2638 = vunpack.c.l.b16 %v651
        %v2639 = vunpack.c.h.b16 %v651
        %v2640 = vunpack.c.l.b16 %v652
        %v2641 = vunpack.c.h.b16 %v652
        %v2642 = vunpack.c.l.b16 %v653
        %v2643 = vunpack.c.h.b16 %v653
        %v2644 = vunpack.c.l.b16 %v654
        %v2645 = vunpack.c.h.b16 %v654
        %v2646 = vunpack.c.l.b16 %v655
        %v2647 = vunpack.c.h.b16 %v655
        %v2648 = vunpack.c.l.b16 %v656
        %v2649 = vunpack.c.h.b16 %v656
        %v2650 = vunpack.c.l.b16 %v657
        %v2651 = vunpack.c.h.b16 %v657
        %v2652 = vunpack.c.l.b16 %v658
        %v2653 = vunpack.c.h.b16 %v658
        %v2654 = vunpack.c.l.b16 %v659
        %v2655 = vunpack.c.h.b16 %v659
        %v2656 = vunpack.c.l.b16 %v660
        %v2657 = vunpack.c.h.b16 %v660
        %v2658 = vunpack.c.l.b16 %v661
        %v2659 = vunpack.c.h.b16 %v661
        %v2660 = vunpack.c.l.b16 %v662
        %v2661 = vunpack.c.h.b16 %v662
        %v2662 = vunpack.c.l.b16 %v663
        %v2663 = vunpack.c.h.b16 %v663
        %v2664 = vunpack.c.l.b16 %v664
        %v2665 = vunpack.c.h.b16 %v664
        %v2666 = vunpack.c.l.b16 %v665
        %v2667 = vunpack.c.h.b16 %v665
        %v2668 = vunpack.c.l.b16 %v666
        %v2669 = vunpack.c.h.b16 %v666
        %v2670 = vunpack.c.l.b16 %v667
        %v2671 = vunpack.c.h.b16 %v667
        %v2672 = vunpack.c.l.b16 %v668
        %v2673 = vunpack.c.h.b16 %v668
        %v2674 = vunpack.c.l.b16 %v669
        %v2675 = vunpack.c.h.b16 %v669
        %v2676 = vunpack.c.l.b16 %v670
        %v2677 = vunpack.c.h.b16 %v670
        %v2678 = vunpack.c.l.b16 %v671
        %v2679 = vunpack.c.h.b16 %v671
        %v2680 = vunpack.c.l.b16 %v672
        %v2681 = vunpack.c.h.b16 %v672
        %v2682 = vunpack.c.l.b16 %v673
        %v2683 = vunpack.c.h.b16 %v673
        %v2684 = vunpack.c.l.b16 %v674
        %v2685 = vunpack.c.h.b16 %v674
        %v2686 = vunpack.c.l.b16 %v675
        %v2687 = vunpack.c.h.b16 %v675
        %v2688 = vunpack.c.l.b16 %v676
        %v2689 = vunpack.c.h.b16 %v676
        %v2690 = vunpack.c.l.b16 %v677
        %v2691 = vunpack.c.h.b16 %v677
        %v2692 = vunpack.c.l.b16 %v678
        %v2693 = vunpack.c.h.b16 %v678
        %v2694 = vunpack.c.l.b16 %v679
        %v2695 = vunpack.c.h.b16 %v679
        %v2696 = vunpack.c.l.b16 %v680
        %v2697 = vunpack.c.h.b16 %v680
        %v2698 = vunpack.c.l.b16 %v681
        %v2699 = vunpack.c.h.b16 %v681
        %v2700 = vunpack.c.l.b16 %v682
        %v2701 = vunpack.c.h.b16 %v682
        %v2702 = vunpack.c.l.b16 %v683
        %v2703 = vunpack.c.h.b16 %v683
        %v2704 = vunpack.c.l.b16 %v684
        %v2705 = vunpack.c.h.b16 %v684
        %v2706 = vunpack.c.l.b16 %v685
        %v2707 = vunpack.c.h.b16 %v685
        %v2708 = vunpack.c.l.b16 %v686
        %v2709 = vunpack.c.h.b16 %v686
        %v2710 = vunpack.c.l.b16 %v687
        %v2711 = vunpack.c.h.b16 %v687
        %v2712 = vunpack.c.l.b16 %v688
        %v2713 = vunpack.c.h.b16 %v688
        %v2714 = vunpack.c.l.b16 %v689
        %v2715 = vunpack.c.h.b16 %v689
        %v2716 = vunpack.c.l.b16 %v690
        %v2717 = vunpack.c.h.b16 %v690
        %v2718 = vunpack.c.l.b16 %v691
        %v2719 = vunpack.c.h.b16 %v691
        %v2720 = vunpack.c.l.b16 %v692
        %v2721 = vunpack.c.h.b16 %v692
        %v2722 = vunpack.c.l.b16 %v693
        %v2723 = vunpack.c.h.b16 %v693
        %v2724 = vunpack.c.l.b16 %v694
        %v2725 = vunpack.c.h.b16 %v694
        %v2726 = vunpack.c.l.b16 %v695
        %v2727 = vunpack.c.h.b16 %v695
        %v2728 = vunpack.c.l.b16 %v696
        %v2729 = vunpack.c.h.b16 %v696
        %v2730 = vunpack.c.l.b16 %v697
        %v2731 = vunpack.c.h.b16 %v697
        %v2732 = vunpack.c.l.b16 %v698
        %v2733 = vunpack.c.h.b16 %v698
        %v2734 = vunpack.c.l.b16 %v699
        %v2735 = vunpack.c.h.b16 %v699
        %v2736 = vunpack.c.l.b16 %v700
        %v2737 = vunpack.c.h.b16 %v700
        %v2738 = vunpack.c.l.b16 %v701
        %v2739 = vunpack.c.h.b16 %v701
        %v2740 = vunpack.c.l.b16 %v702
        %v2741 = vunpack.c.h.b16 %v702
        %v2742 = vunpack.c.l.b16 %v703
        %v2743 = vunpack.c.h.b16 %v703
        %v2744 = vunpack.c.l.b16 %v704
        %v2745 = vunpack.c.h.b16 %v704
        %v2746 = vunpack.c.l.b16 %v705
        %v2747 = vunpack.c.h.b16 %v705
        %v2748 = vunpack.c.l.b16 %v706
        %v2749 = vunpack.c.h.b16 %v706
        %v2750 = vunpack.c.l.b16 %v707
        %v2751 = vunpack.c.h.b16 %v707
        %v2752 = vunpack.c.l.b16 %v708
        %v2753 = vunpack.c.h.b16 %v708
        %v2754 = vunpack.c.l.b16 %v709
        %v2755 = vunpack.c.h.b16 %v709
        %v2756 = vunpack.c.l.b16 %v710
        %v2757 = vunpack.c.h.b16 %v710
        %v2758 = vunpack.c.l.b16 %v711
        %v2759 = vunpack.c.h.b16 %v711
        %v2760 = vunpack.c.l.b16 %v712
        %v2761 = vunpack.c.h.b16 %v712
        %v2762 = vunpack.c.l.b16 %v713
        %v2763 = vunpack.c.h.b16 %v713
        %v2764 = vunpack.c.l.b16 %v714
        %v2765 = vunpack.c.h.b16 %v714
        %v2766 = vunpack.c.l.b16 %v715
        %v2767 = vunpack.c.h.b16 %v715
        %v2768 = vunpack.c.l.b16 %v716
        %v2769 = vunpack.c.h.b16 %v716
        %v2770 = vunpack.c.l.b16 %v717
        %v2771 = vunpack.c.h.b16 %v717
        %v2772 = vunpack.c.l.b16 %v718
        %v2773 = vunpack.c.h.b16 %v718
        %v2774 = vunpack.c.l.b16 %v719
        %v2775 = vunpack.c.h.b16 %v719
        %v2776 = vunpack.c.l.b16 %v720
        %v2777 = vunpack.c.h.b16 %v720
        %v2778 = vunpack.c.l.b16 %v721
        %v2779 = vunpack.c.h.b16 %v721
        %v2780 = vunpack.c.l.b16 %v722
        %v2781 = vunpack.c.h.b16 %v722
        %v2782 = vunpack.c.l.b16 %v723
        %v2783 = vunpack.c.h.b16 %v723
        %v2784 = vunpack.c.l.b16 %v724
        %v2785 = vunpack.c.h.b16 %v724
        %v2786 = vunpack.c.l.b16 %v725
        %v2787 = vunpack.c.h.b16 %v725
        %v2788 = vunpack.c.l.b16 %v726
        %v2789 = vunpack.c.h.b16 %v726
        %v2790 = vunpack.c.l.b16 %v727
        %v2791 = vunpack.c.h.b16 %v727
        %v2792 = vunpack.c.l.b16 %v728
        %v2793 = vunpack.c.h.b16 %v728
        %v2794 = vunpack.c.l.b16 %v729
        %v2795 = vunpack.c.h.b16 %v729
        %v2796 = vunpack.c.l.b16 %v730
        %v2797 = vunpack.c.h.b16 %v730
        %v2798 = vunpack.c.l.b16 %v731
        %v2799 = vunpack.c.h.b16 %v731
        %v2800 = vunpack.c.l.b16 %v732
        %v2801 = vunpack.c.h.b16 %v732
        %v2802 = vunpack.c.l.b16 %v733
        %v2803 = vunpack.c.h.b16 %v733
        %v2804 = vunpack.c.l.b16 %v734
        %v2805 = vunpack.c.h.b16 %v734
        %v2806 = vunpack.c.l.b16 %v735
        %v2807 = vunpack.c.h.b16 %v735
        %v2808 = vunpack.c.l.b16 %v736
        %v2809 = vunpack.c.h.b16 %v736
        %v2810 = vunpack.c.l.b16 %v737
        %v2811 = vunpack.c.h.b16 %v737
        %v2812 = vunpack.c.l.b16 %v738
        %v2813 = vunpack.c.h.b16 %v738
        %v2814 = vunpack.c.l.b16 %v739
        %v2815 = vunpack.c.h.b16 %v739
        %v2816 = vunpack.c.l.b16 %v740
        %v2817 = vunpack.c.h.b16 %v740
        %v2818 = vunpack.c.l.b16 %v741
        %v2819 = vunpack.c.h.b16 %v741
        %v2820 = vunpack.c.l.b16 %v742
        %v2821 = vunpack.c.h.b16 %v742
        %v2822 = vunpack.c.l.b16 %v743
        %v2823 = vunpack.c.h.b16 %v743
        %v2824 = vunpack.c.l.b16 %v744
        %v2825 = vunpack.c.h.b16 %v744
        %v2826 = vunpack.c.l.b16 %v745
        %v2827 = vunpack.c.h.b16 %v745
        %v2828 = vunpack.c.l.b16 %v746
        %v2829 = vunpack.c.h.b16 %v746
        %v2830 = vunpack.c.l.b16 %v747
        %v2831 = vunpack.c.h.b16 %v747
        %v2832 = vunpack.c.l.b16 %v748
        %v2833 = vunpack.c.h.b16 %v748
        %v2834 = vunpack.c.l.b16 %v749
        %v2835 = vunpack.c.h.b16 %v749
        %v2836 = vunpack.c.l.b16 %v750
        %v2837 = vunpack.c.h.b16 %v750
        %v2838 = vunpack.c.l.b16 %v751
        %v2839 = vunpack.c.h.b16 %v751
        %v2840 = vunpack.c.l.b16 %v752
        %v2841 = vunpack.c.h.b16 %v752
        %v2842 = vunpack.c.l.b16 %v753
        %v2843 = vunpack.c.h.b16 %v753
        %v2844 = vunpack.c.l.b16 %v754
        %v2845 = vunpack.c.h.b16 %v754
        %v2846 = vunpack.c.l.b16 %v755
        %v2847 = vunpack.c.h.b16 %v755
        %v2848 = vunpack.c.l.b16 %v756
        %v2849 = vunpack.c.h.b16 %v756
        %v2850 = vunpack.c.l.b16 %v757
        %v2851 = vunpack.c.h.b16 %v757
        %v2852 = vunpack.c.l.b16 %v758
        %v2853 = vunpack.c.h.b16 %v758
        %v2854 = vunpack.c.l.b16 %v759
        %v2855 = vunpack.c.h.b16 %v759
        %v2856 = vunpack.c.l.b16 %v760
        %v2857 = vunpack.c.h.b16 %v760
        %v2858 = vunpack.c.l.b16 %v761
        %v2859 = vunpack.c.h.b16 %v761
        %v2860 = vunpack.c.l.b16 %v762
        %v2861 = vunpack.c.h.b16 %v762
        %v2862 = vunpack.c.l.b16 %v763
        %v2863 = vunpack.c.h.b16 %v763
        %v2864 = vunpack.c.l.b16 %v764
        %v2865 = vunpack.c.h.b16 %v764
        %v2866 = vunpack.c.l.b16 %v765
        %v2867 = vunpack.c.h.b16 %v765
        %v2868 = vunpack.c.l.b16 %v766
        %v2869 = vunpack.c.h.b16 %v766
        %v2870 = vunpack.c.l.b16 %v767
        %v2871 = vunpack.c.h.b16 %v767
        %v2872 = vunpack.c.l.b16 %v768
        %v2873 = vunpack.c.h.b16 %v768
        %v2874 = vunpack.c.l.b16 %v769
        %v2875 = vunpack.c.h.b16 %v769
        %v2876 = vunpack.c.l.b16 %v770
        %v2877 = vunpack.c.h.b16 %v770
        %v2878 = vunpack.c.l.b16 %v771
        %v2879 = vunpack.c.h.b16 %v771
        %v2880 = vunpack.c.l.b16 %v772
        %v2881 = vunpack.c.h.b16 %v772
        %v2882 = vunpack.c.l.b16 %v773
        %v2883 = vunpack.c.h.b16 %v773
        %v2884 = vunpack.c.l.b16 %v774
        %v2885 = vunpack.c.h.b16 %v774
        %v2886 = vunpack.c.l.b16 %v775
        %v2887 = vunpack.c.h.b16 %v775
        %v2888 = vunpack.c.l.b16 %v776
        %v2889 = vunpack.c.h.b16 %v776
        %v2890 = vunpack.c.l.b16 %v777
        %v2891 = vunpack.c.h.b16 %v777
        %v2892 = vunpack.c.l.b16 %v778
        %v2893 = vunpack.c.h.b16 %v778
        %v2894 = vunpack.c.l.b16 %v779
        %v2895 = vunpack.c.h.b16 %v779
        %v2896 = vunpack.c.l.b16 %v780
        %v2897 = vunpack.c.h.b16 %v780
        %v2898 = vunpack.c.l.b16 %v781
        %v2899 = vunpack.c.h.b16 %v781
        %v2900 = vunpack.c.l.b16 %v782
        %v2901 = vunpack.c.h.b16 %v782
        %v2902 = vunpack.c.l.b16 %v783
        %v2903 = vunpack.c.h.b16 %v783
        %v2904 = vunpack.c.l.b16 %v784
        %v2905 = vunpack.c.h.b16 %v784
        %v2906 = vunpack.c.l.b16 %v785
        %v2907 = vunpack.c.h.b16 %v785
        %v2908 = vunpack.c.l.b16 %v786
        %v2909 = vunpack.c.h.b16 %v786
        %v2910 = vunpack.c.l.b16 %v787
        %v2911 = vunpack.c.h.b16 %v787
        %v2912 = vunpack.c.l.b16 %v788
        %v2913 = vunpack.c.h.b16 %v788
        %v2914 = vunpack.c.l.b16 %v789
        %v2915 = vunpack.c.h.b16 %v789
        %v2916 = vunpack.c.l.b16 %v790
        %v2917 = vunpack.c.h.b16 %v790
        %v2918 = vunpack.c.l.b16 %v791
        %v2919 = vunpack.c.h.b16 %v791
        %v2920 = vunpack.c.l.b16 %v792
        %v2921 = vunpack.c.h.b16 %v792
        %v2922 = vunpack.c.l.b16 %v793
        %v2923 = vunpack.c.h.b16 %v793
        %v2924 = vunpack.c.l.b16 %v794
        %v2925 = vunpack.c.h.b16 %v794
        %v2926 = vunpack.c.l.b16 %v795
        %v2927 = vunpack.c.h.b16 %v795
        %v2928 = vunpack.c.l.b16 %v796
        %v2929 = vunpack.c.h.b16 %v796
        %v2930 = vunpack.c.l.b16 %v797
        %v2931 = vunpack.c.h.b16 %v797
        %v2932 = vunpack.c.l.b16 %v798
        %v2933 = vunpack.c.h.b16 %v798
        %v2934 = vunpack.c.l.b16 %v799
        %v2935 = vunpack.c.h.b16 %v799
        %v2936 = vunpack.c.l.b16 %v800
        %v2937 = vunpack.c.h.b16 %v800
        %v2938 = vunpack.c.l.b16 %v801
        %v2939 = vunpack.c.h.b16 %v801
        %v2940 = vunpack.c.l.b16 %v802
        %v2941 = vunpack.c.h.b16 %v802
        %v2942 = vunpack.c.l.b16 %v803
        %v2943 = vunpack.c.h.b16 %v803
        %v2944 = vunpack.c.l.b16 %v804
        %v2945 = vunpack.c.h.b16 %v804
        %v2946 = vunpack.c.l.b16 %v805
        %v2947 = vunpack.c.h.b16 %v805
        %v2948 = vunpack.c.l.b16 %v806
        %v2949 = vunpack.c.h.b16 %v806
        %v2950 = vunpack.c.l.b16 %v807
        %v2951 = vunpack.c.h.b16 %v807
        %v2952 = vunpack.c.l.b16 %v808
        %v2953 = vunpack.c.h.b16 %v808
        %v2954 = vunpack.c.l.b16 %v809
        %v2955 = vunpack.c.h.b16 %v809
        %v2956 = vunpack.c.l.b16 %v810
        %v2957 = vunpack.c.h.b16 %v810
        %v2958 = vunpack.c.l.b16 %v811
        %v2959 = vunpack.c.h.b16 %v811
        %v2960 = vunpack.c.l.b16 %v812
        %v2961 = vunpack.c.h.b16 %v812
        %v2962 = vunpack.c.l.b16 %v813
        %v2963 = vunpack.c.h.b16 %v813
        %v2964 = vunpack.c.l.b16 %v814
        %v2965 = vunpack.c.h.b16 %v814
        %v2966 = vunpack.c.l.b16 %v815
        %v2967 = vunpack.c.h.b16 %v815
        %v2968 = vunpack.c.l.b16 %v816
        %v2969 = vunpack.c.h.b16 %v816
        %v2970 = vunpack.c.l.b16 %v817
        %v2971 = vunpack.c.h.b16 %v817
        %v2972 = vunpack.c.l.b16 %v818
        %v2973 = vunpack.c.h.b16 %v818
        %v2974 = vunpack.c.l.b16 %v819
        %v2975 = vunpack.c.h.b16 %v819
        %v2976 = vunpack.c.l.b16 %v820
        %v2977 = vunpack.c.h.b16 %v820
        %v2978 = vunpack.c.l.b16 %v821
        %v2979 = vunpack.c.h.b16 %v821
        %v2980 = vunpack.c.l.b16 %v822
        %v2981 = vunpack.c.h.b16 %v822
        %v2982 = vunpack.c.l.b16 %v823
        %v2983 = vunpack.c.h.b16 %v823
        %v2984 = vunpack.c.l.b16 %v824
        %v2985 = vunpack.c.h.b16 %v824
        %v2986 = vunpack.c.l.b16 %v825
        %v2987 = vunpack.c.h.b16 %v825
        %v2988 = vunpack.c.l.b16 %v826
        %v2989 = vunpack.c.h.b16 %v826
        %v2990 = vunpack.c.l.b16 %v827
        %v2991 = vunpack.c.h.b16 %v827
        %v2992 = vunpack.c.l.b16 %v828
        %v2993 = vunpack.c.h.b16 %v828
        %v2994 = vunpack.c.l.b16 %v829
        %v2995 = vunpack.c.h.b16 %v829
        %v2996 = vunpack.c.l.b16 %v830
        %v2997 = vunpack.c.h.b16 %v830
        %v2998 = vunpack.c.l.b16 %v831
        %v2999 = vunpack.c.h.b16 %v831
        %v3000 = vunpack.c.l.b16 %v832
        %v3001 = vunpack.c.h.b16 %v832
        %v3002 = vunpack.c.l.b16 %v833
        %v3003 = vunpack.c.h.b16 %v833
        %v3004 = vunpack.c.l.b16 %v834
        %v3005 = vunpack.c.h.b16 %v834
        %v3006 = vunpack.c.l.b16 %v835
        %v3007 = vunpack.c.h.b16 %v835
        %v3008 = vunpack.c.l.b16 %v836
        %v3009 = vunpack.c.h.b16 %v836
        %v3010 = vunpack.c.l.b16 %v837
        %v3011 = vunpack.c.h.b16 %v837
        %v3012 = vunpack.c.l.b16 %v838
        %v3013 = vunpack.c.h.b16 %v838
        %v3014 = vunpack.c.l.b16 %v839
        %v3015 = vunpack.c.h.b16 %v839
        %v3016 = vunpack.c.l.b16 %v840
        %v3017 = vunpack.c.h.b16 %v840
        %v3018 = vunpack.c.l.b16 %v841
        %v3019 = vunpack.c.h.b16 %v841
        %v3020 = vunpack.c.l.b16 %v842
        %v3021 = vunpack.c.h.b16 %v842
        %v3022 = vunpack.c.l.b16 %v843
        %v3023 = vunpack.c.h.b16 %v843
        %v3024 = vunpack.c.l.b16 %v844
        %v3025 = vunpack.c.h.b16 %v844
        %v3026 = vunpack.c.l.b16 %v845
        %v3027 = vunpack.c.h.b16 %v845
        %v3028 = vunpack.c.l.b16 %v846
        %v3029 = vunpack.c.h.b16 %v846
        %v3030 = vunpack.c.l.b16 %v847
        %v3031 = vunpack.c.h.b16 %v847
        %v3032 = vunpack.c.l.b16 %v848
        %v3033 = vunpack.c.h.b16 %v848
        %v3034 = vunpack.c.l.b16 %v849
        %v3035 = vunpack.c.h.b16 %v849
        %v3036 = vunpack.c.l.b16 %v850
        %v3037 = vunpack.c.h.b16 %v850
        %v3038 = vunpack.c.l.b16 %v851
        %v3039 = vunpack.c.h.b16 %v851
        %v3040 = vunpack.c.l.b16 %v852
        %v3041 = vunpack.c.h.b16 %v852
        %v3042 = vunpack.c.l.b16 %v853
        %v3043 = vunpack.c.h.b16 %v853
        %v3044 = vunpack.c.l.b16 %v854
        %v3045 = vunpack.c.h.b16 %v854
        %v3046 = vunpack.c.l.b16 %v855
        %v3047 = vunpack.c.h.b16 %v855
        %v3048 = vunpack.c.l.b16 %v856
        %v3049 = vunpack.c.h.b16 %v856
        %v3050 = vunpack.c.l.b16 %v857
        %v3051 = vunpack.c.h.b16 %v857
        %v3052 = vunpack.c.l.b16 %v858
        %v3053 = vunpack.c.h.b16 %v858
        %v3054 = vunpack.c.l.b16 %v859
        %v3055 = vunpack.c.h.b16 %v859
        %v3056 = vunpack.c.l.b16 %v860
        %v3057 = vunpack.c.h.b16 %v860
        %v3058 = vunpack.c.l.b16 %v861
        %v3059 = vunpack.c.h.b16 %v861
        %v3060 = vunpack.c.l.b16 %v862
        %v3061 = vunpack.c.h.b16 %v862
        %v3062 = vunpack.c.l.b16 %v863
        %v3063 = vunpack.c.h.b16 %v863
        %v3064 = vunpack.c.l.b16 %v864
        %v3065 = vunpack.c.h.b16 %v864
        %v3066 = vunpack.c.l.b16 %v865
        %v3067 = vunpack.c.h.b16 %v865
        %v3068 = vunpack.c.l.b16 %v866
        %v3069 = vunpack.c.h.b16 %v866
        %v3070 = vunpack.c.l.b16 %v867
        %v3071 = vunpack.c.h.b16 %v867
        %v3072 = vunpack.c.l.b16 %v868
        %v3073 = vunpack.c.h.b16 %v868
        %v3074 = vunpack.c.l.b16 %v869
        %v3075 = vunpack.c.h.b16 %v869
        %v3076 = vunpack.c.l.b16 %v870
        %v3077 = vunpack.c.h.b16 %v870
        %v3078 = vunpack.c.l.b16 %v871
        %v3079 = vunpack.c.h.b16 %v871
        %v3080 = vunpack.c.l.b16 %v872
        %v3081 = vunpack.c.h.b16 %v872
        %v3082 = vunpack.c.l.b16 %v873
        %v3083 = vunpack.c.h.b16 %v873
        %v3084 = vunpack.c.l.b16 %v874
        %v3085 = vunpack.c.h.b16 %v874
        %v3086 = vunpack.c.l.b16 %v875
        %v3087 = vunpack.c.h.b16 %v875
        %v3088 = vunpack.c.l.b16 %v876
        %v3089 = vunpack.c.h.b16 %v876
        %v3090 = vunpack.c.l.b16 %v877
        %v3091 = vunpack.c.h.b16 %v877
        %v3092 = vunpack.c.l.b16 %v878
        %v3093 = vunpack.c.h.b16 %v878
        %v3094 = vunpack.c.l.b16 %v879
        %v3095 = vunpack.c.h.b16 %v879
        %v3096 = vunpack.c.l.b16 %v880
        %v3097 = vunpack.c.h.b16 %v880
        %v3098 = vunpack.c.l.b16 %v881
        %v3099 = vunpack.c.h.b16 %v881
        %v3100 = vunpack.c.l.b16 %v882
        %v3101 = vunpack.c.h.b16 %v882
        %v3102 = vunpack.c.l.b16 %v883
        %v3103 = vunpack.c.h.b16 %v883
        %v3104 = vunpack.c.l.b16 %v884
        %v3105 = vunpack.c.h.b16 %v884
        %v3106 = vunpack.c.l.b16 %v885
        %v3107 = vunpack.c.h.b16 %v885
        %v3108 = vunpack.c.l.b16 %v886
        %v3109 = vunpack.c.h.b16 %v886
        %v3110 = vunpack.c.l.b16 %v887
        %v3111 = vunpack.c.h.b16 %v887
        %v3112 = vunpack.c.l.b16 %v888
        %v3113 = vunpack.c.h.b16 %v888
        %v3114 = vunpack.c.l.b16 %v889
        %v3115 = vunpack.c.h.b16 %v889
        %v3116 = vunpack.c.l.b16 %v890
        %v3117 = vunpack.c.h.b16 %v890
        %v3118 = vunpack.c.l.b16 %v891
        %v3119 = vunpack.c.h.b16 %v891
        %v3120 = vunpack.c.l.b16 %v892
        %v3121 = vunpack.c.h.b16 %v892
        %v3122 = vunpack.c.l.b16 %v893
        %v3123 = vunpack.c.h.b16 %v893
        %v3124 = vunpack.c.l.b16 %v894
        %v3125 = vunpack.c.h.b16 %v894
        %v3126 = vunpack.c.l.b16 %v895
        %v3127 = vunpack.c.h.b16 %v895
        %v3128 = vunpack.c.l.b16 %v896
        %v3129 = vunpack.c.h.b16 %v896
        %v3130 = vunpack.c.l.b16 %v897
        %v3131 = vunpack.c.h.b16 %v897
        %v3132 = vunpack.c.l.b16 %v898
        %v3133 = vunpack.c.h.b16 %v898
        %v3134 = vunpack.c.l.b16 %v899
        %v3135 = vunpack.c.h.b16 %v899
        %v3136 = vunpack.c.l.b16 %v900
        %v3137 = vunpack.c.h.b16 %v900
        %v3138 = vunpack.c.l.b16 %v901
        %v3139 = vunpack.c.h.b16 %v901
        %v3140 = vunpack.c.l.b16 %v902
        %v3141 = vunpack.c.h.b16 %v902
        %v3142 = vunpack.c.l.b16 %v903
        %v3143 = vunpack.c.h.b16 %v903
        %v3144 = vunpack.c.l.b16 %v904
        %v3145 = vunpack.c.h.b16 %v904
        %v3146 = vunpack.c.l.b16 %v905
        %v3147 = vunpack.c.h.b16 %v905
        %v3148 = vunpack.c.l.b16 %v906
        %v3149 = vunpack.c.h.b16 %v906
        %v3150 = vunpack.c.l.b16 %v907
        %v3151 = vunpack.c.h.b16 %v907
        %v3152 = vunpack.c.l.b16 %v908
        %v3153 = vunpack.c.h.b16 %v908
        %v3154 = vunpack.c.l.b16 %v909
        %v3155 = vunpack.c.h.b16 %v909
        %v3156 = vunpack.c.l.b16 %v910
        %v3157 = vunpack.c.h.b16 %v910
        %v3158 = vunpack.c.l.b16 %v911
        %v3159 = vunpack.c.h.b16 %v911
        %v3160 = vunpack.c.l.b16 %v912
        %v3161 = vunpack.c.h.b16 %v912
        %v3162 = vunpack.c.l.b16 %v913
        %v3163 = vunpack.c.h.b16 %v913
        %v3164 = vunpack.c.l.b16 %v914
        %v3165 = vunpack.c.h.b16 %v914
        %v3166 = vunpack.c.l.b16 %v915
        %v3167 = vunpack.c.h.b16 %v915
        %v3168 = vunpack.c.l.b16 %v916
        %v3169 = vunpack.c.h.b16 %v916
        %v3170 = vunpack.c.l.b16 %v917
        %v3171 = vunpack.c.h.b16 %v917
        %v3172 = vunpack.c.l.b16 %v918
        %v3173 = vunpack.c.h.b16 %v918
        %v3174 = vunpack.c.l.b16 %v919
        %v3175 = vunpack.c.h.b16 %v919
        %v3176 = vunpack.c.l.b16 %v920
        %v3177 = vunpack.c.h.b16 %v920
        %v3178 = vunpack.c.l.b16 %v921
        %v3179 = vunpack.c.h.b16 %v921
        %v3180 = vunpack.c.l.b16 %v922
        %v3181 = vunpack.c.h.b16 %v922
        %v3182 = vunpack.c.l.b16 %v923
        %v3183 = vunpack.c.h.b16 %v923
        %v3184 = vunpack.c.l.b16 %v924
        %v3185 = vunpack.c.h.b16 %v924
        %v3186 = vunpack.c.l.b16 %v925
        %v3187 = vunpack.c.h.b16 %v925
        %v3188 = vunpack.c.l.b16 %v926
        %v3189 = vunpack.c.h.b16 %v926
        %v3190 = vunpack.c.l.b16 %v927
        %v3191 = vunpack.c.h.b16 %v927
        %v3192 = vunpack.c.l.b16 %v928
        %v3193 = vunpack.c.h.b16 %v928
        %v3194 = vunpack.c.l.b16 %v929
        %v3195 = vunpack.c.h.b16 %v929
        %v3196 = vunpack.c.l.b16 %v930
        %v3197 = vunpack.c.h.b16 %v930
        %v3198 = vunpack.c.l.b16 %v931
        %v3199 = vunpack.c.h.b16 %v931
        %v3200 = vunpack.c.l.b16 %v932
        %v3201 = vunpack.c.h.b16 %v932
        %v3202 = vunpack.c.l.b16 %v933
        %v3203 = vunpack.c.h.b16 %v933
        %v3204 = vunpack.c.l.b16 %v934
        %v3205 = vunpack.c.h.b16 %v934
        %v3206 = vunpack.c.l.b16 %v935
        %v3207 = vunpack.c.h.b16 %v935
        %v3208 = vunpack.c.l.b16 %v936
        %v3209 = vunpack.c.h.b16 %v936
        %v3210 = vunpack.c.l.b16 %v937
        %v3211 = vunpack.c.h.b16 %v937
        %v3212 = vunpack.c.l.b16 %v938
        %v3213 = vunpack.c.h.b16 %v938
        %v3214 = vunpack.c.l.b16 %v939
        %v3215 = vunpack.c.h.b16 %v939
        %v3216 = vunpack.c.l.b16 %v940
        %v3217 = vunpack.c.h.b16 %v940
        %v3218 = vunpack.c.l.b16 %v941
        %v3219 = vunpack.c.h.b16 %v941
        %v3220 = vunpack.c.l.b16 %v942
        %v3221 = vunpack.c.h.b16 %v942
        %v3222 = vunpack.c.l.b16 %v943
        %v3223 = vunpack.c.h.b16 %v943
        %v3224 = vunpack.c.l.b16 %v944
        %v3225 = vunpack.c.h.b16 %v944
        %v3226 = vunpack.c.l.b16 %v945
        %v3227 = vunpack.c.h.b16 %v945
        %v3228 = vunpack.c.l.b16 %v946
        %v3229 = vunpack.c.h.b16 %v946
        %v3230 = vunpack.c.l.b16 %v947
        %v3231 = vunpack.c.h.b16 %v947
        %v3232 = vunpack.c.l.b16 %v948
        %v3233 = vunpack.c.h.b16 %v948
        %v3234 = vunpack.c.l.b16 %v949
        %v3235 = vunpack.c.h.b16 %v949
        %v3236 = vunpack.c.l.b16 %v950
        %v3237 = vunpack.c.h.b16 %v950
        %v3238 = vunpack.c.l.b16 %v951
        %v3239 = vunpack.c.h.b16 %v951
        %v3240 = vunpack.c.l.b16 %v952
        %v3241 = vunpack.c.h.b16 %v952
        %v3242 = vunpack.c.l.b16 %v953
        %v3243 = vunpack.c.h.b16 %v953
        %v3244 = vunpack.c.l.b16 %v954
        %v3245 = vunpack.c.h.b16 %v954
        %v3246 = vunpack.c.l.b16 %v955
        %v3247 = vunpack.c.h.b16 %v955
        %v3248 = vunpack.c.l.b16 %v956
        %v3249 = vunpack.c.h.b16 %v956
        %v3250 = vunpack.c.l.b16 %v957
        %v3251 = vunpack.c.h.b16 %v957
        %v3252 = vunpack.c.l.b16 %v958
        %v3253 = vunpack.c.h.b16 %v958
        %v3254 = vunpack.c.l.b16 %v959
        %v3255 = vunpack.c.h.b16 %v959
        %v3256 = vunpack.c.l.b16 %v960
        %v3257 = vunpack.c.h.b16 %v960
        %v3258 = vunpack.c.l.b16 %v961
        %v3259 = vunpack.c.h.b16 %v961
        %v3260 = vunpack.c.l.b16 %v962
        %v3261 = vunpack.c.h.b16 %v962
        %v3262 = vunpack.c.l.b16 %v963
        %v3263 = vunpack.c.h.b16 %v963
        %v3264 = vunpack.c.l.b16 %v964
        %v3265 = vunpack.c.h.b16 %v964
        %v3266 = vunpack.c.l.b16 %v965
        %v3267 = vunpack.c.h.b16 %v965
        %v3268 = vunpack.c.l.b16 %v966
        %v3269 = vunpack.c.h.b16 %v966
        %v3270 = vunpack.c.l.b16 %v967
        %v3271 = vunpack.c.h.b16 %v967
        %v3272 = vunpack.c.l.b16 %v968
        %v3273 = vunpack.c.h.b16 %v968
        %v3274 = vunpack.c.l.b16 %v969
        %v3275 = vunpack.c.h.b16 %v969
        %v3276 = vunpack.c.l.b16 %v970
        %v3277 = vunpack.c.h.b16 %v970
        %v3278 = vunpack.c.l.b16 %v971
        %v3279 = vunpack.c.h.b16 %v971
        %v3280 = vunpack.c.l.b16 %v972
        %v3281 = vunpack.c.h.b16 %v972
        %v3282 = vunpack.c.l.b16 %v973
        %v3283 = vunpack.c.h.b16 %v973
        %v3284 = vunpack.c.l.b16 %v974
        %v3285 = vunpack.c.h.b16 %v974
        %v3286 = vunpack.c.l.b16 %v975
        %v3287 = vunpack.c.h.b16 %v975
        %v3288 = vunpack.c.l.b16 %v976
        %v3289 = vunpack.c.h.b16 %v976
        %v3290 = vunpack.c.l.b16 %v977
        %v3291 = vunpack.c.h.b16 %v977
        %v3292 = vunpack.c.l.b16 %v978
        %v3293 = vunpack.c.h.b16 %v978
        %v3294 = vunpack.c.l.b16 %v979
        %v3295 = vunpack.c.h.b16 %v979
        %v3296 = vunpack.c.l.b16 %v980
        %v3297 = vunpack.c.h.b16 %v980
        %v3298 = vunpack.c.l.b16 %v981
        %v3299 = vunpack.c.h.b16 %v981
        %v3300 = vunpack.c.l.b16 %v982
        %v3301 = vunpack.c.h.b16 %v982
        %v3302 = vunpack.c.l.b16 %v983
        %v3303 = vunpack.c.h.b16 %v983
        %v3304 = vunpack.c.l.b16 %v984
        %v3305 = vunpack.c.h.b16 %v984
        %v3306 = vunpack.c.l.b16 %v985
        %v3307 = vunpack.c.h.b16 %v985
        %v3308 = vunpack.c.l.b16 %v986
        %v3309 = vunpack.c.h.b16 %v986
        %v3310 = vunpack.c.l.b16 %v987
        %v3311 = vunpack.c.h.b16 %v987
        %v3312 = vunpack.c.l.b16 %v988
        %v3313 = vunpack.c.h.b16 %v988
        %v3314 = vunpack.c.l.b16 %v989
        %v3315 = vunpack.c.h.b16 %v989
        %v3316 = vunpack.c.l.b16 %v990
        %v3317 = vunpack.c.h.b16 %v990
        %v3318 = vunpack.c.l.b16 %v991
        %v3319 = vunpack.c.h.b16 %v991
        %v3320 = vunpack.c.l.b16 %v992
        %v3321 = vunpack.c.h.b16 %v992
        %v3322 = vunpack.c.l.b16 %v993
        %v3323 = vunpack.c.h.b16 %v993
        %v3324 = vunpack.c.l.b16 %v994
        %v3325 = vunpack.c.h.b16 %v994
        %v3326 = vunpack.c.l.b16 %v995
        %v3327 = vunpack.c.h.b16 %v995
        %v3328 = vunpack.c.l.b16 %v996
        %v3329 = vunpack.c.h.b16 %v996
        %v3330 = vunpack.c.l.b16 %v997
        %v3331 = vunpack.c.h.b16 %v997
        %v3332 = vunpack.c.l.b16 %v998
        %v3333 = vunpack.c.h.b16 %v998
        %v3334 = vunpack.c.l.b16 %v999
        %v3335 = vunpack.c.h.b16 %v999
        %v3336 = vunpack.c.l.b16 %v1000
        %v3337 = vunpack.c.h.b16 %v1000
        %v3338 = vunpack.c.l.b16 %v1001
        %v3339 = vunpack.c.h.b16 %v1001
        %v3340 = vunpack.c.l.b16 %v1002
        %v3341 = vunpack.c.h.b16 %v1002
        %v3342 = vunpack.c.l.b16 %v1003
        %v3343 = vunpack.c.h.b16 %v1003
        %v3344 = vunpack.c.l.b16 %v1004
        %v3345 = vunpack.c.h.b16 %v1004
        %v3346 = vunpack.c.l.b16 %v1005
        %v3347 = vunpack.c.h.b16 %v1005
        %v3348 = vunpack.c.l.b16 %v1006
        %v3349 = vunpack.c.h.b16 %v1006
        %v3350 = vunpack.c.l.b16 %v1007
        %v3351 = vunpack.c.h.b16 %v1007
        %v3352 = vunpack.c.l.b16 %v1008
        %v3353 = vunpack.c.h.b16 %v1008
        %v3354 = vunpack.c.l.b16 %v1009
        %v3355 = vunpack.c.h.b16 %v1009
        %v3356 = vunpack.c.l.b16 %v1010
        %v3357 = vunpack.c.h.b16 %v1010
        %v3358 = vunpack.c.l.b16 %v1011
        %v3359 = vunpack.c.h.b16 %v1011
        %v3360 = vunpack.c.l.b16 %v1012
        %v3361 = vunpack.c.h.b16 %v1012
        %v3362 = vunpack.c.l.b16 %v1013
        %v3363 = vunpack.c.h.b16 %v1013
        %v3364 = vunpack.c.l.b16 %v1014
        %v3365 = vunpack.c.h.b16 %v1014
        %v3366 = vunpack.c.l.b16 %v1015
        %v3367 = vunpack.c.h.b16 %v1015
        %v3368 = vunpack.c.l.b16 %v1016
        %v3369 = vunpack.c.h.b16 %v1016
        %v3370 = vunpack.c.l.b16 %v1017
        %v3371 = vunpack.c.h.b16 %v1017
        %v3372 = vunpack.c.l.b16 %v1018
        %v3373 = vunpack.c.h.b16 %v1018
        %v3374 = vunpack.c.l.b16 %v1019
        %v3375 = vunpack.c.h.b16 %v1019
        %v3376 = vunpack.c.l.b16 %v1020
        %v3377 = vunpack.c.h.b16 %v1020
        %v3378 = vunpack.c.l.b16 %v1021
        %v3379 = vunpack.c.h.b16 %v1021
        %v3380 = vunpack.c.l.b16 %v1022
        %v3381 = vunpack.c.h.b16 %v1022
        %v3382 = vunpack.c.l.b16 %v1023
        %v3383 = vunpack.c.h.b16 %v1023
        %v3384 = vunpack.c.l.b16 %v1024
        %v3385 = vunpack.c.h.b16 %v1024
        %v3386 = vunpack.c.l.b16 %v1025
        %v3387 = vunpack.c.h.b16 %v1025
        %v3388 = vunpack.c.l.b16 %v1026
        %v3389 = vunpack.c.h.b16 %v1026
        %v3390 = vunpack.c.l.b16 %v1027
        %v3391 = vunpack.c.h.b16 %v1027
        %v3392 = vunpack.c.l.b16 %v1028
        %v3393 = vunpack.c.h.b16 %v1028
        %v3394 = vunpack.c.l.b16 %v1029
        %v3395 = vunpack.c.h.b16 %v1029
        %v3396 = vunpack.c.l.b16 %v1030
        %v3397 = vunpack.c.h.b16 %v1030
        %v3398 = vunpack.c.l.b16 %v1031
        %v3399 = vunpack.c.h.b16 %v1031
        %v3400 = vpack.c.b16 %v1876, %v1864
        %v3401 = vpack.c.b16 %v1877, %v1865
        %v3402 = vpack.c.b16 %v1878, %v1866
        %v3403 = vpack.c.b16 %v1879, %v1867
        %v3404 = vpack.c.b16 %v1880, %v1868
        %v3405 = vpack.c.b16 %v1881, %v1869
        %v3406 = vpack.c.b16 %v1882, %v1870
        %v3407 = vpack.c.b16 %v1883, %v1871
        %v3408 = vpack.c.b16 %v1884, %v1872
        %v3409 = vpack.c.b16 %v1885, %v1873
        %v3410 = vpack.c.b16 %v1886, %v1874
        %v3411 = vpack.c.b16 %v1887, %v1875
        %v3412 = vpack.c.b16 %v1900, %v1888
        %v3413 = vpack.c.b16 %v1901, %v1889
        %v3414 = vpack.c.b16 %v1902, %v1890
        %v3415 = vpack.c.b16 %v1903, %v1891
        %v3416 = vpack.c.b16 %v1904, %v1892
        %v3417 = vpack.c.b16 %v1905, %v1893
        %v3418 = vpack.c.b16 %v1906, %v1894
        %v3419 = vpack.c.b16 %v1907, %v1895
        %v3420 = vpack.c.b16 %v1908, %v1896
        %v3421 = vpack.c.b16 %v1909, %v1897
        %v3422 = vpack.c.b16 %v1910, %v1898
        %v3423 = vpack.c.b16 %v1911, %v1899
        %v3424 = vpack.c.b16 %v1924, %v1912
        %v3425 = vpack.c.b16 %v1925, %v1913
        %v3426 = vpack.c.b16 %v1926, %v1914
        %v3427 = vpack.c.b16 %v1927, %v1915
        %v3428 = vpack.c.b16 %v1928, %v1916
        %v3429 = vpack.c.b16 %v1929, %v1917
        %v3430 = vpack.c.b16 %v1930, %v1918
        %v3431 = vpack.c.b16 %v1931, %v1919
        %v3432 = vpack.c.b16 %v1932, %v1920
        %v3433 = vpack.c.b16 %v1933, %v1921
        %v3434 = vpack.c.b16 %v1934, %v1922
        %v3435 = vpack.c.b16 %v1935, %v1923
        %v3436 = vpack.c.b16 %v1948, %v1936
        %v3437 = vpack.c.b16 %v1949, %v1937
        %v3438 = vpack.c.b16 %v1950, %v1938
        %v3439 = vpack.c.b16 %v1951, %v1939
        %v3440 = vpack.c.b16 %v1952, %v1940
        %v3441 = vpack.c.b16 %v1953, %v1941
        %v3442 = vpack.c.b16 %v1954, %v1942
        %v3443 = vpack.c.b16 %v1955, %v1943
        %v3444 = vpack.c.b16 %v1956, %v1944
        %v3445 = vpack.c.b16 %v1957, %v1945
        %v3446 = vpack.c.b16 %v1958, %v1946
        %v3447 = vpack.c.b16 %v1959, %v1947
        %v3448 = vpack.c.b16 %v1972, %v1960
        %v3449 = vpack.c.b16 %v1973, %v1961
        %v3450 = vpack.c.b16 %v1974, %v1962
        %v3451 = vpack.c.b16 %v1975, %v1963
        %v3452 = vpack.c.b16 %v1976, %v1964
        %v3453 = vpack.c.b16 %v1977, %v1965
        %v3454 = vpack.c.b16 %v1978, %v1966
        %v3455 = vpack.c.b16 %v1979, %v1967
        %v3456 = vpack.c.b16 %v1980, %v1968
        %v3457 = vpack.c.b16 %v1981, %v1969
        %v3458 = vpack.c.b16 %v1982, %v1970
        %v3459 = vpack.c.b16 %v1983, %v1971
        %v3460 = vpack.c.b16 %v1996, %v1984
        %v3461 = vpack.c.b16 %v1997, %v1985
        %v3462 = vpack.c.b16 %v1998, %v1986
        %v3463 = vpack.c.b16 %v1999, %v1987
        %v3464 = vpack.c.b16 %v2000, %v1988
        %v3465 = vpack.c.b16 %v2001, %v1989
        %v3466 = vpack.c.b16 %v2002, %v1990
        %v3467 = vpack.c.b16 %v2003, %v1991
        %v3468 = vpack.c.b16 %v2004, %v1992
        %v3469 = vpack.c.b16 %v2005, %v1993
        %v3470 = vpack.c.b16 %v2006, %v1994
        %v3471 = vpack.c.b16 %v2007, %v1995
        %v3472 = vpack.c.b16 %v2020, %v2008
        %v3473 = vpack.c.b16 %v2021, %v2009
        %v3474 = vpack.c.b16 %v2022, %v2010
        %v3475 = vpack.c.b16 %v2023, %v2011
        %v3476 = vpack.c.b16 %v2024, %v2012
        %v3477 = vpack.c.b16 %v2025, %v2013
        %v3478 = vpack.c.b16 %v2026, %v2014
        %v3479 = vpack.c.b16 %v2027, %v2015
        %v3480 = vpack.c.b16 %v2028, %v2016
        %v3481 = vpack.c.b16 %v2029, %v2017
        %v3482 = vpack.c.b16 %v2030, %v2018
        %v3483 = vpack.c.b16 %v2031, %v2019
        %v3484 = vpack.c.b16 %v2044, %v2032
        %v3485 = vpack.c.b16 %v2045, %v2033
        %v3486 = vpack.c.b16 %v2046, %v2034
        %v3487 = vpack.c.b16 %v2047, %v2035
        %v3488 = vpack.c.b16 %v2048, %v2036
        %v3489 = vpack.c.b16 %v2049, %v2037
        %v3490 = vpack.c.b16 %v2050, %v2038
        %v3491 = vpack.c.b16 %v2051, %v2039
        %v3492 = vpack.c.b16 %v2052, %v2040
        %v3493 = vpack.c.b16 %v2053, %v2041
        %v3494 = vpack.c.b16 %v2054, %v2042
        %v3495 = vpack.c.b16 %v2055, %v2043
        %v3496 = vpack.c.b16 %v2068, %v2056
        %v3497 = vpack.c.b16 %v2069, %v2057
        %v3498 = vpack.c.b16 %v2070, %v2058
        %v3499 = vpack.c.b16 %v2071, %v2059
        %v3500 = vpack.c.b16 %v2072, %v2060
        %v3501 = vpack.c.b16 %v2073, %v2061
        %v3502 = vpack.c.b16 %v2074, %v2062
        %v3503 = vpack.c.b16 %v2075, %v2063
        %v3504 = vpack.c.b16 %v2076, %v2064
        %v3505 = vpack.c.b16 %v2077, %v2065
        %v3506 = vpack.c.b16 %v2078, %v2066
        %v3507 = vpack.c.b16 %v2079, %v2067
        %v3508 = vpack.c.b16 %v2092, %v2080
        %v3509 = vpack.c.b16 %v2093, %v2081
        %v3510 = vpack.c.b16 %v2094, %v2082
        %v3511 = vpack.c.b16 %v2095, %v2083
        %v3512 = vpack.c.b16 %v2096, %v2084
        %v3513 = vpack.c.b16 %v2097, %v2085
        %v3514 = vpack.c.b16 %v2098, %v2086
        %v3515 = vpack.c.b16 %v2099, %v2087
        %v3516 = vpack.c.b16 %v2100, %v2088
        %v3517 = vpack.c.b16 %v2101, %v2089
        %v3518 = vpack.c.b16 %v2102, %v2090
        %v3519 = vpack.c.b16 %v2103, %v2091
        %v3520 = vpack.c.b16 %v2116, %v2104
        %v3521 = vpack.c.b16 %v2117, %v2105
        %v3522 = vpack.c.b16 %v2118, %v2106
        %v3523 = vpack.c.b16 %v2119, %v2107
        %v3524 = vpack.c.b16 %v2120, %v2108
        %v3525 = vpack.c.b16 %v2121, %v2109
        %v3526 = vpack.c.b16 %v2122, %v2110
        %v3527 = vpack.c.b16 %v2123, %v2111
        %v3528 = vpack.c.b16 %v2124, %v2112
        %v3529 = vpack.c.b16 %v2125, %v2113
        %v3530 = vpack.c.b16 %v2126, %v2114
        %v3531 = vpack.c.b16 %v2127, %v2115
        %v3532 = vpack.c.b16 %v2140, %v2128
        %v3533 = vpack.c.b16 %v2141, %v2129
        %v3534 = vpack.c.b16 %v2142, %v2130
        %v3535 = vpack.c.b16 %v2143, %v2131
        %v3536 = vpack.c.b16 %v2144, %v2132
        %v3537 = vpack.c.b16 %v2145, %v2133
        %v3538 = vpack.c.b16 %v2146, %v2134
        %v3539 = vpack.c.b16 %v2147, %v2135
        %v3540 = vpack.c.b16 %v2148, %v2136
        %v3541 = vpack.c.b16 %v2149, %v2137
        %v3542 = vpack.c.b16 %v2150, %v2138
        %v3543 = vpack.c.b16 %v2151, %v2139
        %v3544 = vpack.c.b16 %v2164, %v2152
        %v3545 = vpack.c.b16 %v2165, %v2153
        %v3546 = vpack.c.b16 %v2166, %v2154
        %v3547 = vpack.c.b16 %v2167, %v2155
        %v3548 = vpack.c.b16 %v2168, %v2156
        %v3549 = vpack.c.b16 %v2169, %v2157
        %v3550 = vpack.c.b16 %v2170, %v2158
        %v3551 = vpack.c.b16 %v2171, %v2159
        %v3552 = vpack.c.b16 %v2172, %v2160
        %v3553 = vpack.c.b16 %v2173, %v2161
        %v3554 = vpack.c.b16 %v2174, %v2162
        %v3555 = vpack.c.b16 %v2175, %v2163
        %v3556 = vpack.c.b16 %v2188, %v2176
        %v3557 = vpack.c.b16 %v2189, %v2177
        %v3558 = vpack.c.b16 %v2190, %v2178
        %v3559 = vpack.c.b16 %v2191, %v2179
        %v3560 = vpack.c.b16 %v2192, %v2180
        %v3561 = vpack.c.b16 %v2193, %v2181
        %v3562 = vpack.c.b16 %v2194, %v2182
        %v3563 = vpack.c.b16 %v2195, %v2183
        %v3564 = vpack.c.b16 %v2196, %v2184
        %v3565 = vpack.c.b16 %v2197, %v2185
        %v3566 = vpack.c.b16 %v2198, %v2186
        %v3567 = vpack.c.b16 %v2199, %v2187
        %v3568 = vpack.c.b16 %v2212, %v2200
        %v3569 = vpack.c.b16 %v2213, %v2201
        %v3570 = vpack.c.b16 %v2214, %v2202
        %v3571 = vpack.c.b16 %v2215, %v2203
        %v3572 = vpack.c.b16 %v2216, %v2204
        %v3573 = vpack.c.b16 %v2217, %v2205
        %v3574 = vpack.c.b16 %v2218, %v2206
        %v3575 = vpack.c.b16 %v2219, %v2207
        %v3576 = vpack.c.b16 %v2220, %v2208
        %v3577 = vpack.c.b16 %v2221, %v2209
        %v3578 = vpack.c.b16 %v2222, %v2210
        %v3579 = vpack.c.b16 %v2223, %v2211
        %v3580 = vpack.c.b16 %v2236, %v2224
        %v3581 = vpack.c.b16 %v2237, %v2225
        %v3582 = vpack.c.b16 %v2238, %v2226
        %v3583 = vpack.c.b16 %v2239, %v2227
        %v3584 = vpack.c.b16 %v2240, %v2228
        %v3585 = vpack.c.b16 %v2241, %v2229
        %v3586 = vpack.c.b16 %v2242, %v2230
        %v3587 = vpack.c.b16 %v2243, %v2231
        %v3588 = vpack.c.b16 %v2244, %v2232
        %v3589 = vpack.c.b16 %v2245, %v2233
        %v3590 = vpack.c.b16 %v2246, %v2234
        %v3591 = vpack.c.b16 %v2247, %v2235
        %v3592 = vpack.c.b16 %v2260, %v2248
        %v3593 = vpack.c.b16 %v2261, %v2249
        %v3594 = vpack.c.b16 %v2262, %v2250
        %v3595 = vpack.c.b16 %v2263, %v2251
        %v3596 = vpack.c.b16 %v2264, %v2252
        %v3597 = vpack.c.b16 %v2265, %v2253
        %v3598 = vpack.c.b16 %v2266, %v2254
        %v3599 = vpack.c.b16 %v2267, %v2255
        %v3600 = vpack.c.b16 %v2268, %v2256
        %v3601 = vpack.c.b16 %v2269, %v2257
        %v3602 = vpack.c.b16 %v2270, %v2258
        %v3603 = vpack.c.b16 %v2271, %v2259
        %v3604 = vpack.c.b16 %v2284, %v2272
        %v3605 = vpack.c.b16 %v2285, %v2273
        %v3606 = vpack.c.b16 %v2286, %v2274
        %v3607 = vpack.c.b16 %v2287, %v2275
        %v3608 = vpack.c.b16 %v2288, %v2276
        %v3609 = vpack.c.b16 %v2289, %v2277
        %v3610 = vpack.c.b16 %v2290, %v2278
        %v3611 = vpack.c.b16 %v2291, %v2279
        %v3612 = vpack.c.b16 %v2292, %v2280
        %v3613 = vpack.c.b16 %v2293, %v2281
        %v3614 = vpack.c.b16 %v2294, %v2282
        %v3615 = vpack.c.b16 %v2295, %v2283
        %v3616 = vpack.c.b16 %v2308, %v2296
        %v3617 = vpack.c.b16 %v2309, %v2297
        %v3618 = vpack.c.b16 %v2310, %v2298
        %v3619 = vpack.c.b16 %v2311, %v2299
        %v3620 = vpack.c.b16 %v2312, %v2300
        %v3621 = vpack.c.b16 %v2313, %v2301
        %v3622 = vpack.c.b16 %v2314, %v2302
        %v3623 = vpack.c.b16 %v2315, %v2303
        %v3624 = vpack.c.b16 %v2316, %v2304
        %v3625 = vpack.c.b16 %v2317, %v2305
        %v3626 = vpack.c.b16 %v2318, %v2306
        %v3627 = vpack.c.b16 %v2319, %v2307
        %v3628 = vpack.c.b16 %v2332, %v2320
        %v3629 = vpack.c.b16 %v2333, %v2321
        %v3630 = vpack.c.b16 %v2334, %v2322
        %v3631 = vpack.c.b16 %v2335, %v2323
        %v3632 = vpack.c.b16 %v2336, %v2324
        %v3633 = vpack.c.b16 %v2337, %v2325
        %v3634 = vpack.c.b16 %v2338, %v2326
        %v3635 = vpack.c.b16 %v2339, %v2327
        %v3636 = vpack.c.b16 %v2340, %v2328
        %v3637 = vpack.c.b16 %v2341, %v2329
        %v3638 = vpack.c.b16 %v2342, %v2330
        %v3639 = vpack.c.b16 %v2343, %v2331
        %v3640 = vpack.c.b16 %v2356, %v2344
        %v3641 = vpack.c.b16 %v2357, %v2345
        %v3642 = vpack.c.b16 %v2358, %v2346
        %v3643 = vpack.c.b16 %v2359, %v2347
        %v3644 = vpack.c.b16 %v2360, %v2348
        %v3645 = vpack.c.b16 %v2361, %v2349
        %v3646 = vpack.c.b16 %v2362, %v2350
        %v3647 = vpack.c.b16 %v2363, %v2351
        %v3648 = vpack.c.b16 %v2364, %v2352
        %v3649 = vpack.c.b16 %v2365, %v2353
        %v3650 = vpack.c.b16 %v2366, %v2354
        %v3651 = vpack.c.b16 %v2367, %v2355
        %v3652 = vpack.c.b16 %v2380, %v2368
        %v3653 = vpack.c.b16 %v2381, %v2369
        %v3654 = vpack.c.b16 %v2382, %v2370
        %v3655 = vpack.c.b16 %v2383, %v2371
        %v3656 = vpack.c.b16 %v2384, %v2372
        %v3657 = vpack.c.b16 %v2385, %v2373
        %v3658 = vpack.c.b16 %v2386, %v2374
        %v3659 = vpack.c.b16 %v2387, %v2375
        %v3660 = vpack.c.b16 %v2388, %v2376
        %v3661 = vpack.c.b16 %v2389, %v2377
        %v3662 = vpack.c.b16 %v2390, %v2378
        %v3663 = vpack.c.b16 %v2391, %v2379
        %v3664 = vpack.c.b16 %v2404, %v2392
        %v3665 = vpack.c.b16 %v2405, %v2393
        %v3666 = vpack.c.b16 %v2406, %v2394
        %v3667 = vpack.c.b16 %v2407, %v2395
        %v3668 = vpack.c.b16 %v2408, %v2396
        %v3669 = vpack.c.b16 %v2409, %v2397
        %v3670 = vpack.c.b16 %v2410, %v2398
        %v3671 = vpack.c.b16 %v2411, %v2399
        %v3672 = vpack.c.b16 %v2412, %v2400
        %v3673 = vpack.c.b16 %v2413, %v2401
        %v3674 = vpack.c.b16 %v2414, %v2402
        %v3675 = vpack.c.b16 %v2415, %v2403
        %v3676 = vpack.c.b16 %v2428, %v2416
        %v3677 = vpack.c.b16 %v2429, %v2417
        %v3678 = vpack.c.b16 %v2430, %v2418
        %v3679 = vpack.c.b16 %v2431, %v2419
        %v3680 = vpack.c.b16 %v2432, %v2420
        %v3681 = vpack.c.b16 %v2433, %v2421
        %v3682 = vpack.c.b16 %v2434, %v2422
        %v3683 = vpack.c.b16 %v2435, %v2423
        %v3684 = vpack.c.b16 %v2436, %v2424
        %v3685 = vpack.c.b16 %v2437, %v2425
        %v3686 = vpack.c.b16 %v2438, %v2426
        %v3687 = vpack.c.b16 %v2439, %v2427
        %v3688 = vpack.c.b16 %v2452, %v2440
        %v3689 = vpack.c.b16 %v2453, %v2441
        %v3690 = vpack.c.b16 %v2454, %v2442
        %v3691 = vpack.c.b16 %v2455, %v2443
        %v3692 = vpack.c.b16 %v2456, %v2444
        %v3693 = vpack.c.b16 %v2457, %v2445
        %v3694 = vpack.c.b16 %v2458, %v2446
        %v3695 = vpack.c.b16 %v2459, %v2447
        %v3696 = vpack.c.b16 %v2460, %v2448
        %v3697 = vpack.c.b16 %v2461, %v2449
        %v3698 = vpack.c.b16 %v2462, %v2450
        %v3699 = vpack.c.b16 %v2463, %v2451
        %v3700 = vpack.c.b16 %v2476, %v2464
        %v3701 = vpack.c.b16 %v2477, %v2465
        %v3702 = vpack.c.b16 %v2478, %v2466
        %v3703 = vpack.c.b16 %v2479, %v2467
        %v3704 = vpack.c.b16 %v2480, %v2468
        %v3705 = vpack.c.b16 %v2481, %v2469
        %v3706 = vpack.c.b16 %v2482, %v2470
        %v3707 = vpack.c.b16 %v2483, %v2471
        %v3708 = vpack.c.b16 %v2484, %v2472
        %v3709 = vpack.c.b16 %v2485, %v2473
        %v3710 = vpack.c.b16 %v2486, %v2474
        %v3711 = vpack.c.b16 %v2487, %v2475
        %v3712 = vpack.c.b16 %v2500, %v2488
        %v3713 = vpack.c.b16 %v2501, %v2489
        %v3714 = vpack.c.b16 %v2502, %v2490
        %v3715 = vpack.c.b16 %v2503, %v2491
        %v3716 = vpack.c.b16 %v2504, %v2492
        %v3717 = vpack.c.b16 %v2505, %v2493
        %v3718 = vpack.c.b16 %v2506, %v2494
        %v3719 = vpack.c.b16 %v2507, %v2495
        %v3720 = vpack.c.b16 %v2508, %v2496
        %v3721 = vpack.c.b16 %v2509, %v2497
        %v3722 = vpack.c.b16 %v2510, %v2498
        %v3723 = vpack.c.b16 %v2511, %v2499
        %v3724 = vpack.c.b16 %v2524, %v2512
        %v3725 = vpack.c.b16 %v2525, %v2513
        %v3726 = vpack.c.b16 %v2526, %v2514
        %v3727 = vpack.c.b16 %v2527, %v2515
        %v3728 = vpack.c.b16 %v2528, %v2516
        %v3729 = vpack.c.b16 %v2529, %v2517
        %v3730 = vpack.c.b16 %v2530, %v2518
        %v3731 = vpack.c.b16 %v2531, %v2519
        %v3732 = vpack.c.b16 %v2532, %v2520
        %v3733 = vpack.c.b16 %v2533, %v2521
        %v3734 = vpack.c.b16 %v2534, %v2522
        %v3735 = vpack.c.b16 %v2535, %v2523
        %v3736 = vpack.c.b16 %v2548, %v2536
        %v3737 = vpack.c.b16 %v2549, %v2537
        %v3738 = vpack.c.b16 %v2550, %v2538
        %v3739 = vpack.c.b16 %v2551, %v2539
        %v3740 = vpack.c.b16 %v2552, %v2540
        %v3741 = vpack.c.b16 %v2553, %v2541
        %v3742 = vpack.c.b16 %v2554, %v2542
        %v3743 = vpack.c.b16 %v2555, %v2543
        %v3744 = vpack.c.b16 %v2556, %v2544
        %v3745 = vpack.c.b16 %v2557, %v2545
        %v3746 = vpack.c.b16 %v2558, %v2546
        %v3747 = vpack.c.b16 %v2559, %v2547
        %v3748 = vpack.c.b16 %v2572, %v2560
        %v3749 = vpack.c.b16 %v2573, %v2561
        %v3750 = vpack.c.b16 %v2574, %v2562
        %v3751 = vpack.c.b16 %v2575, %v2563
        %v3752 = vpack.c.b16 %v2576, %v2564
        %v3753 = vpack.c.b16 %v2577, %v2565
        %v3754 = vpack.c.b16 %v2578, %v2566
        %v3755 = vpack.c.b16 %v2579, %v2567
        %v3756 = vpack.c.b16 %v2580, %v2568
        %v3757 = vpack.c.b16 %v2581, %v2569
        %v3758 = vpack.c.b16 %v2582, %v2570
        %v3759 = vpack.c.b16 %v2583, %v2571
        %v3760 = vpack.c.b16 %v2596, %v2584
        %v3761 = vpack.c.b16 %v2597, %v2585
        %v3762 = vpack.c.b16 %v2598, %v2586
        %v3763 = vpack.c.b16 %v2599, %v2587
        %v3764 = vpack.c.b16 %v2600, %v2588
        %v3765 = vpack.c.b16 %v2601, %v2589
        %v3766 = vpack.c.b16 %v2602, %v2590
        %v3767 = vpack.c.b16 %v2603, %v2591
        %v3768 = vpack.c.b16 %v2604, %v2592
        %v3769 = vpack.c.b16 %v2605, %v2593
        %v3770 = vpack.c.b16 %v2606, %v2594
        %v3771 = vpack.c.b16 %v2607, %v2595
        %v3772 = vpack.c.b16 %v2620, %v2608
        %v3773 = vpack.c.b16 %v2621, %v2609
        %v3774 = vpack.c.b16 %v2622, %v2610
        %v3775 = vpack.c.b16 %v2623, %v2611
        %v3776 = vpack.c.b16 %v2624, %v2612
        %v3777 = vpack.c.b16 %v2625, %v2613
        %v3778 = vpack.c.b16 %v2626, %v2614
        %v3779 = vpack.c.b16 %v2627, %v2615
        %v3780 = vpack.c.b16 %v2628, %v2616
        %v3781 = vpack.c.b16 %v2629, %v2617
        %v3782 = vpack.c.b16 %v2630, %v2618
        %v3783 = vpack.c.b16 %v2631, %v2619
        %v3784 = vpack.c.b16 %v2644, %v2632
        %v3785 = vpack.c.b16 %v2645, %v2633
        %v3786 = vpack.c.b16 %v2646, %v2634
        %v3787 = vpack.c.b16 %v2647, %v2635
        %v3788 = vpack.c.b16 %v2648, %v2636
        %v3789 = vpack.c.b16 %v2649, %v2637
        %v3790 = vpack.c.b16 %v2650, %v2638
        %v3791 = vpack.c.b16 %v2651, %v2639
        %v3792 = vpack.c.b16 %v2652, %v2640
        %v3793 = vpack.c.b16 %v2653, %v2641
        %v3794 = vpack.c.b16 %v2654, %v2642
        %v3795 = vpack.c.b16 %v2655, %v2643
        %v3796 = vpack.c.b16 %v2668, %v2656
        %v3797 = vpack.c.b16 %v2669, %v2657
        %v3798 = vpack.c.b16 %v2670, %v2658
        %v3799 = vpack.c.b16 %v2671, %v2659
        %v3800 = vpack.c.b16 %v2672, %v2660
        %v3801 = vpack.c.b16 %v2673, %v2661
        %v3802 = vpack.c.b16 %v2674, %v2662
        %v3803 = vpack.c.b16 %v2675, %v2663
        %v3804 = vpack.c.b16 %v2676, %v2664
        %v3805 = vpack.c.b16 %v2677, %v2665
        %v3806 = vpack.c.b16 %v2678, %v2666
        %v3807 = vpack.c.b16 %v2679, %v2667
        %v3808 = vpack.c.b16 %v2692, %v2680
        %v3809 = vpack.c.b16 %v2693, %v2681
        %v3810 = vpack.c.b16 %v2694, %v2682
        %v3811 = vpack.c.b16 %v2695, %v2683
        %v3812 = vpack.c.b16 %v2696, %v2684
        %v3813 = vpack.c.b16 %v2697, %v2685
        %v3814 = vpack.c.b16 %v2698, %v2686
        %v3815 = vpack.c.b16 %v2699, %v2687
        %v3816 = vpack.c.b16 %v2700, %v2688
        %v3817 = vpack.c.b16 %v2701, %v2689
        %v3818 = vpack.c.b16 %v2702, %v2690
        %v3819 = vpack.c.b16 %v2703, %v2691
        %v3820 = vpack.c.b16 %v2716, %v2704
        %v3821 = vpack.c.b16 %v2717, %v2705
        %v3822 = vpack.c.b16 %v2718, %v2706
        %v3823 = vpack.c.b16 %v2719, %v2707
        %v3824 = vpack.c.b16 %v2720, %v2708
        %v3825 = vpack.c.b16 %v2721, %v2709
        %v3826 = vpack.c.b16 %v2722, %v2710
        %v3827 = vpack.c.b16 %v2723, %v2711
        %v3828 = vpack.c.b16 %v2724, %v2712
        %v3829 = vpack.c.b16 %v2725, %v2713
        %v3830 = vpack.c.b16 %v2726, %v2714
        %v3831 = vpack.c.b16 %v2727, %v2715
        %v3832 = vpack.c.b16 %v2740, %v2728
        %v3833 = vpack.c.b16 %v2741, %v2729
        %v3834 = vpack.c.b16 %v2742, %v2730
        %v3835 = vpack.c.b16 %v2743, %v2731
        %v3836 = vpack.c.b16 %v2744, %v2732
        %v3837 = vpack.c.b16 %v2745, %v2733
        %v3838 = vpack.c.b16 %v2746, %v2734
        %v3839 = vpack.c.b16 %v2747, %v2735
        %v3840 = vpack.c.b16 %v2748, %v2736
        %v3841 = vpack.c.b16 %v2749, %v2737
        %v3842 = vpack.c.b16 %v2750, %v2738
        %v3843 = vpack.c.b16 %v2751, %v2739
        %v3844 = vpack.c.b16 %v2764, %v2752
        %v3845 = vpack.c.b16 %v2765, %v2753
        %v3846 = vpack.c.b16 %v2766, %v2754
        %v3847 = vpack.c.b16 %v2767, %v2755
        %v3848 = vpack.c.b16 %v2768, %v2756
        %v3849 = vpack.c.b16 %v2769, %v2757
        %v3850 = vpack.c.b16 %v2770, %v2758
        %v3851 = vpack.c.b16 %v2771, %v2759
        %v3852 = vpack.c.b16 %v2772, %v2760
        %v3853 = vpack.c.b16 %v2773, %v2761
        %v3854 = vpack.c.b16 %v2774, %v2762
        %v3855 = vpack.c.b16 %v2775, %v2763
        %v3856 = vpack.c.b16 %v2788, %v2776
        %v3857 = vpack.c.b16 %v2789, %v2777
        %v3858 = vpack.c.b16 %v2790, %v2778
        %v3859 = vpack.c.b16 %v2791, %v2779
        %v3860 = vpack.c.b16 %v2792, %v2780
        %v3861 = vpack.c.b16 %v2793, %v2781
        %v3862 = vpack.c.b16 %v2794, %v2782
        %v3863 = vpack.c.b16 %v2795, %v2783
        %v3864 = vpack.c.b16 %v2796, %v2784
        %v3865 = vpack.c.b16 %v2797, %v2785
        %v3866 = vpack.c.b16 %v2798, %v2786
        %v3867 = vpack.c.b16 %v2799, %v2787
        %v3868 = vpack.c.b16 %v2812, %v2800
        %v3869 = vpack.c.b16 %v2813, %v2801
        %v3870 = vpack.c.b16 %v2814, %v2802
        %v3871 = vpack.c.b16 %v2815, %v2803
        %v3872 = vpack.c.b16 %v2816, %v2804
        %v3873 = vpack.c.b16 %v2817, %v2805
        %v3874 = vpack.c.b16 %v2818, %v2806
        %v3875 = vpack.c.b16 %v2819, %v2807
        %v3876 = vpack.c.b16 %v2820, %v2808
        %v3877 = vpack.c.b16 %v2821, %v2809
        %v3878 = vpack.c.b16 %v2822, %v2810
        %v3879 = vpack.c.b16 %v2823, %v2811
        %v3880 = vpack.c.b16 %v2836, %v2824
        %v3881 = vpack.c.b16 %v2837, %v2825
        %v3882 = vpack.c.b16 %v2838, %v2826
        %v3883 = vpack.c.b16 %v2839, %v2827
        %v3884 = vpack.c.b16 %v2840, %v2828
        %v3885 = vpack.c.b16 %v2841, %v2829
        %v3886 = vpack.c.b16 %v2842, %v2830
        %v3887 = vpack.c.b16 %v2843, %v2831
        %v3888 = vpack.c.b16 %v2844, %v2832
        %v3889 = vpack.c.b16 %v2845, %v2833
        %v3890 = vpack.c.b16 %v2846, %v2834
        %v3891 = vpack.c.b16 %v2847, %v2835
        %v3892 = vpack.c.b16 %v2860, %v2848
        %v3893 = vpack.c.b16 %v2861, %v2849
        %v3894 = vpack.c.b16 %v2862, %v2850
        %v3895 = vpack.c.b16 %v2863, %v2851
        %v3896 = vpack.c.b16 %v2864, %v2852
        %v3897 = vpack.c.b16 %v2865, %v2853
        %v3898 = vpack.c.b16 %v2866, %v2854
        %v3899 = vpack.c.b16 %v2867, %v2855
        %v3900 = vpack.c.b16 %v2868, %v2856
        %v3901 = vpack.c.b16 %v2869, %v2857
        %v3902 = vpack.c.b16 %v2870, %v2858
        %v3903 = vpack.c.b16 %v2871, %v2859
        %v3904 = vpack.c.b16 %v2884, %v2872
        %v3905 = vpack.c.b16 %v2885, %v2873
        %v3906 = vpack.c.b16 %v2886, %v2874
        %v3907 = vpack.c.b16 %v2887, %v2875
        %v3908 = vpack.c.b16 %v2888, %v2876
        %v3909 = vpack.c.b16 %v2889, %v2877
        %v3910 = vpack.c.b16 %v2890, %v2878
        %v3911 = vpack.c.b16 %v2891, %v2879
        %v3912 = vpack.c.b16 %v2892, %v2880
        %v3913 = vpack.c.b16 %v2893, %v2881
        %v3914 = vpack.c.b16 %v2894, %v2882
        %v3915 = vpack.c.b16 %v2895, %v2883
        %v3916 = vpack.c.b16 %v2908, %v2896
        %v3917 = vpack.c.b16 %v2909, %v2897
        %v3918 = vpack.c.b16 %v2910, %v2898
        %v3919 = vpack.c.b16 %v2911, %v2899
        %v3920 = vpack.c.b16 %v2912, %v2900
        %v3921 = vpack.c.b16 %v2913, %v2901
        %v3922 = vpack.c.b16 %v2914, %v2902
        %v3923 = vpack.c.b16 %v2915, %v2903
        %v3924 = vpack.c.b16 %v2916, %v2904
        %v3925 = vpack.c.b16 %v2917, %v2905
        %v3926 = vpack.c.b16 %v2918, %v2906
        %v3927 = vpack.c.b16 %v2919, %v2907
        %v3928 = vpack.c.b16 %v2932, %v2920
        %v3929 = vpack.c.b16 %v2933, %v2921
        %v3930 = vpack.c.b16 %v2934, %v2922
        %v3931 = vpack.c.b16 %v2935, %v2923
        %v3932 = vpack.c.b16 %v2936, %v2924
        %v3933 = vpack.c.b16 %v2937, %v2925
        %v3934 = vpack.c.b16 %v2938, %v2926
        %v3935 = vpack.c.b16 %v2939, %v2927
        %v3936 = vpack.c.b16 %v2940, %v2928
        %v3937 = vpack.c.b16 %v2941, %v2929
        %v3938 = vpack.c.b16 %v2942, %v2930
        %v3939 = vpack.c.b16 %v2943, %v2931
        %v3940 = vpack.c.b16 %v2956, %v2944
        %v3941 = vpack.c.b16 %v2957, %v2945
        %v3942 = vpack.c.b16 %v2958, %v2946
        %v3943 = vpack.c.b16 %v2959, %v2947
        %v3944 = vpack.c.b16 %v2960, %v2948
        %v3945 = vpack.c.b16 %v2961, %v2949
        %v3946 = vpack.c.b16 %v2962, %v2950
        %v3947 = vpack.c.b16 %v2963, %v2951
        %v3948 = vpack.c.b16 %v2964, %v2952
        %v3949 = vpack.c.b16 %v2965, %v2953
        %v3950 = vpack.c.b16 %v2966, %v2954
        %v3951 = vpack.c.b16 %v2967, %v2955
        %v3952 = vpack.c.b16 %v2980, %v2968
        %v3953 = vpack.c.b16 %v2981, %v2969
        %v3954 = vpack.c.b16 %v2982, %v2970
        %v3955 = vpack.c.b16 %v2983, %v2971
        %v3956 = vpack.c.b16 %v2984, %v2972
        %v3957 = vpack.c.b16 %v2985, %v2973
        %v3958 = vpack.c.b16 %v2986, %v2974
        %v3959 = vpack.c.b16 %v2987, %v2975
        %v3960 = vpack.c.b16 %v2988, %v2976
        %v3961 = vpack.c.b16 %v2989, %v2977
        %v3962 = vpack.c.b16 %v2990, %v2978
        %v3963 = vpack.c.b16 %v2991, %v2979
        %v3964 = vpack.c.b16 %v3004, %v2992
        %v3965 = vpack.c.b16 %v3005, %v2993
        %v3966 = vpack.c.b16 %v3006, %v2994
        %v3967 = vpack.c.b16 %v3007, %v2995
        %v3968 = vpack.c.b16 %v3008, %v2996
        %v3969 = vpack.c.b16 %v3009, %v2997
        %v3970 = vpack.c.b16 %v3010, %v2998
        %v3971 = vpack.c.b16 %v3011, %v2999
        %v3972 = vpack.c.b16 %v3012, %v3000
        %v3973 = vpack.c.b16 %v3013, %v3001
        %v3974 = vpack.c.b16 %v3014, %v3002
        %v3975 = vpack.c.b16 %v3015, %v3003
        %v3976 = vpack.c.b16 %v3028, %v3016
        %v3977 = vpack.c.b16 %v3029, %v3017
        %v3978 = vpack.c.b16 %v3030, %v3018
        %v3979 = vpack.c.b16 %v3031, %v3019
        %v3980 = vpack.c.b16 %v3032, %v3020
        %v3981 = vpack.c.b16 %v3033, %v3021
        %v3982 = vpack.c.b16 %v3034, %v3022
        %v3983 = vpack.c.b16 %v3035, %v3023
        %v3984 = vpack.c.b16 %v3036, %v3024
        %v3985 = vpack.c.b16 %v3037, %v3025
        %v3986 = vpack.c.b16 %v3038, %v3026
        %v3987 = vpack.c.b16 %v3039, %v3027
        %v3988 = vpack.c.b16 %v3052, %v3040
        %v3989 = vpack.c.b16 %v3053, %v3041
        %v3990 = vpack.c.b16 %v3054, %v3042
        %v3991 = vpack.c.b16 %v3055, %v3043
        %v3992 = vpack.c.b16 %v3056, %v3044
        %v3993 = vpack.c.b16 %v3057, %v3045
        %v3994 = vpack.c.b16 %v3058, %v3046
        %v3995 = vpack.c.b16 %v3059, %v3047
        %v3996 = vpack.c.b16 %v3060, %v3048
        %v3997 = vpack.c.b16 %v3061, %v3049
        %v3998 = vpack.c.b16 %v3062, %v3050
        %v3999 = vpack.c.b16 %v3063, %v3051
        %v4000 = vpack.c.b16 %v3076, %v3064
        %v4001 = vpack.c.b16 %v3077, %v3065
        %v4002 = vpack.c.b16 %v3078, %v3066
        %v4003 = vpack.c.b16 %v3079, %v3067
        %v4004 = vpack.c.b16 %v3080, %v3068
        %v4005 = vpack.c.b16 %v3081, %v3069
        %v4006 = vpack.c.b16 %v3082, %v3070
        %v4007 = vpack.c.b16 %v3083, %v3071
        %v4008 = vpack.c.b16 %v3084, %v3072
        %v4009 = vpack.c.b16 %v3085, %v3073
        %v4010 = vpack.c.b16 %v3086, %v3074
        %v4011 = vpack.c.b16 %v3087, %v3075
        %v4012 = vpack.c.b16 %v3100, %v3088
        %v4013 = vpack.c.b16 %v3101, %v3089
        %v4014 = vpack.c.b16 %v3102, %v3090
        %v4015 = vpack.c.b16 %v3103, %v3091
        %v4016 = vpack.c.b16 %v3104, %v3092
        %v4017 = vpack.c.b16 %v3105, %v3093
        %v4018 = vpack.c.b16 %v3106, %v3094
        %v4019 = vpack.c.b16 %v3107, %v3095
        %v4020 = vpack.c.b16 %v3108, %v3096
        %v4021 = vpack.c.b16 %v3109, %v3097
        %v4022 = vpack.c.b16 %v3110, %v3098
        %v4023 = vpack.c.b16 %v3111, %v3099
        %v4024 = vpack.c.b16 %v3124, %v3112
        %v4025 = vpack.c.b16 %v3125, %v3113
        %v4026 = vpack.c.b16 %v3126, %v3114
        %v4027 = vpack.c.b16 %v3127, %v3115
        %v4028 = vpack.c.b16 %v3128, %v3116
        %v4029 = vpack.c.b16 %v3129, %v3117
        %v4030 = vpack.c.b16 %v3130, %v3118
        %v4031 = vpack.c.b16 %v3131, %v3119
        %v4032 = vpack.c.b16 %v3132, %v3120
        %v4033 = vpack.c.b16 %v3133, %v3121
        %v4034 = vpack.c.b16 %v3134, %v3122
        %v4035 = vpack.c.b16 %v3135, %v3123
        %v4036 = vpack.c.b16 %v3148, %v3136
        %v4037 = vpack.c.b16 %v3149, %v3137
        %v4038 = vpack.c.b16 %v3150, %v3138
        %v4039 = vpack.c.b16 %v3151, %v3139
        %v4040 = vpack.c.b16 %v3152, %v3140
        %v4041 = vpack.c.b16 %v3153, %v3141
        %v4042 = vpack.c.b16 %v3154, %v3142
        %v4043 = vpack.c.b16 %v3155, %v3143
        %v4044 = vpack.c.b16 %v3156, %v3144
        %v4045 = vpack.c.b16 %v3157, %v3145
        %v4046 = vpack.c.b16 %v3158, %v3146
        %v4047 = vpack.c.b16 %v3159, %v3147
        %v4048 = vpack.c.b16 %v3172, %v3160
        %v4049 = vpack.c.b16 %v3173, %v3161
        %v4050 = vpack.c.b16 %v3174, %v3162
        %v4051 = vpack.c.b16 %v3175, %v3163
        %v4052 = vpack.c.b16 %v3176, %v3164
        %v4053 = vpack.c.b16 %v3177, %v3165
        %v4054 = vpack.c.b16 %v3178, %v3166
        %v4055 = vpack.c.b16 %v3179, %v3167
        %v4056 = vpack.c.b16 %v3180, %v3168
        %v4057 = vpack.c.b16 %v3181, %v3169
        %v4058 = vpack.c.b16 %v3182, %v3170
        %v4059 = vpack.c.b16 %v3183, %v3171
        %v4060 = vpack.c.b16 %v3196, %v3184
        %v4061 = vpack.c.b16 %v3197, %v3185
        %v4062 = vpack.c.b16 %v3198, %v3186
        %v4063 = vpack.c.b16 %v3199, %v3187
        %v4064 = vpack.c.b16 %v3200, %v3188
        %v4065 = vpack.c.b16 %v3201, %v3189
        %v4066 = vpack.c.b16 %v3202, %v3190
        %v4067 = vpack.c.b16 %v3203, %v3191
        %v4068 = vpack.c.b16 %v3204, %v3192
        %v4069 = vpack.c.b16 %v3205, %v3193
        %v4070 = vpack.c.b16 %v3206, %v3194
        %v4071 = vpack.c.b16 %v3207, %v3195
        %v4072 = vpack.c.b16 %v3220, %v3208
        %v4073 = vpack.c.b16 %v3221, %v3209
        %v4074 = vpack.c.b16 %v3222, %v3210
        %v4075 = vpack.c.b16 %v3223, %v3211
        %v4076 = vpack.c.b16 %v3224, %v3212
        %v4077 = vpack.c.b16 %v3225, %v3213
        %v4078 = vpack.c.b16 %v3226, %v3214
        %v4079 = vpack.c.b16 %v3227, %v3215
        %v4080 = vpack.c.b16 %v3228, %v3216
        %v4081 = vpack.c.b16 %v3229, %v3217
        %v4082 = vpack.c.b16 %v3230, %v3218
        %v4083 = vpack.c.b16 %v3231, %v3219
        %v4084 = vpack.c.b16 %v3244, %v3232
        %v4085 = vpack.c.b16 %v3245, %v3233
        %v4086 = vpack.c.b16 %v3246, %v3234
        %v4087 = vpack.c.b16 %v3247, %v3235
        %v4088 = vpack.c.b16 %v3248, %v3236
        %v4089 = vpack.c.b16 %v3249, %v3237
        %v4090 = vpack.c.b16 %v3250, %v3238
        %v4091 = vpack.c.b16 %v3251, %v3239
        %v4092 = vpack.c.b16 %v3252, %v3240
        %v4093 = vpack.c.b16 %v3253, %v3241
        %v4094 = vpack.c.b16 %v3254, %v3242
        %v4095 = vpack.c.b16 %v3255, %v3243
        %v4096 = vpack.c.b16 %v3268, %v3256
        %v4097 = vpack.c.b16 %v3269, %v3257
        %v4098 = vpack.c.b16 %v3270, %v3258
        %v4099 = vpack.c.b16 %v3271, %v3259
        %v4100 = vpack.c.b16 %v3272, %v3260
        %v4101 = vpack.c.b16 %v3273, %v3261
        %v4102 = vpack.c.b16 %v3274, %v3262
        %v4103 = vpack.c.b16 %v3275, %v3263
        %v4104 = vpack.c.b16 %v3276, %v3264
        %v4105 = vpack.c.b16 %v3277, %v3265
        %v4106 = vpack.c.b16 %v3278, %v3266
        %v4107 = vpack.c.b16 %v3279, %v3267
        %v4108 = vpack.c.b16 %v3292, %v3280
        %v4109 = vpack.c.b16 %v3293, %v3281
        %v4110 = vpack.c.b16 %v3294, %v3282
        %v4111 = vpack.c.b16 %v3295, %v3283
        %v4112 = vpack.c.b16 %v3296, %v3284
        %v4113 = vpack.c.b16 %v3297, %v3285
        %v4114 = vpack.c.b16 %v3298, %v3286
        %v4115 = vpack.c.b16 %v3299, %v3287
        %v4116 = vpack.c.b16 %v3300, %v3288
        %v4117 = vpack.c.b16 %v3301, %v3289
        %v4118 = vpack.c.b16 %v3302, %v3290
        %v4119 = vpack.c.b16 %v3303, %v3291
        %v4120 = vpack.c.b16 %v3316, %v3304
        %v4121 = vpack.c.b16 %v3317, %v3305
        %v4122 = vpack.c.b16 %v3318, %v3306
        %v4123 = vpack.c.b16 %v3319, %v3307
        %v4124 = vpack.c.b16 %v3320, %v3308
        %v4125 = vpack.c.b16 %v3321, %v3309
        %v4126 = vpack.c.b16 %v3322, %v3310
        %v4127 = vpack.c.b16 %v3323, %v3311
        %v4128 = vpack.c.b16 %v3324, %v3312
        %v4129 = vpack.c.b16 %v3325, %v3313
        %v4130 = vpack.c.b16 %v3326, %v3314
        %v4131 = vpack.c.b16 %v3327, %v3315
        %v4132 = vpack.c.b16 %v3340, %v3328
        %v4133 = vpack.c.b16 %v3341, %v3329
        %v4134 = vpack.c.b16 %v3342, %v3330
        %v4135 = vpack.c.b16 %v3343, %v3331
        %v4136 = vpack.c.b16 %v3344, %v3332
        %v4137 = vpack.c.b16 %v3345, %v3333
        %v4138 = vpack.c.b16 %v3346, %v3334
        %v4139 = vpack.c.b16 %v3347, %v3335
        %v4140 = vpack.c.b16 %v3348, %v3336
        %v4141 = vpack.c.b16 %v3349, %v3337
        %v4142 = vpack.c.b16 %v3350, %v3338
        %v4143 = vpack.c.b16 %v3351, %v3339
        %v4144 = vpack.c.b16 %v3364, %v3352
        %v4145 = vpack.c.b16 %v3365, %v3353
        %v4146 = vpack.c.b16 %v3366, %v3354
        %v4147 = vpack.c.b16 %v3367, %v3355
        %v4148 = vpack.c.b16 %v3368, %v3356
        %v4149 = vpack.c.b16 %v3369, %v3357
        %v4150 = vpack.c.b16 %v3370, %v3358
        %v4151 = vpack.c.b16 %v3371, %v3359
        %v4152 = vpack.c.b16 %v3372, %v3360
        %v4153 = vpack.c.b16 %v3373, %v3361
        %v4154 = vpack.c.b16 %v3374, %v3362
        %v4155 = vpack.c.b16 %v3375, %v3363
        %v4156 = vpack.c.b16 %v3388, %v3376
        %v4157 = vpack.c.b16 %v3389, %v3377
        %v4158 = vpack.c.b16 %v3390, %v3378
        %v4159 = vpack.c.b16 %v3391, %v3379
        %v4160 = vpack.c.b16 %v3392, %v3380
        %v4161 = vpack.c.b16 %v3393, %v3381
        %v4162 = vpack.c.b16 %v3394, %v3382
        %v4163 = vpack.c.b16 %v3395, %v3383
        %v4164 = vpack.c.b16 %v3396, %v3384
        %v4165 = vpack.c.b16 %v3397, %v3385
        %v4166 = vpack.c.b16 %v3398, %v3386
        %v4167 = vpack.c.b16 %v3399, %v3387
        %4936 = vmatprep.subr.bf16.mxu0 %v3401
        %4937 = vmatpush1.bf16.msra.mxu0 %v3400
        %4938 = vmatprep.subr.bf16.mxu0 %v3413
        %4939 = vmatpush1.bf16.msra.mxu0 %v3412
        %4940 = vmatprep.subr.bf16.mxu0 %v3425
        %4941 = vmatpush1.bf16.msra.mxu0 %v3424
        %4942 = vmatprep.subr.bf16.mxu0 %v3437
        %4943 = vmatpush1.bf16.msra.mxu0 %v3436
        %4944 = vmatprep.subr.bf16.mxu0 %v3449
        %4945 = vmatpush1.bf16.msra.mxu0 %v3448
        %4946 = vmatprep.subr.bf16.mxu0 %v3461
        %4947 = vmatpush1.bf16.msra.mxu0 %v3460
        %4948 = vmatprep.subr.bf16.mxu0 %v3473
        %4949 = vmatpush1.bf16.msra.mxu0 %v3472
        %4950 = vmatprep.subr.bf16.mxu0 %v3485
        %4951 = vmatpush1.bf16.msra.mxu0 %v3484
        %4952 = vmatprep.subr.bf16.mxu0 %v3497
        %4953 = vmatpush1.bf16.msra.mxu0 %v3496
        %4954 = vmatprep.subr.bf16.mxu0 %v3509
        %4955 = vmatpush1.bf16.msra.mxu0 %v3508
        %4956 = vmatprep.subr.bf16.mxu0 %v3521
        %4957 = vmatpush1.bf16.msra.mxu0 %v3520
        %4958 = vmatprep.subr.bf16.mxu0 %v3533
        %4959 = vmatpush1.bf16.msra.mxu0 %v3532
        %4960 = vmatprep.subr.bf16.mxu0 %v3545
        %4961 = vmatpush1.bf16.msra.mxu0 %v3544
        %4962 = vmatprep.subr.bf16.mxu0 %v3557
        %4963 = vmatpush1.bf16.msra.mxu0 %v3556
        %4964 = vmatprep.subr.bf16.mxu0 %v3569
        %4965 = vmatpush1.bf16.msra.mxu0 %v3568
        %4966 = vmatprep.subr.bf16.mxu0 %v3581
        %4967 = vmatpush1.bf16.msra.mxu0 %v3580
        %4968 = vmatprep.mubr.bf16.mxu0 %v257
        %4969 = vmatmul.mubr.bf16.gmra.mrb[0].mxu0 %v256
        %v4970 = vpop.f32.mrb[0].mxu0
        %v4971 = vadd.f32 %v1039, %v4970
        %v4972 = vpop.f32.mrb[0].mxu0
        %v4973 = vadd.f32 %v1043, %v4972
        %v4974 = vpop.f32.mrb[0].mxu0
        %v4975 = vpop.f32.mrb[0].mxu0
        %4976 = vdwg.mxu0
        %4977 = vmatprep.subr.bf16.mxu0 %v3593
        %4978 = vmatpush1.bf16.msra.mxu0 %v3592
        %4979 = vmatprep.subr.bf16.mxu0 %v3605
        %4980 = vmatpush1.bf16.msra.mxu0 %v3604
        %4981 = vmatprep.subr.bf16.mxu0 %v3617
        %4982 = vmatpush1.bf16.msra.mxu0 %v3616
        %4983 = vmatprep.subr.bf16.mxu0 %v3629
        %4984 = vmatpush1.bf16.msra.mxu0 %v3628
        %4985 = vmatprep.subr.bf16.mxu0 %v3641
        %4986 = vmatpush1.bf16.msra.mxu0 %v3640
        %4987 = vmatprep.subr.bf16.mxu0 %v3653
        %4988 = vmatpush1.bf16.msra.mxu0 %v3652
        %4989 = vmatprep.subr.bf16.mxu0 %v3665
        %4990 = vmatpush1.bf16.msra.mxu0 %v3664
        %4991 = vmatprep.subr.bf16.mxu0 %v3677
        %4992 = vmatpush1.bf16.msra.mxu0 %v3676
        %4993 = vmatprep.subr.bf16.mxu0 %v3689
        %4994 = vmatpush1.bf16.msra.mxu0 %v3688
        %4995 = vmatprep.subr.bf16.mxu0 %v3701
        %4996 = vmatpush1.bf16.msra.mxu0 %v3700
        %4997 = vmatprep.subr.bf16.mxu0 %v3713
        %4998 = vmatpush1.bf16.msra.mxu0 %v3712
        %4999 = vmatprep.subr.bf16.mxu0 %v3725
        %5000 = vmatpush1.bf16.msra.mxu0 %v3724
        %5001 = vmatprep.subr.bf16.mxu0 %v3737
        %5002 = vmatpush1.bf16.msra.mxu0 %v3736
        %5003 = vmatprep.subr.bf16.mxu0 %v3749
        %5004 = vmatpush1.bf16.msra.mxu0 %v3748
        %5005 = vmatprep.subr.bf16.mxu0 %v3761
        %5006 = vmatpush1.bf16.msra.mxu0 %v3760
        %5007 = vmatprep.subr.bf16.mxu0 %v3773
        %5008 = vmatpush1.bf16.msra.mxu0 %v3772
        %5009 = vmatprep.mubr.bf16.mxu0 %v259
        %5010 = vmatmul.mubr.bf16.gmra.mrb[0].mxu0 %v258
        %v5011 = vpop.f32.mrb[0].mxu0
        %v5012 = vadd.f32 %v4971, %v5011
        %v5013 = vpop.f32.mrb[0].mxu0
        %v5014 = vadd.f32 %v4973, %v5013
        %v5015 = vpop.f32.mrb[0].mxu0
        %v5016 = vpop.f32.mrb[0].mxu0
        %5017 = vdwg.mxu0
        %5018 = vmatprep.subr.bf16.mxu0 %v3785
        %5019 = vmatpush1.bf16.msra.mxu0 %v3784
        %5020 = vmatprep.subr.bf16.mxu0 %v3797
        %5021 = vmatpush1.bf16.msra.mxu0 %v3796
        %5022 = vmatprep.subr.bf16.mxu0 %v3809
        %5023 = vmatpush1.bf16.msra.mxu0 %v3808
        %5024 = vmatprep.subr.bf16.mxu0 %v3821
        %5025 = vmatpush1.bf16.msra.mxu0 %v3820
        %5026 = vmatprep.subr.bf16.mxu0 %v3833
        %5027 = vmatpush1.bf16.msra.mxu0 %v3832
        %5028 = vmatprep.subr.bf16.mxu0 %v3845
        %5029 = vmatpush1.bf16.msra.mxu0 %v3844
        %5030 = vmatprep.subr.bf16.mxu0 %v3857
        %5031 = vmatpush1.bf16.msra.mxu0 %v3856
        %5032 = vmatprep.subr.bf16.mxu0 %v3869
        %5033 = vmatpush1.bf16.msra.mxu0 %v3868
        %5034 = vmatprep.subr.bf16.mxu0 %v3881
        %5035 = vmatpush1.bf16.msra.mxu0 %v3880
        %5036 = vmatprep.subr.bf16.mxu0 %v3893
        %5037 = vmatpush1.bf16.msra.mxu0 %v3892
        %5038 = vmatprep.subr.bf16.mxu0 %v3905
        %5039 = vmatpush1.bf16.msra.mxu0 %v3904
        %5040 = vmatprep.subr.bf16.mxu0 %v3917
        %5041 = vmatpush1.bf16.msra.mxu0 %v3916
        %5042 = vmatprep.subr.bf16.mxu0 %v3929
        %5043 = vmatpush1.bf16.msra.mxu0 %v3928
        %5044 = vmatprep.subr.bf16.mxu0 %v3941
        %5045 = vmatpush1.bf16.msra.mxu0 %v3940
        %5046 = vmatprep.subr.bf16.mxu0 %v3953
        %5047 = vmatpush1.bf16.msra.mxu0 %v3952
        %5048 = vmatprep.subr.bf16.mxu0 %v3965
        %5049 = vmatpush1.bf16.msra.mxu0 %v3964
        %5050 = vmatprep.mubr.bf16.mxu0 %v261
        %5051 = vmatmul.mubr.bf16.gmra.mrb[0].mxu0 %v260
        %v5052 = vpop.f32.mrb[0].mxu0
        %v5053 = vadd.f32 %v5012, %v5052
        %v5054 = vpop.f32.mrb[0].mxu0
        %v5055 = vadd.f32 %v5014, %v5054
        %v5056 = vpop.f32.mrb[0].mxu0
        %v5057 = vpop.f32.mrb[0].mxu0
        %5058 = vdwg.mxu0
        %5059 = vmatprep.subr.bf16.mxu0 %v3977
        %5060 = vmatpush1.bf16.msra.mxu0 %v3976
        %5061 = vmatprep.subr.bf16.mxu0 %v3989
        %5062 = vmatpush1.bf16.msra.mxu0 %v3988
        %5063 = vmatprep.subr.bf16.mxu0 %v4001
        %5064 = vmatpush1.bf16.msra.mxu0 %v4000
        %5065 = vmatprep.subr.bf16.mxu0 %v4013
        %5066 = vmatpush1.bf16.msra.mxu0 %v4012
        %5067 = vmatprep.subr.bf16.mxu0 %v4025
        %5068 = vmatpush1.bf16.msra.mxu0 %v4024
        %5069 = vmatprep.subr.bf16.mxu0 %v4037
        %5070 = vmatpush1.bf16.msra.mxu0 %v4036
        %5071 = vmatprep.subr.bf16.mxu0 %v4049
        %5072 = vmatpush1.bf16.msra.mxu0 %v4048
        %5073 = vmatprep.subr.bf16.mxu0 %v4061
        %5074 = vmatpush1.bf16.msra.mxu0 %v4060
        %5075 = vmatprep.subr.bf16.mxu0 %v4073
        %5076 = vmatpush1.bf16.msra.mxu0 %v4072
        %5077 = vmatprep.subr.bf16.mxu0 %v4085
        %5078 = vmatpush1.bf16.msra.mxu0 %v4084
        %5079 = vmatprep.subr.bf16.mxu0 %v4097
        %5080 = vmatpush1.bf16.msra.mxu0 %v4096
        %5081 = vmatprep.subr.bf16.mxu0 %v4109
        %5082 = vmatpush1.bf16.msra.mxu0 %v4108
        %5083 = vmatprep.subr.bf16.mxu0 %v4121
        %5084 = vmatpush1.bf16.msra.mxu0 %v4120
        %5085 = vmatprep.subr.bf16.mxu0 %v4133
        %5086 = vmatpush1.bf16.msra.mxu0 %v4132
        %5087 = vmatprep.subr.bf16.mxu0 %v4145
        %5088 = vmatpush1.bf16.msra.mxu0 %v4144
        %5089 = vmatprep.subr.bf16.mxu0 %v4157
        %5090 = vmatpush1.bf16.msra.mxu0 %v4156
        %5091 = vmatprep.mubr.bf16.mxu0 %v263
        %5092 = vmatmul.mubr.bf16.gmra.mrb[0].mxu0 %v262
        %v5093 = vpop.f32.mrb[0].mxu0
        %v5094 = vadd.f32 %v5053, %v5093
        %v5095 = vpop.f32.mrb[0].mxu0
        %v5096 = vadd.f32 %v5055, %v5095
        %v5097 = vpop.f32.mrb[0].mxu0
        %v5098 = vpop.f32.mrb[0].mxu0
        %5099 = vdwg.mxu0
        %5100 = vmatprep.subr.bf16.mxu0 %v3403
        %5101 = vmatpush1.bf16.msra.mxu0 %v3402
        %5102 = vmatprep.subr.bf16.mxu0 %v3415
        %5103 = vmatpush1.bf16.msra.mxu0 %v3414
        %5104 = vmatprep.subr.bf16.mxu0 %v3427
        %5105 = vmatpush1.bf16.msra.mxu0 %v3426
        %5106 = vmatprep.subr.bf16.mxu0 %v3439
        %5107 = vmatpush1.bf16.msra.mxu0 %v3438
        %5108 = vmatprep.subr.bf16.mxu0 %v3451
        %5109 = vmatpush1.bf16.msra.mxu0 %v3450
        %5110 = vmatprep.subr.bf16.mxu0 %v3463
        %5111 = vmatpush1.bf16.msra.mxu0 %v3462
        %5112 = vmatprep.subr.bf16.mxu0 %v3475
        %5113 = vmatpush1.bf16.msra.mxu0 %v3474
        %5114 = vmatprep.subr.bf16.mxu0 %v3487
        %5115 = vmatpush1.bf16.msra.mxu0 %v3486
        %5116 = vmatprep.subr.bf16.mxu0 %v3499
        %5117 = vmatpush1.bf16.msra.mxu0 %v3498
        %5118 = vmatprep.subr.bf16.mxu0 %v3511
        %5119 = vmatpush1.bf16.msra.mxu0 %v3510
        %5120 = vmatprep.subr.bf16.mxu0 %v3523
        %5121 = vmatpush1.bf16.msra.mxu0 %v3522
        %5122 = vmatprep.subr.bf16.mxu0 %v3535
        %5123 = vmatpush1.bf16.msra.mxu0 %v3534
        %5124 = vmatprep.subr.bf16.mxu0 %v3547
        %5125 = vmatpush1.bf16.msra.mxu0 %v3546
        %5126 = vmatprep.subr.bf16.mxu0 %v3559
        %5127 = vmatpush1.bf16.msra.mxu0 %v3558
        %5128 = vmatprep.subr.bf16.mxu0 %v3571
        %5129 = vmatpush1.bf16.msra.mxu0 %v3570
        %5130 = vmatprep.subr.bf16.mxu0 %v3583
        %5131 = vmatpush1.bf16.msra.mxu0 %v3582
        %5132 = vmatprep.mubr.bf16.mxu0 %v257
        %5133 = vmatmul.mubr.bf16.gmra.mrb[0].mxu0 %v256
        %v5134 = vpop.f32.mrb[0].mxu0
        %v5135 = vadd.f32 %v1047, %v5134
        %v5136 = vpop.f32.mrb[0].mxu0
        %v5137 = vadd.f32 %v1051, %v5136
        %v5138 = vpop.f32.mrb[0].mxu0
        %v5139 = vpop.f32.mrb[0].mxu0
        %5140 = vdwg.mxu0
        %5141 = vmatprep.subr.bf16.mxu0 %v3595
        %5142 = vmatpush1.bf16.msra.mxu0 %v3594
        %5143 = vmatprep.subr.bf16.mxu0 %v3607
        %5144 = vmatpush1.bf16.msra.mxu0 %v3606
        %5145 = vmatprep.subr.bf16.mxu0 %v3619
        %5146 = vmatpush1.bf16.msra.mxu0 %v3618
        %5147 = vmatprep.subr.bf16.mxu0 %v3631
        %5148 = vmatpush1.bf16.msra.mxu0 %v3630
        %5149 = vmatprep.subr.bf16.mxu0 %v3643
        %5150 = vmatpush1.bf16.msra.mxu0 %v3642
        %5151 = vmatprep.subr.bf16.mxu0 %v3655
        %5152 = vmatpush1.bf16.msra.mxu0 %v3654
        %5153 = vmatprep.subr.bf16.mxu0 %v3667
        %5154 = vmatpush1.bf16.msra.mxu0 %v3666
        %5155 = vmatprep.subr.bf16.mxu0 %v3679
        %5156 = vmatpush1.bf16.msra.mxu0 %v3678
        %5157 = vmatprep.subr.bf16.mxu0 %v3691
        %5158 = vmatpush1.bf16.msra.mxu0 %v3690
        %5159 = vmatprep.subr.bf16.mxu0 %v3703
        %5160 = vmatpush1.bf16.msra.mxu0 %v3702
        %5161 = vmatprep.subr.bf16.mxu0 %v3715
        %5162 = vmatpush1.bf16.msra.mxu0 %v3714
        %5163 = vmatprep.subr.bf16.mxu0 %v3727
        %5164 = vmatpush1.bf16.msra.mxu0 %v3726
        %5165 = vmatprep.subr.bf16.mxu0 %v3739
        %5166 = vmatpush1.bf16.msra.mxu0 %v3738
        %5167 = vmatprep.subr.bf16.mxu0 %v3751
        %5168 = vmatpush1.bf16.msra.mxu0 %v3750
        %5169 = vmatprep.subr.bf16.mxu0 %v3763
        %5170 = vmatpush1.bf16.msra.mxu0 %v3762
        %5171 = vmatprep.subr.bf16.mxu0 %v3775
        %5172 = vmatpush1.bf16.msra.mxu0 %v3774
        %5173 = vmatprep.mubr.bf16.mxu0 %v259
        %5174 = vmatmul.mubr.bf16.gmra.mrb[0].mxu0 %v258
        %v5175 = vpop.f32.mrb[0].mxu0
        %v5176 = vadd.f32 %v5135, %v5175
        %v5177 = vpop.f32.mrb[0].mxu0
        %v5178 = vadd.f32 %v5137, %v5177
        %v5179 = vpop.f32.mrb[0].mxu0
        %v5180 = vpop.f32.mrb[0].mxu0
        %5181 = vdwg.mxu0
        %5182 = vmatprep.subr.bf16.mxu0 %v3787
        %5183 = vmatpush1.bf16.msra.mxu0 %v3786
        %5184 = vmatprep.subr.bf16.mxu0 %v3799
        %5185 = vmatpush1.bf16.msra.mxu0 %v3798
        %5186 = vmatprep.subr.bf16.mxu0 %v3811
        %5187 = vmatpush1.bf16.msra.mxu0 %v3810
        %5188 = vmatprep.subr.bf16.mxu0 %v3823
        %5189 = vmatpush1.bf16.msra.mxu0 %v3822
        %5190 = vmatprep.subr.bf16.mxu0 %v3835
        %5191 = vmatpush1.bf16.msra.mxu0 %v3834
        %5192 = vmatprep.subr.bf16.mxu0 %v3847
        %5193 = vmatpush1.bf16.msra.mxu0 %v3846
        %5194 = vmatprep.subr.bf16.mxu0 %v3859
        %5195 = vmatpush1.bf16.msra.mxu0 %v3858
        %5196 = vmatprep.subr.bf16.mxu0 %v3871
        %5197 = vmatpush1.bf16.msra.mxu0 %v3870
        %5198 = vmatprep.subr.bf16.mxu0 %v3883
        %5199 = vmatpush1.bf16.msra.mxu0 %v3882
        %5200 = vmatprep.subr.bf16.mxu0 %v3895
        %5201 = vmatpush1.bf16.msra.mxu0 %v3894
        %5202 = vmatprep.subr.bf16.mxu0 %v3907
        %5203 = vmatpush1.bf16.msra.mxu0 %v3906
        %5204 = vmatprep.subr.bf16.mxu0 %v3919
        %5205 = vmatpush1.bf16.msra.mxu0 %v3918
        %5206 = vmatprep.subr.bf16.mxu0 %v3931
        %5207 = vmatpush1.bf16.msra.mxu0 %v3930
        %5208 = vmatprep.subr.bf16.mxu0 %v3943
        %5209 = vmatpush1.bf16.msra.mxu0 %v3942
        %5210 = vmatprep.subr.bf16.mxu0 %v3955
        %5211 = vmatpush1.bf16.msra.mxu0 %v3954
        %5212 = vmatprep.subr.bf16.mxu0 %v3967
        %5213 = vmatpush1.bf16.msra.mxu0 %v3966
        %5214 = vmatprep.mubr.bf16.mxu0 %v261
        %5215 = vmatmul.mubr.bf16.gmra.mrb[0].mxu0 %v260
        %v5216 = vpop.f32.mrb[0].mxu0
        %v5217 = vadd.f32 %v5176, %v5216
        %v5218 = vpop.f32.mrb[0].mxu0
        %v5219 = vadd.f32 %v5178, %v5218
        %v5220 = vpop.f32.mrb[0].mxu0
        %v5221 = vpop.f32.mrb[0].mxu0
        %5222 = vdwg.mxu0
        %5223 = vmatprep.subr.bf16.mxu0 %v3979
        %5224 = vmatpush1.bf16.msra.mxu0 %v3978
        %5225 = vmatprep.subr.bf16.mxu0 %v3991
        %5226 = vmatpush1.bf16.msra.mxu0 %v3990
        %5227 = vmatprep.subr.bf16.mxu0 %v4003
        %5228 = vmatpush1.bf16.msra.mxu0 %v4002
        %5229 = vmatprep.subr.bf16.mxu0 %v4015
        %5230 = vmatpush1.bf16.msra.mxu0 %v4014
        %5231 = vmatprep.subr.bf16.mxu0 %v4027
        %5232 = vmatpush1.bf16.msra.mxu0 %v4026
        %5233 = vmatprep.subr.bf16.mxu0 %v4039
        %5234 = vmatpush1.bf16.msra.mxu0 %v4038
        %5235 = vmatprep.subr.bf16.mxu0 %v4051
        %5236 = vmatpush1.bf16.msra.mxu0 %v4050
        %5237 = vmatprep.subr.bf16.mxu0 %v4063
        %5238 = vmatpush1.bf16.msra.mxu0 %v4062
        %5239 = vmatprep.subr.bf16.mxu0 %v4075
        %5240 = vmatpush1.bf16.msra.mxu0 %v4074
        %5241 = vmatprep.subr.bf16.mxu0 %v4087
        %5242 = vmatpush1.bf16.msra.mxu0 %v4086
        %5243 = vmatprep.subr.bf16.mxu0 %v4099
        %5244 = vmatpush1.bf16.msra.mxu0 %v4098
        %5245 = vmatprep.subr.bf16.mxu0 %v4111
        %5246 = vmatpush1.bf16.msra.mxu0 %v4110
        %5247 = vmatprep.subr.bf16.mxu0 %v4123
        %5248 = vmatpush1.bf16.msra.mxu0 %v4122
        %5249 = vmatprep.subr.bf16.mxu0 %v4135
        %5250 = vmatpush1.bf16.msra.mxu0 %v4134
        %5251 = vmatprep.subr.bf16.mxu0 %v4147
        %5252 = vmatpush1.bf16.msra.mxu0 %v4146
        %5253 = vmatprep.subr.bf16.mxu0 %v4159
        %5254 = vmatpush1.bf16.msra.mxu0 %v4158
        %5255 = vmatprep.mubr.bf16.mxu0 %v263
        %5256 = vmatmul.mubr.bf16.gmra.mrb[0].mxu0 %v262
        %v5257 = vpop.f32.mrb[0].mxu0
        %v5258 = vadd.f32 %v5217, %v5257
        %v5259 = vpop.f32.mrb[0].mxu0
        %v5260 = vadd.f32 %v5219, %v5259
        %v5261 = vpop.f32.mrb[0].mxu0
        %v5262 = vpop.f32.mrb[0].mxu0
        %5263 = vdwg.mxu0
        %5264 = vmatprep.subr.bf16.mxu0 %v3405
        %5265 = vmatpush1.bf16.msra.mxu0 %v3404
        %5266 = vmatprep.subr.bf16.mxu0 %v3417
        %5267 = vmatpush1.bf16.msra.mxu0 %v3416
        %5268 = vmatprep.subr.bf16.mxu0 %v3429
        %5269 = vmatpush1.bf16.msra.mxu0 %v3428
        %5270 = vmatprep.subr.bf16.mxu0 %v3441
        %5271 = vmatpush1.bf16.msra.mxu0 %v3440
        %5272 = vmatprep.subr.bf16.mxu0 %v3453
        %5273 = vmatpush1.bf16.msra.mxu0 %v3452
        %5274 = vmatprep.subr.bf16.mxu0 %v3465
        %5275 = vmatpush1.bf16.msra.mxu0 %v3464
        %5276 = vmatprep.subr.bf16.mxu0 %v3477
        %5277 = vmatpush1.bf16.msra.mxu0 %v3476
        %5278 = vmatprep.subr.bf16.mxu0 %v3489
        %5279 = vmatpush1.bf16.msra.mxu0 %v3488
        %5280 = vmatprep.subr.bf16.mxu0 %v3501
        %5281 = vmatpush1.bf16.msra.mxu0 %v3500
        %5282 = vmatprep.subr.bf16.mxu0 %v3513
        %5283 = vmatpush1.bf16.msra.mxu0 %v3512
        %5284 = vmatprep.subr.bf16.mxu0 %v3525
        %5285 = vmatpush1.bf16.msra.mxu0 %v3524
        %5286 = vmatprep.subr.bf16.mxu0 %v3537
        %5287 = vmatpush1.bf16.msra.mxu0 %v3536
        %5288 = vmatprep.subr.bf16.mxu0 %v3549
        %5289 = vmatpush1.bf16.msra.mxu0 %v3548
        %5290 = vmatprep.subr.bf16.mxu0 %v3561
        %5291 = vmatpush1.bf16.msra.mxu0 %v3560
        %5292 = vmatprep.subr.bf16.mxu0 %v3573
        %5293 = vmatpush1.bf16.msra.mxu0 %v3572
        %5294 = vmatprep.subr.bf16.mxu0 %v3585
        %5295 = vmatpush1.bf16.msra.mxu0 %v3584
        %5296 = vmatprep.mubr.bf16.mxu0 %v257
        %5297 = vmatmul.mubr.bf16.gmra.mrb[0].mxu0 %v256
        %v5298 = vpop.f32.mrb[0].mxu0
        %v5299 = vadd.f32 %v1055, %v5298
        %v5300 = vpop.f32.mrb[0].mxu0
        %v5301 = vadd.f32 %v1059, %v5300
        %v5302 = vpop.f32.mrb[0].mxu0
        %v5303 = vpop.f32.mrb[0].mxu0
        %5304 = vdwg.mxu0
        %5305 = vmatprep.subr.bf16.mxu0 %v3597
        %5306 = vmatpush1.bf16.msra.mxu0 %v3596
        %5307 = vmatprep.subr.bf16.mxu0 %v3609
        %5308 = vmatpush1.bf16.msra.mxu0 %v3608
        %5309 = vmatprep.subr.bf16.mxu0 %v3621
        %5310 = vmatpush1.bf16.msra.mxu0 %v3620
        %5311 = vmatprep.subr.bf16.mxu0 %v3633
        %5312 = vmatpush1.bf16.msra.mxu0 %v3632
        %5313 = vmatprep.subr.bf16.mxu0 %v3645
        %5314 = vmatpush1.bf16.msra.mxu0 %v3644
        %5315 = vmatprep.subr.bf16.mxu0 %v3657
        %5316 = vmatpush1.bf16.msra.mxu0 %v3656
        %5317 = vmatprep.subr.bf16.mxu0 %v3669
        %5318 = vmatpush1.bf16.msra.mxu0 %v3668
        %5319 = vmatprep.subr.bf16.mxu0 %v3681
        %5320 = vmatpush1.bf16.msra.mxu0 %v3680
        %5321 = vmatprep.subr.bf16.mxu0 %v3693
        %5322 = vmatpush1.bf16.msra.mxu0 %v3692
        %5323 = vmatprep.subr.bf16.mxu0 %v3705
        %5324 = vmatpush1.bf16.msra.mxu0 %v3704
        %5325 = vmatprep.subr.bf16.mxu0 %v3717
        %5326 = vmatpush1.bf16.msra.mxu0 %v3716
        %5327 = vmatprep.subr.bf16.mxu0 %v3729
        %5328 = vmatpush1.bf16.msra.mxu0 %v3728
        %5329 = vmatprep.subr.bf16.mxu0 %v3741
        %5330 = vmatpush1.bf16.msra.mxu0 %v3740
        %5331 = vmatprep.subr.bf16.mxu0 %v3753
        %5332 = vmatpush1.bf16.msra.mxu0 %v3752
        %5333 = vmatprep.subr.bf16.mxu0 %v3765
        %5334 = vmatpush1.bf16.msra.mxu0 %v3764
        %5335 = vmatprep.subr.bf16.mxu0 %v3777
        %5336 = vmatpush1.bf16.msra.mxu0 %v3776
        %5337 = vmatprep.mubr.bf16.mxu0 %v259
        %5338 = vmatmul.mubr.bf16.gmra.mrb[0].mxu0 %v258
        %v5339 = vpop.f32.mrb[0].mxu0
        %v5340 = vadd.f32 %v5299, %v5339
        %v5341 = vpop.f32.mrb[0].mxu0
        %v5342 = vadd.f32 %v5301, %v5341
        %v5343 = vpop.f32.mrb[0].mxu0
        %v5344 = vpop.f32.mrb[0].mxu0
        %5345 = vdwg.mxu0
        %5346 = vmatprep.subr.bf16.mxu0 %v3789
        %5347 = vmatpush1.bf16.msra.mxu0 %v3788
        %5348 = vmatprep.subr.bf16.mxu0 %v3801
        %5349 = vmatpush1.bf16.msra.mxu0 %v3800
        %5350 = vmatprep.subr.bf16.mxu0 %v3813
        %5351 = vmatpush1.bf16.msra.mxu0 %v3812
        %5352 = vmatprep.subr.bf16.mxu0 %v3825
        %5353 = vmatpush1.bf16.msra.mxu0 %v3824
        %5354 = vmatprep.subr.bf16.mxu0 %v3837
        %5355 = vmatpush1.bf16.msra.mxu0 %v3836
        %5356 = vmatprep.subr.bf16.mxu0 %v3849
        %5357 = vmatpush1.bf16.msra.mxu0 %v3848
        %5358 = vmatprep.subr.bf16.mxu0 %v3861
        %5359 = vmatpush1.bf16.msra.mxu0 %v3860
        %5360 = vmatprep.subr.bf16.mxu0 %v3873
        %5361 = vmatpush1.bf16.msra.mxu0 %v3872
        %5362 = vmatprep.subr.bf16.mxu0 %v3885
        %5363 = vmatpush1.bf16.msra.mxu0 %v3884
        %5364 = vmatprep.subr.bf16.mxu0 %v3897
        %5365 = vmatpush1.bf16.msra.mxu0 %v3896
        %5366 = vmatprep.subr.bf16.mxu0 %v3909
        %5367 = vmatpush1.bf16.msra.mxu0 %v3908
        %5368 = vmatprep.subr.bf16.mxu0 %v3921
        %5369 = vmatpush1.bf16.msra.mxu0 %v3920
        %5370 = vmatprep.subr.bf16.mxu0 %v3933
        %5371 = vmatpush1.bf16.msra.mxu0 %v3932
        %5372 = vmatprep.subr.bf16.mxu0 %v3945
        %5373 = vmatpush1.bf16.msra.mxu0 %v3944
        %5374 = vmatprep.subr.bf16.mxu0 %v3957
        %5375 = vmatpush1.bf16.msra.mxu0 %v3956
        %5376 = vmatprep.subr.bf16.mxu0 %v3969
        %5377 = vmatpush1.bf16.msra.mxu0 %v3968
        %5378 = vmatprep.mubr.bf16.mxu0 %v261
        %5379 = vmatmul.mubr.bf16.gmra.mrb[0].mxu0 %v260
        %v5380 = vpop.f32.mrb[0].mxu0
        %v5381 = vadd.f32 %v5340, %v5380
        %v5382 = vpop.f32.mrb[0].mxu0
        %v5383 = vadd.f32 %v5342, %v5382
        %v5384 = vpop.f32.mrb[0].mxu0
        %v5385 = vpop.f32.mrb[0].mxu0
        %5386 = vdwg.mxu0
        %5387 = vmatprep.subr.bf16.mxu0 %v3981
        %5388 = vmatpush1.bf16.msra.mxu0 %v3980
        %5389 = vmatprep.subr.bf16.mxu0 %v3993
        %5390 = vmatpush1.bf16.msra.mxu0 %v3992
        %5391 = vmatprep.subr.bf16.mxu0 %v4005
        %5392 = vmatpush1.bf16.msra.mxu0 %v4004
        %5393 = vmatprep.subr.bf16.mxu0 %v4017
        %5394 = vmatpush1.bf16.msra.mxu0 %v4016
        %5395 = vmatprep.subr.bf16.mxu0 %v4029
        %5396 = vmatpush1.bf16.msra.mxu0 %v4028
        %5397 = vmatprep.subr.bf16.mxu0 %v4041
        %5398 = vmatpush1.bf16.msra.mxu0 %v4040
        %5399 = vmatprep.subr.bf16.mxu0 %v4053
        %5400 = vmatpush1.bf16.msra.mxu0 %v4052
        %5401 = vmatprep.subr.bf16.mxu0 %v4065
        %5402 = vmatpush1.bf16.msra.mxu0 %v4064
        %5403 = vmatprep.subr.bf16.mxu0 %v4077
        %5404 = vmatpush1.bf16.msra.mxu0 %v4076
        %5405 = vmatprep.subr.bf16.mxu0 %v4089
        %5406 = vmatpush1.bf16.msra.mxu0 %v4088
        %5407 = vmatprep.subr.bf16.mxu0 %v4101
        %5408 = vmatpush1.bf16.msra.mxu0 %v4100
        %5409 = vmatprep.subr.bf16.mxu0 %v4113
        %5410 = vmatpush1.bf16.msra.mxu0 %v4112
        %5411 = vmatprep.subr.bf16.mxu0 %v4125
        %5412 = vmatpush1.bf16.msra.mxu0 %v4124
        %5413 = vmatprep.subr.bf16.mxu0 %v4137
        %5414 = vmatpush1.bf16.msra.mxu0 %v4136
        %5415 = vmatprep.subr.bf16.mxu0 %v4149
        %5416 = vmatpush1.bf16.msra.mxu0 %v4148
        %5417 = vmatprep.subr.bf16.mxu0 %v4161
        %5418 = vmatpush1.bf16.msra.mxu0 %v4160
        %5419 = vmatprep.mubr.bf16.mxu0 %v263
        %5420 = vmatmul.mubr.bf16.gmra.mrb[0].mxu0 %v262
        %v5421 = vpop.f32.mrb[0].mxu0
        %v5422 = vadd.f32 %v5381, %v5421
        %v5423 = vpop.f32.mrb[0].mxu0
        %v5424 = vadd.f32 %v5383, %v5423
        %v5425 = vpop.f32.mrb[0].mxu0
        %v5426 = vpop.f32.mrb[0].mxu0
        %5427 = vdwg.mxu0
        %5428 = vmatprep.subr.bf16.mxu0 %v3407
        %5429 = vmatpush1.bf16.msra.mxu0 %v3406
        %5430 = vmatprep.subr.bf16.mxu0 %v3419
        %5431 = vmatpush1.bf16.msra.mxu0 %v3418
        %5432 = vmatprep.subr.bf16.mxu0 %v3431
        %5433 = vmatpush1.bf16.msra.mxu0 %v3430
        %5434 = vmatprep.subr.bf16.mxu0 %v3443
        %5435 = vmatpush1.bf16.msra.mxu0 %v3442
        %5436 = vmatprep.subr.bf16.mxu0 %v3455
        %5437 = vmatpush1.bf16.msra.mxu0 %v3454
        %5438 = vmatprep.subr.bf16.mxu0 %v3467
        %5439 = vmatpush1.bf16.msra.mxu0 %v3466
        %5440 = vmatprep.subr.bf16.mxu0 %v3479
        %5441 = vmatpush1.bf16.msra.mxu0 %v3478
        %5442 = vmatprep.subr.bf16.mxu0 %v3491
        %5443 = vmatpush1.bf16.msra.mxu0 %v3490
        %5444 = vmatprep.subr.bf16.mxu0 %v3503
        %5445 = vmatpush1.bf16.msra.mxu0 %v3502
        %5446 = vmatprep.subr.bf16.mxu0 %v3515
        %5447 = vmatpush1.bf16.msra.mxu0 %v3514
        %5448 = vmatprep.subr.bf16.mxu0 %v3527
        %5449 = vmatpush1.bf16.msra.mxu0 %v3526
        %5450 = vmatprep.subr.bf16.mxu0 %v3539
        %5451 = vmatpush1.bf16.msra.mxu0 %v3538
        %5452 = vmatprep.subr.bf16.mxu0 %v3551
        %5453 = vmatpush1.bf16.msra.mxu0 %v3550
        %5454 = vmatprep.subr.bf16.mxu0 %v3563
        %5455 = vmatpush1.bf16.msra.mxu0 %v3562
        %5456 = vmatprep.subr.bf16.mxu0 %v3575
        %5457 = vmatpush1.bf16.msra.mxu0 %v3574
        %5458 = vmatprep.subr.bf16.mxu0 %v3587
        %5459 = vmatpush1.bf16.msra.mxu0 %v3586
        %5460 = vmatprep.mubr.bf16.mxu0 %v257
        %5461 = vmatmul.mubr.bf16.gmra.mrb[0].mxu0 %v256
        %v5462 = vpop.f32.mrb[0].mxu0
        %v5463 = vadd.f32 %v1063, %v5462
        %v5464 = vpop.f32.mrb[0].mxu0
        %v5465 = vadd.f32 %v1067, %v5464
        %v5466 = vpop.f32.mrb[0].mxu0
        %v5467 = vpop.f32.mrb[0].mxu0
        %5468 = vdwg.mxu0
        %5469 = vmatprep.subr.bf16.mxu0 %v3599
        %5470 = vmatpush1.bf16.msra.mxu0 %v3598
        %5471 = vmatprep.subr.bf16.mxu0 %v3611
        %5472 = vmatpush1.bf16.msra.mxu0 %v3610
        %5473 = vmatprep.subr.bf16.mxu0 %v3623
        %5474 = vmatpush1.bf16.msra.mxu0 %v3622
        %5475 = vmatprep.subr.bf16.mxu0 %v3635
        %5476 = vmatpush1.bf16.msra.mxu0 %v3634
        %5477 = vmatprep.subr.bf16.mxu0 %v3647
        %5478 = vmatpush1.bf16.msra.mxu0 %v3646
        %5479 = vmatprep.subr.bf16.mxu0 %v3659
        %5480 = vmatpush1.bf16.msra.mxu0 %v3658
        %5481 = vmatprep.subr.bf16.mxu0 %v3671
        %5482 = vmatpush1.bf16.msra.mxu0 %v3670
        %5483 = vmatprep.subr.bf16.mxu0 %v3683
        %5484 = vmatpush1.bf16.msra.mxu0 %v3682
        %5485 = vmatprep.subr.bf16.mxu0 %v3695
        %5486 = vmatpush1.bf16.msra.mxu0 %v3694
        %5487 = vmatprep.subr.bf16.mxu0 %v3707
        %5488 = vmatpush1.bf16.msra.mxu0 %v3706
        %5489 = vmatprep.subr.bf16.mxu0 %v3719
        %5490 = vmatpush1.bf16.msra.mxu0 %v3718
        %5491 = vmatprep.subr.bf16.mxu0 %v3731
        %5492 = vmatpush1.bf16.msra.mxu0 %v3730
        %5493 = vmatprep.subr.bf16.mxu0 %v3743
        %5494 = vmatpush1.bf16.msra.mxu0 %v3742
        %5495 = vmatprep.subr.bf16.mxu0 %v3755
        %5496 = vmatpush1.bf16.msra.mxu0 %v3754
        %5497 = vmatprep.subr.bf16.mxu0 %v3767
        %5498 = vmatpush1.bf16.msra.mxu0 %v3766
        %5499 = vmatprep.subr.bf16.mxu0 %v3779
        %5500 = vmatpush1.bf16.msra.mxu0 %v3778
        %5501 = vmatprep.mubr.bf16.mxu0 %v259
        %5502 = vmatmul.mubr.bf16.gmra.mrb[0].mxu0 %v258
        %v5503 = vpop.f32.mrb[0].mxu0
        %v5504 = vadd.f32 %v5463, %v5503
        %v5505 = vpop.f32.mrb[0].mxu0
        %v5506 = vadd.f32 %v5465, %v5505
        %v5507 = vpop.f32.mrb[0].mxu0
        %v5508 = vpop.f32.mrb[0].mxu0
        %5509 = vdwg.mxu0
        %5510 = vmatprep.subr.bf16.mxu0 %v3791
        %5511 = vmatpush1.bf16.msra.mxu0 %v3790
        %5512 = vmatprep.subr.bf16.mxu0 %v3803
        %5513 = vmatpush1.bf16.msra.mxu0 %v3802
        %5514 = vmatprep.subr.bf16.mxu0 %v3815
        %5515 = vmatpush1.bf16.msra.mxu0 %v3814
        %5516 = vmatprep.subr.bf16.mxu0 %v3827
        %5517 = vmatpush1.bf16.msra.mxu0 %v3826
        %5518 = vmatprep.subr.bf16.mxu0 %v3839
        %5519 = vmatpush1.bf16.msra.mxu0 %v3838
        %5520 = vmatprep.subr.bf16.mxu0 %v3851
        %5521 = vmatpush1.bf16.msra.mxu0 %v3850
        %5522 = vmatprep.subr.bf16.mxu0 %v3863
        %5523 = vmatpush1.bf16.msra.mxu0 %v3862
        %5524 = vmatprep.subr.bf16.mxu0 %v3875
        %5525 = vmatpush1.bf16.msra.mxu0 %v3874
        %5526 = vmatprep.subr.bf16.mxu0 %v3887
        %5527 = vmatpush1.bf16.msra.mxu0 %v3886
        %5528 = vmatprep.subr.bf16.mxu0 %v3899
        %5529 = vmatpush1.bf16.msra.mxu0 %v3898
        %5530 = vmatprep.subr.bf16.mxu0 %v3911
        %5531 = vmatpush1.bf16.msra.mxu0 %v3910
        %5532 = vmatprep.subr.bf16.mxu0 %v3923
        %5533 = vmatpush1.bf16.msra.mxu0 %v3922
        %5534 = vmatprep.subr.bf16.mxu0 %v3935
        %5535 = vmatpush1.bf16.msra.mxu0 %v3934
        %5536 = vmatprep.subr.bf16.mxu0 %v3947
        %5537 = vmatpush1.bf16.msra.mxu0 %v3946
        %5538 = vmatprep.subr.bf16.mxu0 %v3959
        %5539 = vmatpush1.bf16.msra.mxu0 %v3958
        %5540 = vmatprep.subr.bf16.mxu0 %v3971
        %5541 = vmatpush1.bf16.msra.mxu0 %v3970
        %5542 = vmatprep.mubr.bf16.mxu0 %v261
        %5543 = vmatmul.mubr.bf16.gmra.mrb[0].mxu0 %v260
        %v5544 = vpop.f32.mrb[0].mxu0
        %v5545 = vadd.f32 %v5504, %v5544
        %v5546 = vpop.f32.mrb[0].mxu0
        %v5547 = vadd.f32 %v5506, %v5546
        %v5548 = vpop.f32.mrb[0].mxu0
        %v5549 = vpop.f32.mrb[0].mxu0
        %5550 = vdwg.mxu0
        %5551 = vmatprep.subr.bf16.mxu0 %v3983
        %5552 = vmatpush1.bf16.msra.mxu0 %v3982
        %5553 = vmatprep.subr.bf16.mxu0 %v3995
        %5554 = vmatpush1.bf16.msra.mxu0 %v3994
        %5555 = vmatprep.subr.bf16.mxu0 %v4007
        %5556 = vmatpush1.bf16.msra.mxu0 %v4006
        %5557 = vmatprep.subr.bf16.mxu0 %v4019
        %5558 = vmatpush1.bf16.msra.mxu0 %v4018
        %5559 = vmatprep.subr.bf16.mxu0 %v4031
        %5560 = vmatpush1.bf16.msra.mxu0 %v4030
        %5561 = vmatprep.subr.bf16.mxu0 %v4043
        %5562 = vmatpush1.bf16.msra.mxu0 %v4042
        %5563 = vmatprep.subr.bf16.mxu0 %v4055
        %5564 = vmatpush1.bf16.msra.mxu0 %v4054
        %5565 = vmatprep.subr.bf16.mxu0 %v4067
        %5566 = vmatpush1.bf16.msra.mxu0 %v4066
        %5567 = vmatprep.subr.bf16.mxu0 %v4079
        %5568 = vmatpush1.bf16.msra.mxu0 %v4078
        %5569 = vmatprep.subr.bf16.mxu0 %v4091
        %5570 = vmatpush1.bf16.msra.mxu0 %v4090
        %5571 = vmatprep.subr.bf16.mxu0 %v4103
        %5572 = vmatpush1.bf16.msra.mxu0 %v4102
        %5573 = vmatprep.subr.bf16.mxu0 %v4115
        %5574 = vmatpush1.bf16.msra.mxu0 %v4114
        %5575 = vmatprep.subr.bf16.mxu0 %v4127
        %5576 = vmatpush1.bf16.msra.mxu0 %v4126
        %5577 = vmatprep.subr.bf16.mxu0 %v4139
        %5578 = vmatpush1.bf16.msra.mxu0 %v4138
        %5579 = vmatprep.subr.bf16.mxu0 %v4151
        %5580 = vmatpush1.bf16.msra.mxu0 %v4150
        %5581 = vmatprep.subr.bf16.mxu0 %v4163
        %5582 = vmatpush1.bf16.msra.mxu0 %v4162
        %5583 = vmatprep.mubr.bf16.mxu0 %v263
        %5584 = vmatmul.mubr.bf16.gmra.mrb[0].mxu0 %v262
        %v5585 = vpop.f32.mrb[0].mxu0
        %v5586 = vadd.f32 %v5545, %v5585
        %v5587 = vpop.f32.mrb[0].mxu0
        %v5588 = vadd.f32 %v5547, %v5587
        %v5589 = vpop.f32.mrb[0].mxu0
        %v5590 = vpop.f32.mrb[0].mxu0
        %5591 = vdwg.mxu0
        %5592 = vmatprep.subr.bf16.mxu0 %v3409
        %5593 = vmatpush1.bf16.msra.mxu0 %v3408
        %5594 = vmatprep.subr.bf16.mxu0 %v3421
        %5595 = vmatpush1.bf16.msra.mxu0 %v3420
        %5596 = vmatprep.subr.bf16.mxu0 %v3433
        %5597 = vmatpush1.bf16.msra.mxu0 %v3432
        %5598 = vmatprep.subr.bf16.mxu0 %v3445
        %5599 = vmatpush1.bf16.msra.mxu0 %v3444
        %5600 = vmatprep.subr.bf16.mxu0 %v3457
        %5601 = vmatpush1.bf16.msra.mxu0 %v3456
        %5602 = vmatprep.subr.bf16.mxu0 %v3469
        %5603 = vmatpush1.bf16.msra.mxu0 %v3468
        %5604 = vmatprep.subr.bf16.mxu0 %v3481
        %5605 = vmatpush1.bf16.msra.mxu0 %v3480
        %5606 = vmatprep.subr.bf16.mxu0 %v3493
        %5607 = vmatpush1.bf16.msra.mxu0 %v3492
        %5608 = vmatprep.subr.bf16.mxu0 %v3505
        %5609 = vmatpush1.bf16.msra.mxu0 %v3504
        %5610 = vmatprep.subr.bf16.mxu0 %v3517
        %5611 = vmatpush1.bf16.msra.mxu0 %v3516
        %5612 = vmatprep.subr.bf16.mxu0 %v3529
        %5613 = vmatpush1.bf16.msra.mxu0 %v3528
        %5614 = vmatprep.subr.bf16.mxu0 %v3541
        %5615 = vmatpush1.bf16.msra.mxu0 %v3540
        %5616 = vmatprep.subr.bf16.mxu0 %v3553
        %5617 = vmatpush1.bf16.msra.mxu0 %v3552
        %5618 = vmatprep.subr.bf16.mxu0 %v3565
        %5619 = vmatpush1.bf16.msra.mxu0 %v3564
        %5620 = vmatprep.subr.bf16.mxu0 %v3577
        %5621 = vmatpush1.bf16.msra.mxu0 %v3576
        %5622 = vmatprep.subr.bf16.mxu0 %v3589
        %5623 = vmatpush1.bf16.msra.mxu0 %v3588
        %5624 = vmatprep.mubr.bf16.mxu0 %v257
        %5625 = vmatmul.mubr.bf16.gmra.mrb[0].mxu0 %v256
        %v5626 = vpop.f32.mrb[0].mxu0
        %v5627 = vadd.f32 %v1071, %v5626
        %v5628 = vpop.f32.mrb[0].mxu0
        %v5629 = vadd.f32 %v1075, %v5628
        %v5630 = vpop.f32.mrb[0].mxu0
        %v5631 = vpop.f32.mrb[0].mxu0
        %5632 = vdwg.mxu0
        %5633 = vmatprep.subr.bf16.mxu0 %v3601
        %5634 = vmatpush1.bf16.msra.mxu0 %v3600
        %5635 = vmatprep.subr.bf16.mxu0 %v3613
        %5636 = vmatpush1.bf16.msra.mxu0 %v3612
        %5637 = vmatprep.subr.bf16.mxu0 %v3625
        %5638 = vmatpush1.bf16.msra.mxu0 %v3624
        %5639 = vmatprep.subr.bf16.mxu0 %v3637
        %5640 = vmatpush1.bf16.msra.mxu0 %v3636
        %5641 = vmatprep.subr.bf16.mxu0 %v3649
        %5642 = vmatpush1.bf16.msra.mxu0 %v3648
        %5643 = vmatprep.subr.bf16.mxu0 %v3661
        %5644 = vmatpush1.bf16.msra.mxu0 %v3660
        %5645 = vmatprep.subr.bf16.mxu0 %v3673
        %5646 = vmatpush1.bf16.msra.mxu0 %v3672
        %5647 = vmatprep.subr.bf16.mxu0 %v3685
        %5648 = vmatpush1.bf16.msra.mxu0 %v3684
        %5649 = vmatprep.subr.bf16.mxu0 %v3697
        %5650 = vmatpush1.bf16.msra.mxu0 %v3696
        %5651 = vmatprep.subr.bf16.mxu0 %v3709
        %5652 = vmatpush1.bf16.msra.mxu0 %v3708
        %5653 = vmatprep.subr.bf16.mxu0 %v3721
        %5654 = vmatpush1.bf16.msra.mxu0 %v3720
        %5655 = vmatprep.subr.bf16.mxu0 %v3733
        %5656 = vmatpush1.bf16.msra.mxu0 %v3732
        %5657 = vmatprep.subr.bf16.mxu0 %v3745
        %5658 = vmatpush1.bf16.msra.mxu0 %v3744
        %5659 = vmatprep.subr.bf16.mxu0 %v3757
        %5660 = vmatpush1.bf16.msra.mxu0 %v3756
        %5661 = vmatprep.subr.bf16.mxu0 %v3769
        %5662 = vmatpush1.bf16.msra.mxu0 %v3768
        %5663 = vmatprep.subr.bf16.mxu0 %v3781
        %5664 = vmatpush1.bf16.msra.mxu0 %v3780
        %5665 = vmatprep.mubr.bf16.mxu0 %v259
        %5666 = vmatmul.mubr.bf16.gmra.mrb[0].mxu0 %v258
        %v5667 = vpop.f32.mrb[0].mxu0
        %v5668 = vadd.f32 %v5627, %v5667
        %v5669 = vpop.f32.mrb[0].mxu0
        %v5670 = vadd.f32 %v5629, %v5669
        %v5671 = vpop.f32.mrb[0].mxu0
        %v5672 = vpop.f32.mrb[0].mxu0
        %5673 = vdwg.mxu0
        %5674 = vmatprep.subr.bf16.mxu0 %v3793
        %5675 = vmatpush1.bf16.msra.mxu0 %v3792
        %5676 = vmatprep.subr.bf16.mxu0 %v3805
        %5677 = vmatpush1.bf16.msra.mxu0 %v3804
        %5678 = vmatprep.subr.bf16.mxu0 %v3817
        %5679 = vmatpush1.bf16.msra.mxu0 %v3816
        %5680 = vmatprep.subr.bf16.mxu0 %v3829
        %5681 = vmatpush1.bf16.msra.mxu0 %v3828
        %5682 = vmatprep.subr.bf16.mxu0 %v3841
        %5683 = vmatpush1.bf16.msra.mxu0 %v3840
        %5684 = vmatprep.subr.bf16.mxu0 %v3853
        %5685 = vmatpush1.bf16.msra.mxu0 %v3852
        %5686 = vmatprep.subr.bf16.mxu0 %v3865
        %5687 = vmatpush1.bf16.msra.mxu0 %v3864
        %5688 = vmatprep.subr.bf16.mxu0 %v3877
        %5689 = vmatpush1.bf16.msra.mxu0 %v3876
        %5690 = vmatprep.subr.bf16.mxu0 %v3889
        %5691 = vmatpush1.bf16.msra.mxu0 %v3888
        %5692 = vmatprep.subr.bf16.mxu0 %v3901
        %5693 = vmatpush1.bf16.msra.mxu0 %v3900
        %5694 = vmatprep.subr.bf16.mxu0 %v3913
        %5695 = vmatpush1.bf16.msra.mxu0 %v3912
        %5696 = vmatprep.subr.bf16.mxu0 %v3925
        %5697 = vmatpush1.bf16.msra.mxu0 %v3924
        %5698 = vmatprep.subr.bf16.mxu0 %v3937
        %5699 = vmatpush1.bf16.msra.mxu0 %v3936
        %5700 = vmatprep.subr.bf16.mxu0 %v3949
        %5701 = vmatpush1.bf16.msra.mxu0 %v3948
        %5702 = vmatprep.subr.bf16.mxu0 %v3961
        %5703 = vmatpush1.bf16.msra.mxu0 %v3960
        %5704 = vmatprep.subr.bf16.mxu0 %v3973
        %5705 = vmatpush1.bf16.msra.mxu0 %v3972
        %5706 = vmatprep.mubr.bf16.mxu0 %v261
        %5707 = vmatmul.mubr.bf16.gmra.mrb[0].mxu0 %v260
        %v5708 = vpop.f32.mrb[0].mxu0
        %v5709 = vadd.f32 %v5668, %v5708
        %v5710 = vpop.f32.mrb[0].mxu0
        %v5711 = vadd.f32 %v5670, %v5710
        %v5712 = vpop.f32.mrb[0].mxu0
        %v5713 = vpop.f32.mrb[0].mxu0
        %5714 = vdwg.mxu0
        %5715 = vmatprep.subr.bf16.mxu0 %v3985
        %5716 = vmatpush1.bf16.msra.mxu0 %v3984
        %5717 = vmatprep.subr.bf16.mxu0 %v3997
        %5718 = vmatpush1.bf16.msra.mxu0 %v3996
        %5719 = vmatprep.subr.bf16.mxu0 %v4009
        %5720 = vmatpush1.bf16.msra.mxu0 %v4008
        %5721 = vmatprep.subr.bf16.mxu0 %v4021
        %5722 = vmatpush1.bf16.msra.mxu0 %v4020
        %5723 = vmatprep.subr.bf16.mxu0 %v4033
        %5724 = vmatpush1.bf16.msra.mxu0 %v4032
        %5725 = vmatprep.subr.bf16.mxu0 %v4045
        %5726 = vmatpush1.bf16.msra.mxu0 %v4044
        %5727 = vmatprep.subr.bf16.mxu0 %v4057
        %5728 = vmatpush1.bf16.msra.mxu0 %v4056
        %5729 = vmatprep.subr.bf16.mxu0 %v4069
        %5730 = vmatpush1.bf16.msra.mxu0 %v4068
        %5731 = vmatprep.subr.bf16.mxu0 %v4081
        %5732 = vmatpush1.bf16.msra.mxu0 %v4080
        %5733 = vmatprep.subr.bf16.mxu0 %v4093
        %5734 = vmatpush1.bf16.msra.mxu0 %v4092
        %5735 = vmatprep.subr.bf16.mxu0 %v4105
        %5736 = vmatpush1.bf16.msra.mxu0 %v4104
        %5737 = vmatprep.subr.bf16.mxu0 %v4117
        %5738 = vmatpush1.bf16.msra.mxu0 %v4116
        %5739 = vmatprep.subr.bf16.mxu0 %v4129
        %5740 = vmatpush1.bf16.msra.mxu0 %v4128
        %5741 = vmatprep.subr.bf16.mxu0 %v4141
        %5742 = vmatpush1.bf16.msra.mxu0 %v4140
        %5743 = vmatprep.subr.bf16.mxu0 %v4153
        %5744 = vmatpush1.bf16.msra.mxu0 %v4152
        %5745 = vmatprep.subr.bf16.mxu0 %v4165
        %5746 = vmatpush1.bf16.msra.mxu0 %v4164
        %5747 = vmatprep.mubr.bf16.mxu0 %v263
        %5748 = vmatmul.mubr.bf16.gmra.mrb[0].mxu0 %v262
        %v5749 = vpop.f32.mrb[0].mxu0
        %v5750 = vadd.f32 %v5709, %v5749
        %v5751 = vpop.f32.mrb[0].mxu0
        %v5752 = vadd.f32 %v5711, %v5751
        %v5753 = vpop.f32.mrb[0].mxu0
        %v5754 = vpop.f32.mrb[0].mxu0
        %5755 = vdwg.mxu0
        %5756 = vmatprep.subr.bf16.mxu0 %v3411
        %5757 = vmatpush1.bf16.msra.mxu0 %v3410
        %5758 = vmatprep.subr.bf16.mxu0 %v3423
        %5759 = vmatpush1.bf16.msra.mxu0 %v3422
        %5760 = vmatprep.subr.bf16.mxu0 %v3435
        %5761 = vmatpush1.bf16.msra.mxu0 %v3434
        %5762 = vmatprep.subr.bf16.mxu0 %v3447
        %5763 = vmatpush1.bf16.msra.mxu0 %v3446
        %5764 = vmatprep.subr.bf16.mxu0 %v3459
        %5765 = vmatpush1.bf16.msra.mxu0 %v3458
        %5766 = vmatprep.subr.bf16.mxu0 %v3471
        %5767 = vmatpush1.bf16.msra.mxu0 %v3470
        %5768 = vmatprep.subr.bf16.mxu0 %v3483
        %5769 = vmatpush1.bf16.msra.mxu0 %v3482
        %5770 = vmatprep.subr.bf16.mxu0 %v3495
        %5771 = vmatpush1.bf16.msra.mxu0 %v3494
        %5772 = vmatprep.subr.bf16.mxu0 %v3507
        %5773 = vmatpush1.bf16.msra.mxu0 %v3506
        %5774 = vmatprep.subr.bf16.mxu0 %v3519
        %5775 = vmatpush1.bf16.msra.mxu0 %v3518
        %5776 = vmatprep.subr.bf16.mxu0 %v3531
        %5777 = vmatpush1.bf16.msra.mxu0 %v3530
        %5778 = vmatprep.subr.bf16.mxu0 %v3543
        %5779 = vmatpush1.bf16.msra.mxu0 %v3542
        %5780 = vmatprep.subr.bf16.mxu0 %v3555
        %5781 = vmatpush1.bf16.msra.mxu0 %v3554
        %5782 = vmatprep.subr.bf16.mxu0 %v3567
        %5783 = vmatpush1.bf16.msra.mxu0 %v3566
        %5784 = vmatprep.subr.bf16.mxu0 %v3579
        %5785 = vmatpush1.bf16.msra.mxu0 %v3578
        %5786 = vmatprep.subr.bf16.mxu0 %v3591
        %5787 = vmatpush1.bf16.msra.mxu0 %v3590
        %5788 = vmatprep.mubr.bf16.mxu0 %v257
        %5789 = vmatmul.mubr.bf16.gmra.mrb[0].mxu0 %v256
        %v5790 = vpop.f32.mrb[0].mxu0
        %v5791 = vadd.f32 %v1079, %v5790
        %v5792 = vpop.f32.mrb[0].mxu0
        %v5793 = vadd.f32 %v1083, %v5792
        %v5794 = vpop.f32.mrb[0].mxu0
        %v5795 = vpop.f32.mrb[0].mxu0
        %5796 = vdwg.mxu0
        %5797 = vmatprep.subr.bf16.mxu0 %v3603
        %5798 = vmatpush1.bf16.msra.mxu0 %v3602
        %5799 = vmatprep.subr.bf16.mxu0 %v3615
        %5800 = vmatpush1.bf16.msra.mxu0 %v3614
        %5801 = vmatprep.subr.bf16.mxu0 %v3627
        %5802 = vmatpush1.bf16.msra.mxu0 %v3626
        %5803 = vmatprep.subr.bf16.mxu0 %v3639
        %5804 = vmatpush1.bf16.msra.mxu0 %v3638
        %5805 = vmatprep.subr.bf16.mxu0 %v3651
        %5806 = vmatpush1.bf16.msra.mxu0 %v3650
        %5807 = vmatprep.subr.bf16.mxu0 %v3663
        %5808 = vmatpush1.bf16.msra.mxu0 %v3662
        %5809 = vmatprep.subr.bf16.mxu0 %v3675
        %5810 = vmatpush1.bf16.msra.mxu0 %v3674
        %5811 = vmatprep.subr.bf16.mxu0 %v3687
        %5812 = vmatpush1.bf16.msra.mxu0 %v3686
        %5813 = vmatprep.subr.bf16.mxu0 %v3699
        %5814 = vmatpush1.bf16.msra.mxu0 %v3698
        %5815 = vmatprep.subr.bf16.mxu0 %v3711
        %5816 = vmatpush1.bf16.msra.mxu0 %v3710
        %5817 = vmatprep.subr.bf16.mxu0 %v3723
        %5818 = vmatpush1.bf16.msra.mxu0 %v3722
        %5819 = vmatprep.subr.bf16.mxu0 %v3735
        %5820 = vmatpush1.bf16.msra.mxu0 %v3734
        %5821 = vmatprep.subr.bf16.mxu0 %v3747
        %5822 = vmatpush1.bf16.msra.mxu0 %v3746
        %5823 = vmatprep.subr.bf16.mxu0 %v3759
        %5824 = vmatpush1.bf16.msra.mxu0 %v3758
        %5825 = vmatprep.subr.bf16.mxu0 %v3771
        %5826 = vmatpush1.bf16.msra.mxu0 %v3770
        %5827 = vmatprep.subr.bf16.mxu0 %v3783
        %5828 = vmatpush1.bf16.msra.mxu0 %v3782
        %5829 = vmatprep.mubr.bf16.mxu0 %v259
        %5830 = vmatmul.mubr.bf16.gmra.mrb[0].mxu0 %v258
        %v5831 = vpop.f32.mrb[0].mxu0
        %v5832 = vadd.f32 %v5791, %v5831
        %v5833 = vpop.f32.mrb[0].mxu0
        %v5834 = vadd.f32 %v5793, %v5833
        %v5835 = vpop.f32.mrb[0].mxu0
        %v5836 = vpop.f32.mrb[0].mxu0
        %5837 = vdwg.mxu0
        %5838 = vmatprep.subr.bf16.mxu0 %v3795
        %5839 = vmatpush1.bf16.msra.mxu0 %v3794
        %5840 = vmatprep.subr.bf16.mxu0 %v3807
        %5841 = vmatpush1.bf16.msra.mxu0 %v3806
        %5842 = vmatprep.subr.bf16.mxu0 %v3819
        %5843 = vmatpush1.bf16.msra.mxu0 %v3818
        %5844 = vmatprep.subr.bf16.mxu0 %v3831
        %5845 = vmatpush1.bf16.msra.mxu0 %v3830
        %5846 = vmatprep.subr.bf16.mxu0 %v3843
        %5847 = vmatpush1.bf16.msra.mxu0 %v3842
        %5848 = vmatprep.subr.bf16.mxu0 %v3855
        %5849 = vmatpush1.bf16.msra.mxu0 %v3854
        %5850 = vmatprep.subr.bf16.mxu0 %v3867
        %5851 = vmatpush1.bf16.msra.mxu0 %v3866
        %5852 = vmatprep.subr.bf16.mxu0 %v3879
        %5853 = vmatpush1.bf16.msra.mxu0 %v3878
        %5854 = vmatprep.subr.bf16.mxu0 %v3891
        %5855 = vmatpush1.bf16.msra.mxu0 %v3890
        %5856 = vmatprep.subr.bf16.mxu0 %v3903
        %5857 = vmatpush1.bf16.msra.mxu0 %v3902
        %5858 = vmatprep.subr.bf16.mxu0 %v3915
        %5859 = vmatpush1.bf16.msra.mxu0 %v3914
        %5860 = vmatprep.subr.bf16.mxu0 %v3927
        %5861 = vmatpush1.bf16.msra.mxu0 %v3926
        %5862 = vmatprep.subr.bf16.mxu0 %v3939
        %5863 = vmatpush1.bf16.msra.mxu0 %v3938
        %5864 = vmatprep.subr.bf16.mxu0 %v3951
        %5865 = vmatpush1.bf16.msra.mxu0 %v3950
        %5866 = vmatprep.subr.bf16.mxu0 %v3963
        %5867 = vmatpush1.bf16.msra.mxu0 %v3962
        %5868 = vmatprep.subr.bf16.mxu0 %v3975
        %5869 = vmatpush1.bf16.msra.mxu0 %v3974
        %5870 = vmatprep.mubr.bf16.mxu0 %v261
        %5871 = vmatmul.mubr.bf16.gmra.mrb[0].mxu0 %v260
        %v5872 = vpop.f32.mrb[0].mxu0
        %v5873 = vadd.f32 %v5832, %v5872
        %v5874 = vpop.f32.mrb[0].mxu0
        %v5875 = vadd.f32 %v5834, %v5874
        %v5876 = vpop.f32.mrb[0].mxu0
        %v5877 = vpop.f32.mrb[0].mxu0
        %5878 = vdwg.mxu0
        %5879 = vmatprep.subr.bf16.mxu0 %v3987
        %5880 = vmatpush1.bf16.msra.mxu0 %v3986
        %5881 = vmatprep.subr.bf16.mxu0 %v3999
        %5882 = vmatpush1.bf16.msra.mxu0 %v3998
        %5883 = vmatprep.subr.bf16.mxu0 %v4011
        %5884 = vmatpush1.bf16.msra.mxu0 %v4010
        %5885 = vmatprep.subr.bf16.mxu0 %v4023
        %5886 = vmatpush1.bf16.msra.mxu0 %v4022
        %5887 = vmatprep.subr.bf16.mxu0 %v4035
        %5888 = vmatpush1.bf16.msra.mxu0 %v4034
        %5889 = vmatprep.subr.bf16.mxu0 %v4047
        %5890 = vmatpush1.bf16.msra.mxu0 %v4046
        %5891 = vmatprep.subr.bf16.mxu0 %v4059
        %5892 = vmatpush1.bf16.msra.mxu0 %v4058
        %5893 = vmatprep.subr.bf16.mxu0 %v4071
        %5894 = vmatpush1.bf16.msra.mxu0 %v4070
        %5895 = vmatprep.subr.bf16.mxu0 %v4083
        %5896 = vmatpush1.bf16.msra.mxu0 %v4082
        %5897 = vmatprep.subr.bf16.mxu0 %v4095
        %5898 = vmatpush1.bf16.msra.mxu0 %v4094
        %5899 = vmatprep.subr.bf16.mxu0 %v4107
        %5900 = vmatpush1.bf16.msra.mxu0 %v4106
        %5901 = vmatprep.subr.bf16.mxu0 %v4119
        %5902 = vmatpush1.bf16.msra.mxu0 %v4118
        %5903 = vmatprep.subr.bf16.mxu0 %v4131
        %5904 = vmatpush1.bf16.msra.mxu0 %v4130
        %5905 = vmatprep.subr.bf16.mxu0 %v4143
        %5906 = vmatpush1.bf16.msra.mxu0 %v4142
        %5907 = vmatprep.subr.bf16.mxu0 %v4155
        %5908 = vmatpush1.bf16.msra.mxu0 %v4154
        %5909 = vmatprep.subr.bf16.mxu0 %v4167
        %5910 = vmatpush1.bf16.msra.mxu0 %v4166
        %5911 = vmatprep.mubr.bf16.mxu0 %v263
        %5912 = vmatmul.mubr.bf16.gmra.mrb[0].mxu0 %v262
        %v5913 = vpop.f32.mrb[0].mxu0
        %v5914 = vadd.f32 %v5873, %v5913
        %v5915 = vpop.f32.mrb[0].mxu0
        %v5916 = vadd.f32 %v5875, %v5915
        %v5917 = vpop.f32.mrb[0].mxu0
        %v5918 = vpop.f32.mrb[0].mxu0
        %5919 = vdwg.mxu0
        %v5932 = vcombine.low %v5094, %v5096
        %v5933 = vcombine.low %v5258, %v5260
        %v5935 = vunpack.c.l.s4 1983009808
        %v5936 = vunpack.c.0.s8 %v5935
        %v5937 = vlaneseq
        %v5938 = vshrl.u32 %v5937, 7
        %v5939 = vsub.s32 %v5936, %v5938
        %v5940 = vrot.slane %v5932, %v5939
        %v5942 = vunpack.c.l.s4 1983009808
        %v5943 = vunpack.c.0.s8 %v5942
        %v5944 = vlaneseq
        %v5945 = vshrl.u32 %v5944, 7
        %v5946 = vsub.s32 %v5943, %v5945
        %v5947 = vrot.slane %v5933, %v5946
        %v5948 = vcombine.low %v5940, %v5947
        %v5949 = vcombine.low %v5422, %v5424
        %v5950 = vcombine.low %v5586, %v5588
        %v5952 = vunpack.c.l.s4 1983009808
        %v5953 = vunpack.c.0.s8 %v5952
        %v5954 = vlaneseq
        %v5955 = vshrl.u32 %v5954, 7
        %v5956 = vsub.s32 %v5953, %v5955
        %v5957 = vrot.slane %v5949, %v5956
        %v5959 = vunpack.c.l.s4 1983009808
        %v5960 = vunpack.c.0.s8 %v5959
        %v5961 = vlaneseq
        %v5962 = vshrl.u32 %v5961, 7
        %v5963 = vsub.s32 %v5960, %v5962
        %v5964 = vrot.slane %v5950, %v5963
        %v5965 = vcombine.low %v5957, %v5964
        %v5966 = vcombine.low %v5750, %v5752
        %v5967 = vcombine.low %v5914, %v5916
        %v5969 = vunpack.c.l.s4 1983009808
        %v5970 = vunpack.c.0.s8 %v5969
        %v5971 = vlaneseq
        %v5972 = vshrl.u32 %v5971, 7
        %v5973 = vsub.s32 %v5970, %v5972
        %v5974 = vrot.slane %v5966, %v5973
        %v5976 = vunpack.c.l.s4 1983009808
        %v5977 = vunpack.c.0.s8 %v5976
        %v5978 = vlaneseq
        %v5979 = vshrl.u32 %v5978, 7
        %v5980 = vsub.s32 %v5977, %v5979
        %v5981 = vrot.slane %v5967, %v5980
        %v5982 = vcombine.low %v5974, %v5981
        %5986 = vst [vmem:[%s202] sm:$0xff] %v5948
        %5987 = vst [vmem:[%s202 + $0x8] sm:$0xff] %v5965
        %5988 = vst [vmem:[%s202 + $0x10] sm:$0xff] %v5982
        %s5989 = sand.u32 %s101, 1
        %s5990 = scalar_lea.sflag [#allocation4], %s5989
        %s5991 = sand.u32 %s101, 1
        %s5992 = smul.addr %s5991, 24
        %s5993 = scalar_lea.vmem [#allocation5], %s5992
        // Predicated region
        $region37: #{decoder_forward.1} parent=31 // pred_check
          %p5994 = pneg %p111
        $region38: #{decoder_forward.1} parent=31 // pred_check_branch
          %5996 = sbr.rel (%p5994) target = $region40
        $region39: #{decoder_forward.1} parent=31 // pred_region
          %s5997 = smul.u32 12, %s20
          %s5999 = ssub.s32 384, 384
          %6000 = vsyncadd %s5990, %s5999
          %s6001 = smul.addr %s5997, 32
          %s6002 = scalar_lea.hbm %s3, %s6001
          %s6004 = sshll.u32 %s5993, 4
          %s6005 = int_to_ptr.vmem [resolvable:$true] %s6004
          %6007 = dma.vmem_to_hbm [thread:$0]  %s6005, 384, %s6002, %s5990
        $region40: #{decoder_forward.1} parent=31 // pred_fallthru
          _
      $region32: #{decoder_forward.1} parent=5 // pred_fallthru
        _
      %p6008 = scmp.le.s32.totalorder 2, %s15
      // Predicated region
      $region41: #{decoder_forward.1} parent=5 // pred_check
        %p6009 = pneg %p6008
      $region42: #{decoder_forward.1} parent=5 // pred_check_branch
        %6011 = sbr.rel (%p6009) target = $region44
      $region43: #{decoder_forward.1} parent=5 // pred_region
        %s6012 = ssub.s32 %s15, 2
        // Predicated region
        $region45: #{decoder_forward.1} parent=43 // pred_check
          %p6013 = pneg %p117
        $region46: #{decoder_forward.1} parent=43 // pred_check_branch
          %6015 = sbr.rel (%p6013) target = $region48
        $region47: #{decoder_forward.1} parent=43 // pred_region
          %s6016 = sand.u32 %s102, 1
          %s6017 = scalar_lea.sflag [#allocation4], %s6016
          %s6018 = sand.u32 %s102, 1
          %s6019 = smul.addr %s6018, 24
          %s6020 = scalar_lea.vmem [#allocation5], %s6019
          %6021 = dma.done %s6017, 384
        $region48: #{decoder_forward.1} parent=43 // pred_fallthru
          _
      $region44: #{decoder_forward.1} parent=5 // pred_fallthru
        _
    $region6: #{decoder_forward.1} parent=1 // loop_footer
      %s19 = sadd.s32 1, %s15
    $region7: #{decoder_forward.1} parent=1 // loop_footer_branch
      %14 = sbr.rel target = $region3
    $region8: #{decoder_forward.1} parent=1 // loop_exit
      _
    %6022 = vsyncpa [#allocation3], 1
    %s6023 = scalar_lea.sflag [#allocation3], 1
    %6024 = vsyncpa %s6023, 1
    %6025 = vsyncpa [#allocation4], 1
    %s6026 = scalar_lea.sflag [#allocation4], 1
    %6027 = vsyncpa %s6026, 1

</llo_original>
